<compile_context>
chip_gen: v7x
topology: tpu7x:2x2x1
jax: 0.10.0
libtpu: 0.0.40
codegen_flags: <defaults>
</compile_context>

<pallas_src>
import functools

import jax
import jax.numpy as jnp
from jax.experimental import pallas as pl
from jax.experimental.pallas import tpu as pltpu

_VMEM_LIMIT = 32 * 1024 * 1024   # explicit scoped-VMEM budget, fits every gen


# ----------------------------------------------------------------------------
# Conv kernel: one grid step = one image group, ONE wide matmul.
#   x_ref: (K, L) im2col patches, L = (N/G)*oh*ow on the lane axis
#   w_ref: (Cout, K), b_ref: (Cout, 1), o_ref: (Cout, L)
# ----------------------------------------------------------------------------
def _conv_mm_kernel(x_ref, w_ref, b_ref, o_ref):
    y = jnp.dot(w_ref[...], x_ref[...],
                preferred_element_type=jnp.float32) + b_ref[...]
    o_ref[...] = jnp.maximum(y, 0.2 * y)          # LeakyReLU(0.2)


def _im2col_grouped(x, KH, KW, stride):
    """x: (G, C, Ng, H, W) -> patches (G, KH*KW*C, Ng*oh*ow), K order (kh,kw,c)."""
    G, C, Ng, H, W = x.shape
    oh = (H - KH) // stride + 1
    ow = (W - KW) // stride + 1
    pieces = []
    for kh in range(KH):
        for kw in range(KW):
            sl = x[:, :, :, kh:kh + stride * (oh - 1) + 1:stride,
                   kw:kw + stride * (ow - 1) + 1:stride]
            pieces.append(sl)                          # (G, C, Ng, oh, ow)
    p = jnp.stack(pieces, axis=1)                      # (G, KHKW, C, Ng, oh, ow)
    return p.reshape(G, KH * KW * C, Ng * oh * ow), oh, ow


def conv2d_lrelu(x, w_oihw, b, stride=2):
    """Conv2d(4x4, stride 2, VALID) + LeakyReLU(0.2).
    x: (G, Cin, Ng, H, W) -> (G, Cout, Ng, oh, ow); grid=(G,) 'parallel'."""
    G, Cin, Ng = x.shape[:3]
    cout, cin, KH, KW = w_oihw.shape
    assert cin == Cin
    patches, oh, ow = _im2col_grouped(x, KH, KW, stride)
    K, L = patches.shape[1], patches.shape[2]
    w2 = jnp.transpose(w_oihw, (0, 2, 3, 1)).reshape(cout, K)   # (co,(kh,kw,ci))
    b2 = b.reshape(cout, 1)
    y = pl.pallas_call(
        _conv_mm_kernel,
        out_shape=jax.ShapeDtypeStruct((G, cout, L), jnp.float32),
        grid=(G,),
        in_specs=[
            pl.BlockSpec((None, K, L), lambda g: (g, 0, 0)),
            pl.BlockSpec((cout, K), lambda g: (0, 0)),
            pl.BlockSpec((cout, 1), lambda g: (0, 0)),
        ],
        out_specs=pl.BlockSpec((None, cout, L), lambda g: (g, 0, 0)),
        compiler_params=pltpu.CompilerParams(
            dimension_semantics=("parallel",),
            vmem_limit_bytes=_VMEM_LIMIT),
    )(patches, w2, b2)
    return y.reshape(G, cout, Ng, oh, ow)


# ----------------------------------------------------------------------------
# Fused tail kernel: conv4-as-matmul + LeakyReLU (-> x_feat), packed dense
# chains (ReLU), and timestep-merge sums. Single grid step, batch in rows.
# ----------------------------------------------------------------------------
def _fused_tail_kernel(x_ref, *refs, n_dense, n_levels, nf):
    n_in = 2 + 2 * n_dense + n_levels
    in_refs = refs[:n_in]
    out_refs = refs[n_in:]
    h = jnp.dot(x_ref[...], in_refs[0][...],
                preferred_element_type=jnp.float32) + in_refs[1][...]
    feat = jnp.maximum(h, 0.2 * h)                    # LeakyReLU -> x_feat
    out_refs[0][...] = feat
    h = feat
    for d in range(n_dense):
        w = in_refs[2 + 2 * d][...]
        bias = in_refs[3 + 2 * d][...]
        h = jnp.maximum(
            jnp.dot(h, w, preferred_element_type=jnp.float32) + bias, 0.0)
    for l in range(n_levels):
        m = in_refs[2 + 2 * n_dense + l][...]         # precomputed 0/1 matrix
        part = h[:, l * nf:(l + 1) * nf] if n_dense else h
        out_refs[1 + l][...] = jnp.dot(m, part,
                                       preferred_element_type=jnp.float32)


def fused_tail(x3, wc4, bc4, packed_dense, merge_mats, nf):
    N = x3.shape[0]
    n_dense = len(packed_dense)
    n_levels = len(merge_mats)
    flat = [x3, wc4, bc4]
    for w, bias in packed_dense:
        flat += [w, bias]
    flat += list(merge_mats)
    in_specs = [pl.BlockSpec(a.shape, lambda i: (0, 0)) for a in flat]
    out_shape = tuple([jax.ShapeDtypeStruct((N, nf), jnp.float32)] +
                      [jax.ShapeDtypeStruct((m.shape[0], nf), jnp.float32)
                       for m in merge_mats])
    out_specs = tuple(pl.BlockSpec(s.shape, lambda i: (0, 0))
                      for s in out_shape)
    outs = pl.pallas_call(
        functools.partial(_fused_tail_kernel, n_dense=n_dense,
                          n_levels=n_levels, nf=nf),
        out_shape=out_shape,
        grid=(1,),
        in_specs=in_specs,
        out_specs=out_specs,
        compiler_params=pltpu.CompilerParams(
            dimension_semantics=("arbitrary",),
            vmem_limit_bytes=_VMEM_LIMIT),
    )(*flat)
    return list(outs)


# ----------------------------------------------------------------------------
# Parameter packing helpers (all host/XLA-side constant prep)
# ----------------------------------------------------------------------------
def _conv_to_matrix(w_oihw, b, in_hw, stride=2):
    """Equivalent dense matrix of a VALID strided conv on a fixed input size:
    flattened (c,h,w) input -> flattened (cout,oh,ow) output."""
    cout, cin, KH, KW = w_oihw.shape
    H, W = in_hw
    oh = (H - KH) // stride + 1
    ow = (W - KW) // stride + 1
    sh = (jnp.arange(H)[:, None, None] ==
          stride * jnp.arange(oh)[None, :, None] +
          jnp.arange(KH)[None, None, :]).astype(jnp.float32)      # (H, oh, KH)
    sw = (jnp.arange(W)[:, None, None] ==
          stride * jnp.arange(ow)[None, :, None] +
          jnp.arange(KW)[None, None, :]).astype(jnp.float32)      # (W, ow, KW)
    w_eq = jnp.einsum('ocij,hyi,wxj->chwoyx', w_oihw, sh, sw)
    w_eq = w_eq.reshape(cin * H * W, cout * oh * ow)              # (576, 128)
    b_eq = jnp.broadcast_to(b[:, None, None],
                            (cout, oh, ow)).reshape(1, cout * oh * ow)
    return w_eq, b_eq


def _pack_dense(dense_levels, nf):
    """First dense layers of all levels concatenated along N (wide matmul);
    subsequent layers packed block-diagonally."""
    L = len(dense_levels)
    n_dense = len(dense_levels[0]) if L else 0
    packed = []
    for d in range(n_dense):
        if d == 0:
            wd = jnp.concatenate([dense_levels[l][0][0] for l in range(L)],
                                 axis=1)                          # (nf, L*nf)
        else:
            wd = jnp.block([[dense_levels[l][d][0] if l == m
                             else jnp.zeros((nf, nf), jnp.float32)
                             for m in range(L)] for l in range(L)])
        bd = jnp.concatenate([dense_levels[l][d][1] for l in range(L)],
                             axis=0).reshape(1, L * nf)
        packed.append((wd, bd))
    return packed


def _merge_matrix(B, T, merge):
    """Block-diagonal-over-batch 0/1 matrix implementing the pad+group-sum."""
    t_out = -(-T // merge)
    small = (jnp.arange(T)[None, :] // merge ==
             jnp.arange(t_out)[:, None]).astype(jnp.float32)      # (t_out, T)
    return jnp.kron(jnp.eye(B, dtype=jnp.float32), small)         # (B*t_out, B*T)


# ----------------------------------------------------------------------------
# Parameter init (deterministic, PyTorch-default-style uniform bounds)
# ----------------------------------------------------------------------------
def init_params(key, total_filters=4, levels=3, enc_dense_layers=3):
    tfs = (total_filters, total_filters * 2, total_filters * 4,
           total_filters * 8)
    convs = []
    cin = 3
    for cout in tfs:
        key, k1, k2 = jax.random.split(key, 3)
        bound = 1.0 / float(cin * 4 * 4) ** 0.5
        w = jax.random.uniform(k1, (cout, cin, 4, 4), jnp.float32, -bound, bound)
        b = jax.random.uniform(k2, (cout,), jnp.float32, -bound, bound)
        convs.append((w, b))
        cin = cout
    nf = tfs[-1] * 2 * 2                  # 64x64 input -> (tf4, 2, 2)
    dense_levels = []
    for _level in range(1, levels):
        blocks = []
        for _ in range(1, enc_dense_layers):
            key, k1, k2 = jax.random.split(key, 3)
            bound = 1.0 / float(nf) ** 0.5
            w = jax.random.uniform(k1, (nf, nf), jnp.float32, -bound, bound)
            b = jax.random.uniform(k2, (nf,), jnp.float32, -bound, bound)
            blocks.append((w, b))
        dense_levels.append(blocks)
    return convs, tuple(dense_levels), nf


# ----------------------------------------------------------------------------
# Encoder forward (Pallas) and a pure-JAX reference
# ----------------------------------------------------------------------------
@functools.partial(jax.jit, static_argnames=("levels", "tmp_abs_factor"))
def encoder_forward(obs, convs, dense_levels, levels=3, tmp_abs_factor=2):
    B, T = obs.shape[:2]
    N = B * T
    C, H, W = obs.shape[2:]
    G = 2 if N % 2 == 0 else 1             # >=2 parallel grid steps for v7x
    Ng = N // G
    # channel-major grouped layout: (G, C, Ng, H, W)
    x = obs.reshape(G, Ng, C, H, W).transpose(0, 2, 1, 3, 4)
    for (w, b) in convs[:-1]:              # conv1..conv3 as Pallas kernels
        x = conv2d_lrelu(x, w, b)
    # flatten conv3 output per image in (c, h, w) order -> (N, C3*h3*w3)
    _, C3, _, h3, w3 = x.shape
    x3 = x.transpose(0, 2, 1, 3, 4).reshape(N, C3 * h3 * w3)
    # conv4 expanded to a (576, nf) matrix, fused with dense chains + merges
    wc4, bc4 = _conv_to_matrix(convs[-1][0], convs[-1][1], (h3, w3))
    nf = wc4.shape[1]
    packed = _pack_dense(dense_levels, nf)
    merges = [tmp_abs_factor ** l for l in range(1, levels)]
    merge_mats = [_merge_matrix(B, T, m) for m in merges]
    outs = fused_tail(x3, wc4, bc4, packed, merge_mats, nf)
    # NOTE: source has `layers.sum(2)` (a list, would raise); the intended op
    # is `layer.sum(2)` — sum over the merged-timestep axis.
    layers = [outs[0].reshape(B, T, nf)]
    for l, m in enumerate(merges):
        layers.append(outs[1 + l].reshape(B, -(-T // m), nf))
    return layers


def reference_forward(obs, convs, dense_levels, levels=3, tmp_abs_factor=2):
    B, T = obs.shape[:2]
    x = obs.reshape((B * T,) + obs.shape[2:])
    for (w, b) in convs:
        x = jax.lax.conv_general_dilated(
            x, w, window_strides=(2, 2), padding="VALID",
            dimension_numbers=("NCHW", "OIHW", "NCHW"))
        x = x + b[None, :, None, None]
        x = jnp.where(x > 0, x, 0.2 * x)
    x = x.reshape(B, T, -1)
    layers = [x]
    for level in range(1, levels):
        h = x
        for (w, b) in dense_levels[level - 1]:
            h = jnp.maximum(h @ w + b, 0.0)
        merge = tmp_abs_factor ** level
        pad_t = (-T) % merge
        h = jnp.pad(h, ((0, 0), (0, pad_t), (0, 0)))
        h = h.reshape(B, -1, merge, h.shape[-1]).sum(2)
        layers.append(h)
    return layers


if __name__ == "__main__":
    # cfg: total_filters=4, levels=3, enc_dense_layers=3, tmp_abs_factor=2
    key = jax.random.PRNGKey(0)
    key, pkey, dkey = jax.random.split(key, 3)
    convs, dense_levels, nf = init_params(pkey, total_filters=4, levels=3,
                                          enc_dense_layers=3)

    obs = jax.random.uniform(dkey, (2, 8, 3, 64, 64), jnp.float32)

    outs = encoder_forward(obs, convs, dense_levels, levels=3,
                           tmp_abs_factor=2)
    outs = jax.block_until_ready(outs)

    refs = reference_forward(obs, convs, dense_levels, levels=3,
                             tmp_abs_factor=2)
    for o, r in zip(outs, refs):
        assert o.shape == r.shape, (o.shape, r.shape)
        assert jnp.allclose(o, r, rtol=1e-3, atol=1e-3), \
            float(jnp.max(jnp.abs(o - r)))

    print("KERNEL_OK")
</pallas_src>

<mosaic_0001>
module attributes {stable_mosaic.version = 11 : i64} {
  func.func @_conv_mm_kernel(%arg0: i32, %arg1: memref<1x48x7688xf32, #tpu.memory_space<vmem>>, %arg2: memref<4x48xf32, #tpu.memory_space<vmem>>, %arg3: memref<4x1xf32, #tpu.memory_space<vmem>>, %arg4: memref<1x4x7688xf32, #tpu.memory_space<vmem>>) attributes {dimension_semantics = [#tpu.dimension_semantics<parallel>], iteration_bounds = array<i64: 2>, scalar_prefetch = 0 : i64, scratch_operands = 0 : i64, tpu.core_type = #tpu.core_type<tc>, window_params = [{transform_indices = @transform_0, window_bounds = array<i64: 1, 48, 7688>}, {pipeline_mode = #tpu.pipeline_mode<synchronous>, transform_indices = @transform_1, window_bounds = array<i64: 4, 48>}, {pipeline_mode = #tpu.pipeline_mode<synchronous>, transform_indices = @transform_2, window_bounds = array<i64: 4, 1>}, {transform_indices = @transform_3, window_bounds = array<i64: 1, 4, 7688>}]} {
    %c0 = arith.constant 0 : index
    %c0_0 = arith.constant 0 : index
    %0 = vector.load %arg2[%c0, %c0_0] : memref<4x48xf32, #tpu.memory_space<vmem>>, vector<4x48xf32>
    %c0_1 = arith.constant 0 : index
    %c0_2 = arith.constant 0 : index
    %c0_3 = arith.constant 0 : index
    %1 = vector.load %arg1[%c0_1, %c0_2, %c0_3] : memref<1x48x7688xf32, #tpu.memory_space<vmem>>, vector<1x48x7688xf32>
    %2 = vector.shape_cast %1 : vector<1x48x7688xf32> to vector<48x7688xf32>
    %cst = arith.constant dense<0.000000e+00> : vector<4x7688xf32>
    %3 = tpu.matmul %0, %2, %cst {dimension_numbers = #tpu.dot_dimension_numbers<[1], [0], [0], [1], [0, 0, 1, 1], [], []>} : vector<4x48xf32>, vector<48x7688xf32>, vector<4x7688xf32> -> vector<4x7688xf32>
    %c0_4 = arith.constant 0 : index
    %c0_5 = arith.constant 0 : index
    %4 = vector.load %arg3[%c0_4, %c0_5] : memref<4x1xf32, #tpu.memory_space<vmem>>, vector<4x1xf32>
    %5 = vector.broadcast %4 : vector<4x1xf32> to vector<4x7688xf32>
    %6 = arith.addf %3, %5 : vector<4x7688xf32>
    %cst_6 = arith.constant 2.000000e-01 : f32
    %7 = vector.broadcast %cst_6 : f32 to vector<4x7688xf32>
    %8 = arith.mulf %7, %6 : vector<4x7688xf32>
    %9 = arith.maximumf %6, %8 : vector<4x7688xf32>
    %c0_7 = arith.constant 0 : index
    %c0_8 = arith.constant 0 : index
    %c0_9 = arith.constant 0 : index
    %10 = vector.load %arg4[%c0_7, %c0_8, %c0_9] : memref<1x4x7688xf32, #tpu.memory_space<vmem>>, vector<1x4x7688xf32>
    %11 = vector.shape_cast %10 : vector<1x4x7688xf32> to vector<4x7688xf32>
    %12 = vector.shape_cast %9 : vector<4x7688xf32> to vector<1x4x7688xf32>
    tpu.vector_store %arg4[%c0_7, %c0_8, %c0_9], %12 {strides = array<i32>} : memref<1x4x7688xf32, #tpu.memory_space<vmem>>, vector<1x4x7688xf32>,
    return
  }
  func.func @transform_0(%arg0: i32) -> (i32, i32, i32) {
    %c0_i32 = arith.constant 0 : i32
    %c0_i32_0 = arith.constant 0 : i32
    %c0_i32_1 = arith.constant 0 : i32
    return %arg0, %c0_i32, %c0_i32_0 : i32, i32, i32
  }
  func.func @transform_1(%arg0: i32) -> (i32, i32) {
    %c0_i32 = arith.constant 0 : i32
    %c0_i32_0 = arith.constant 0 : i32
    %c0_i32_1 = arith.constant 0 : i32
    return %c0_i32, %c0_i32_0 : i32, i32
  }
  func.func @transform_2(%arg0: i32) -> (i32, i32) {
    %c0_i32 = arith.constant 0 : i32
    %c0_i32_0 = arith.constant 0 : i32
    %c0_i32_1 = arith.constant 0 : i32
    return %c0_i32, %c0_i32_0 : i32, i32
  }
  func.func @transform_3(%arg0: i32) -> (i32, i32, i32) {
    %c0_i32 = arith.constant 0 : i32
    %c0_i32_0 = arith.constant 0 : i32
    %c0_i32_1 = arith.constant 0 : i32
    return %arg0, %c0_i32, %c0_i32_0 : i32, i32, i32
  }
}

module attributes {stable_mosaic.version = 11 : i64} {
  func.func @_conv_mm_kernel(%arg0: i32, %arg1: memref<1x64x1568xf32, #tpu.memory_space<vmem>>, %arg2: memref<8x64xf32, #tpu.memory_space<vmem>>, %arg3: memref<8x1xf32, #tpu.memory_space<vmem>>, %arg4: memref<1x8x1568xf32, #tpu.memory_space<vmem>>) attributes {dimension_semantics = [#tpu.dimension_semantics<parallel>], iteration_bounds = array<i64: 2>, scalar_prefetch = 0 : i64, scratch_operands = 0 : i64, tpu.core_type = #tpu.core_type<tc>, window_params = [{transform_indices = @transform_0, window_bounds = array<i64: 1, 64, 1568>}, {pipeline_mode = #tpu.pipeline_mode<synchronous>, transform_indices = @transform_1, window_bounds = array<i64: 8, 64>}, {pipeline_mode = #tpu.pipeline_mode<synchronous>, transform_indices = @transform_2, window_bounds = array<i64: 8, 1>}, {transform_indices = @transform_3, window_bounds = array<i64: 1, 8, 1568>}]} {
    %c0 = arith.constant 0 : index
    %c0_0 = arith.constant 0 : index
    %0 = vector.load %arg2[%c0, %c0_0] : memref<8x64xf32, #tpu.memory_space<vmem>>, vector<8x64xf32>
    %c0_1 = arith.constant 0 : index
    %c0_2 = arith.constant 0 : index
    %c0_3 = arith.constant 0 : index
    %1 = vector.load %arg1[%c0_1, %c0_2, %c0_3] : memref<1x64x1568xf32, #tpu.memory_space<vmem>>, vector<1x64x1568xf32>
    %2 = vector.shape_cast %1 : vector<1x64x1568xf32> to vector<64x1568xf32>
    %cst = arith.constant dense<0.000000e+00> : vector<8x1568xf32>
    %3 = tpu.matmul %0, %2, %cst {dimension_numbers = #tpu.dot_dimension_numbers<[1], [0], [0], [1], [0, 0, 1, 1], [], []>} : vector<8x64xf32>, vector<64x1568xf32>, vector<8x1568xf32> -> vector<8x1568xf32>
    %c0_4 = arith.constant 0 : index
    %c0_5 = arith.constant 0 : index
    %4 = vector.load %arg3[%c0_4, %c0_5] : memref<8x1xf32, #tpu.memory_space<vmem>>, vector<8x1xf32>
    %5 = vector.broadcast %4 : vector<8x1xf32> to vector<8x1568xf32>
    %6 = arith.addf %3, %5 : vector<8x1568xf32>
    %cst_6 = arith.constant 2.000000e-01 : f32
    %7 = vector.broadcast %cst_6 : f32 to vector<8x1568xf32>
    %8 = arith.mulf %7, %6 : vector<8x1568xf32>
    %9 = arith.maximumf %6, %8 : vector<8x1568xf32>
    %c0_7 = arith.constant 0 : index
    %c0_8 = arith.constant 0 : index
    %c0_9 = arith.constant 0 : index
    %10 = vector.load %arg4[%c0_7, %c0_8, %c0_9] : memref<1x8x1568xf32, #tpu.memory_space<vmem>>, vector<1x8x1568xf32>
    %11 = vector.shape_cast %10 : vector<1x8x1568xf32> to vector<8x1568xf32>
    %12 = vector.shape_cast %9 : vector<8x1568xf32> to vector<1x8x1568xf32>
    tpu.vector_store %arg4[%c0_7, %c0_8, %c0_9], %12 {strides = array<i32>} : memref<1x8x1568xf32, #tpu.memory_space<vmem>>, vector<1x8x1568xf32>,
    return
  }
  func.func @transform_0(%arg0: i32) -> (i32, i32, i32) {
    %c0_i32 = arith.constant 0 : i32
    %c0_i32_0 = arith.constant 0 : i32
    %c0_i32_1 = arith.constant 0 : i32
    return %arg0, %c0_i32, %c0_i32_0 : i32, i32, i32
  }
  func.func @transform_1(%arg0: i32) -> (i32, i32) {
    %c0_i32 = arith.constant 0 : i32
    %c0_i32_0 = arith.constant 0 : i32
    %c0_i32_1 = arith.constant 0 : i32
    return %c0_i32, %c0_i32_0 : i32, i32
  }
  func.func @transform_2(%arg0: i32) -> (i32, i32) {
    %c0_i32 = arith.constant 0 : i32
    %c0_i32_0 = arith.constant 0 : i32
    %c0_i32_1 = arith.constant 0 : i32
    return %c0_i32, %c0_i32_0 : i32, i32
  }
  func.func @transform_3(%arg0: i32) -> (i32, i32, i32) {
    %c0_i32 = arith.constant 0 : i32
    %c0_i32_0 = arith.constant 0 : i32
    %c0_i32_1 = arith.constant 0 : i32
    return %arg0, %c0_i32, %c0_i32_0 : i32, i32, i32
  }
}

module attributes {stable_mosaic.version = 11 : i64} {
  func.func @_conv_mm_kernel(%arg0: i32, %arg1: memref<1x128x288xf32, #tpu.memory_space<vmem>>, %arg2: memref<16x128xf32, #tpu.memory_space<vmem>>, %arg3: memref<16x1xf32, #tpu.memory_space<vmem>>, %arg4: memref<1x16x288xf32, #tpu.memory_space<vmem>>) attributes {dimension_semantics = [#tpu.dimension_semantics<parallel>], iteration_bounds = array<i64: 2>, scalar_prefetch = 0 : i64, scratch_operands = 0 : i64, tpu.core_type = #tpu.core_type<tc>, window_params = [{transform_indices = @transform_0, window_bounds = array<i64: 1, 128, 288>}, {pipeline_mode = #tpu.pipeline_mode<synchronous>, transform_indices = @transform_1, window_bounds = array<i64: 16, 128>}, {pipeline_mode = #tpu.pipeline_mode<synchronous>, transform_indices = @transform_2, window_bounds = array<i64: 16, 1>}, {transform_indices = @transform_3, window_bounds = array<i64: 1, 16, 288>}]} {
    %c0 = arith.constant 0 : index
    %c0_0 = arith.constant 0 : index
    %0 = vector.load %arg2[%c0, %c0_0] : memref<16x128xf32, #tpu.memory_space<vmem>>, vector<16x128xf32>
    %c0_1 = arith.constant 0 : index
    %c0_2 = arith.constant 0 : index
    %c0_3 = arith.constant 0 : index
    %1 = vector.load %arg1[%c0_1, %c0_2, %c0_3] : memref<1x128x288xf32, #tpu.memory_space<vmem>>, vector<1x128x288xf32>
    %2 = vector.shape_cast %1 : vector<1x128x288xf32> to vector<128x288xf32>
    %cst = arith.constant dense<0.000000e+00> : vector<16x288xf32>
    %3 = tpu.matmul %0, %2, %cst {dimension_numbers = #tpu.dot_dimension_numbers<[1], [0], [0], [1], [0, 0, 1, 1], [], []>} : vector<16x128xf32>, vector<128x288xf32>, vector<16x288xf32> -> vector<16x288xf32>
    %c0_4 = arith.constant 0 : index
    %c0_5 = arith.constant 0 : index
    %4 = vector.load %arg3[%c0_4, %c0_5] : memref<16x1xf32, #tpu.memory_space<vmem>>, vector<16x1xf32>
    %5 = vector.broadcast %4 : vector<16x1xf32> to vector<16x288xf32>
    %6 = arith.addf %3, %5 : vector<16x288xf32>
    %cst_6 = arith.constant 2.000000e-01 : f32
    %7 = vector.broadcast %cst_6 : f32 to vector<16x288xf32>
    %8 = arith.mulf %7, %6 : vector<16x288xf32>
    %9 = arith.maximumf %6, %8 : vector<16x288xf32>
    %c0_7 = arith.constant 0 : index
    %c0_8 = arith.constant 0 : index
    %c0_9 = arith.constant 0 : index
    %10 = vector.load %arg4[%c0_7, %c0_8, %c0_9] : memref<1x16x288xf32, #tpu.memory_space<vmem>>, vector<1x16x288xf32>
    %11 = vector.shape_cast %10 : vector<1x16x288xf32> to vector<16x288xf32>
    %12 = vector.shape_cast %9 : vector<16x288xf32> to vector<1x16x288xf32>
    tpu.vector_store %arg4[%c0_7, %c0_8, %c0_9], %12 {strides = array<i32>} : memref<1x16x288xf32, #tpu.memory_space<vmem>>, vector<1x16x288xf32>,
    return
  }
  func.func @transform_0(%arg0: i32) -> (i32, i32, i32) {
    %c0_i32 = arith.constant 0 : i32
    %c0_i32_0 = arith.constant 0 : i32
    %c0_i32_1 = arith.constant 0 : i32
    return %arg0, %c0_i32, %c0_i32_0 : i32, i32, i32
  }
  func.func @transform_1(%arg0: i32) -> (i32, i32) {
    %c0_i32 = arith.constant 0 : i32
    %c0_i32_0 = arith.constant 0 : i32
    %c0_i32_1 = arith.constant 0 : i32
    return %c0_i32, %c0_i32_0 : i32, i32
  }
  func.func @transform_2(%arg0: i32) -> (i32, i32) {
    %c0_i32 = arith.constant 0 : i32
    %c0_i32_0 = arith.constant 0 : i32
    %c0_i32_1 = arith.constant 0 : i32
    return %c0_i32, %c0_i32_0 : i32, i32
  }
  func.func @transform_3(%arg0: i32) -> (i32, i32, i32) {
    %c0_i32 = arith.constant 0 : i32
    %c0_i32_0 = arith.constant 0 : i32
    %c0_i32_1 = arith.constant 0 : i32
    return %arg0, %c0_i32, %c0_i32_0 : i32, i32, i32
  }
}

module attributes {stable_mosaic.version = 11 : i64} {
  func.func @_fused_tail_kernel(%arg0: i32, %arg1: memref<16x576xf32, #tpu.memory_space<vmem>>, %arg2: memref<576x128xf32, #tpu.memory_space<vmem>>, %arg3: memref<1x128xf32, #tpu.memory_space<vmem>>, %arg4: memref<128x256xf32, #tpu.memory_space<vmem>>, %arg5: memref<1x256xf32, #tpu.memory_space<vmem>>, %arg6: memref<256x256xf32, #tpu.memory_space<vmem>>, %arg7: memref<1x256xf32, #tpu.memory_space<vmem>>, %arg8: memref<8x16xf32, #tpu.memory_space<vmem>>, %arg9: memref<4x16xf32, #tpu.memory_space<vmem>>, %arg10: memref<16x128xf32, #tpu.memory_space<vmem>>, %arg11: memref<8x128xf32, #tpu.memory_space<vmem>>, %arg12: memref<4x128xf32, #tpu.memory_space<vmem>>) attributes {dimension_semantics = [#tpu.dimension_semantics<arbitrary>], iteration_bounds = array<i64: 1>, scalar_prefetch = 0 : i64, scratch_operands = 0 : i64, tpu.core_type = #tpu.core_type<tc>, window_params = [{pipeline_mode = #tpu.pipeline_mode<synchronous>, transform_indices = @transform_0, window_bounds = array<i64: 16, 576>}, {pipeline_mode = #tpu.pipeline_mode<synchronous>, transform_indices = @transform_1, window_bounds = array<i64: 576, 128>}, {pipeline_mode = #tpu.pipeline_mode<synchronous>, transform_indices = @transform_2, window_bounds = array<i64: 1, 128>}, {pipeline_mode = #tpu.pipeline_mode<synchronous>, transform_indices = @transform_3, window_bounds = array<i64: 128, 256>}, {pipeline_mode = #tpu.pipeline_mode<synchronous>, transform_indices = @transform_4, window_bounds = array<i64: 1, 256>}, {pipeline_mode = #tpu.pipeline_mode<synchronous>, transform_indices = @transform_5, window_bounds = array<i64: 256, 256>}, {pipeline_mode = #tpu.pipeline_mode<synchronous>, transform_indices = @transform_6, window_bounds = array<i64: 1, 256>}, {pipeline_mode = #tpu.pipeline_mode<synchronous>, transform_indices = @transform_7, window_bounds = array<i64: 8, 16>}, {pipeline_mode = #tpu.pipeline_mode<synchronous>, transform_indices = @transform_8, window_bounds = array<i64: 4, 16>}, {pipeline_mode = #tpu.pipeline_mode<synchronous>, transform_indices = @transform_9, window_bounds = array<i64: 16, 128>}, {pipeline_mode = #tpu.pipeline_mode<synchronous>, transform_indices = @transform_10, window_bounds = array<i64: 8, 128>}, {pipeline_mode = #tpu.pipeline_mode<synchronous>, transform_indices = @transform_11, window_bounds = array<i64: 4, 128>}]} {
    %c0 = arith.constant 0 : index
    %c0_0 = arith.constant 0 : index
    %0 = vector.load %arg1[%c0, %c0_0] : memref<16x576xf32, #tpu.memory_space<vmem>>, vector<16x576xf32>
    %c0_1 = arith.constant 0 : index
    %c0_2 = arith.constant 0 : index
    %1 = vector.load %arg2[%c0_1, %c0_2] : memref<576x128xf32, #tpu.memory_space<vmem>>, vector<576x128xf32>
    %cst = arith.constant dense<0.000000e+00> : vector<16x128xf32>
    %2 = tpu.matmul %0, %1, %cst {dimension_numbers = #tpu.dot_dimension_numbers<[1], [0], [0], [1], [0, 0, 1, 1], [], []>} : vector<16x576xf32>, vector<576x128xf32>, vector<16x128xf32> -> vector<16x128xf32>
    %c0_3 = arith.constant 0 : index
    %c0_4 = arith.constant 0 : index
    %3 = vector.load %arg3[%c0_3, %c0_4] : memref<1x128xf32, #tpu.memory_space<vmem>>, vector<1x128xf32>
    %4 = vector.broadcast %3 : vector<1x128xf32> to vector<16x128xf32>
    %5 = arith.addf %2, %4 : vector<16x128xf32>
    %cst_5 = arith.constant 2.000000e-01 : f32
    %6 = vector.broadcast %cst_5 : f32 to vector<16x128xf32>
    %7 = arith.mulf %6, %5 : vector<16x128xf32>
    %8 = arith.maximumf %5, %7 : vector<16x128xf32>
    %c0_6 = arith.constant 0 : index
    %c0_7 = arith.constant 0 : index
    %9 = vector.load %arg10[%c0_6, %c0_7] : memref<16x128xf32, #tpu.memory_space<vmem>>, vector<16x128xf32>
    tpu.vector_store %arg10[%c0_6, %c0_7], %8 {strides = array<i32>} : memref<16x128xf32, #tpu.memory_space<vmem>>, vector<16x128xf32>,
    %c0_8 = arith.constant 0 : index
    %c0_9 = arith.constant 0 : index
    %10 = vector.load %arg4[%c0_8, %c0_9] : memref<128x256xf32, #tpu.memory_space<vmem>>, vector<128x256xf32>
    %c0_10 = arith.constant 0 : index
    %c0_11 = arith.constant 0 : index
    %11 = vector.load %arg5[%c0_10, %c0_11] : memref<1x256xf32, #tpu.memory_space<vmem>>, vector<1x256xf32>
    %cst_12 = arith.constant dense<0.000000e+00> : vector<16x256xf32>
    %12 = tpu.matmul %8, %10, %cst_12 {dimension_numbers = #tpu.dot_dimension_numbers<[1], [0], [0], [1], [0, 0, 1, 1], [], []>} : vector<16x128xf32>, vector<128x256xf32>, vector<16x256xf32> -> vector<16x256xf32>
    %13 = vector.broadcast %11 : vector<1x256xf32> to vector<16x256xf32>
    %14 = arith.addf %12, %13 : vector<16x256xf32>
    %cst_13 = arith.constant 0.000000e+00 : f32
    %15 = vector.broadcast %cst_13 : f32 to vector<16x256xf32>
    %16 = arith.maximumf %14, %15 : vector<16x256xf32>
    %c0_14 = arith.constant 0 : index
    %c0_15 = arith.constant 0 : index
    %17 = vector.load %arg6[%c0_14, %c0_15] : memref<256x256xf32, #tpu.memory_space<vmem>>, vector<256x256xf32>
    %c0_16 = arith.constant 0 : index
    %c0_17 = arith.constant 0 : index
    %18 = vector.load %arg7[%c0_16, %c0_17] : memref<1x256xf32, #tpu.memory_space<vmem>>, vector<1x256xf32>
    %cst_18 = arith.constant dense<0.000000e+00> : vector<16x256xf32>
    %19 = tpu.matmul %16, %17, %cst_18 {dimension_numbers = #tpu.dot_dimension_numbers<[1], [0], [0], [1], [0, 0, 1, 1], [], []>} : vector<16x256xf32>, vector<256x256xf32>, vector<16x256xf32> -> vector<16x256xf32>
    %20 = vector.broadcast %18 : vector<1x256xf32> to vector<16x256xf32>
    %21 = arith.addf %19, %20 : vector<16x256xf32>
    %cst_19 = arith.constant 0.000000e+00 : f32
    %22 = vector.broadcast %cst_19 : f32 to vector<16x256xf32>
    %23 = arith.maximumf %21, %22 : vector<16x256xf32>
    %c0_20 = arith.constant 0 : index
    %c0_21 = arith.constant 0 : index
    %24 = vector.load %arg8[%c0_20, %c0_21] : memref<8x16xf32, #tpu.memory_space<vmem>>, vector<8x16xf32>
    %25 = vector.extract_strided_slice %23 {offsets = [0, 0], sizes = [16, 128], strides = [1, 1]} : vector<16x256xf32> to vector<16x128xf32>
    %cst_22 = arith.constant dense<0.000000e+00> : vector<8x128xf32>
    %26 = tpu.matmul %24, %25, %cst_22 {dimension_numbers = #tpu.dot_dimension_numbers<[1], [0], [0], [1], [0, 0, 1, 1], [], []>} : vector<8x16xf32>, vector<16x128xf32>, vector<8x128xf32> -> vector<8x128xf32>
    %c0_23 = arith.constant 0 : index
    %c0_24 = arith.constant 0 : index
    %27 = vector.load %arg11[%c0_23, %c0_24] : memref<8x128xf32, #tpu.memory_space<vmem>>, vector<8x128xf32>
    tpu.vector_store %arg11[%c0_23, %c0_24], %26 {strides = array<i32>} : memref<8x128xf32, #tpu.memory_space<vmem>>, vector<8x128xf32>,
    %c0_25 = arith.constant 0 : index
    %c0_26 = arith.constant 0 : index
    %28 = vector.load %arg9[%c0_25, %c0_26] : memref<4x16xf32, #tpu.memory_space<vmem>>, vector<4x16xf32>
    %29 = vector.extract_strided_slice %23 {offsets = [0, 128], sizes = [16, 128], strides = [1, 1]} : vector<16x256xf32> to vector<16x128xf32>
    %cst_27 = arith.constant dense<0.000000e+00> : vector<4x128xf32>
    %30 = tpu.matmul %28, %29, %cst_27 {dimension_numbers = #tpu.dot_dimension_numbers<[1], [0], [0], [1], [0, 0, 1, 1], [], []>} : vector<4x16xf32>, vector<16x128xf32>, vector<4x128xf32> -> vector<4x128xf32>
    %c0_28 = arith.constant 0 : index
    %c0_29 = arith.constant 0 : index
    %31 = vector.load %arg12[%c0_28, %c0_29] : memref<4x128xf32, #tpu.memory_space<vmem>>, vector<4x128xf32>
    tpu.vector_store %arg12[%c0_28, %c0_29], %30 {strides = array<i32>} : memref<4x128xf32, #tpu.memory_space<vmem>>, vector<4x128xf32>,
    return
  }
  func.func @transform_0(%arg0: i32) -> (i32, i32) {
    %c0_i32 = arith.constant 0 : i32
    %c0_i32_0 = arith.constant 0 : i32
    %c0_i32_1 = arith.constant 0 : i32
    return %c0_i32, %c0_i32_0 : i32, i32
  }
  func.func @transform_1(%arg0: i32) -> (i32, i32) {
    %c0_i32 = arith.constant 0 : i32
    %c0_i32_0 = arith.constant 0 : i32
    %c0_i32_1 = arith.constant 0 : i32
    return %c0_i32, %c0_i32_0 : i32, i32
  }
  func.func @transform_2(%arg0: i32) -> (i32, i32) {
    %c0_i32 = arith.constant 0 : i32
    %c0_i32_0 = arith.constant 0 : i32
    %c0_i32_1 = arith.constant 0 : i32
    return %c0_i32, %c0_i32_0 : i32, i32
  }
  func.func @transform_3(%arg0: i32) -> (i32, i32) {
    %c0_i32 = arith.constant 0 : i32
    %c0_i32_0 = arith.constant 0 : i32
    %c0_i32_1 = arith.constant 0 : i32
    return %c0_i32, %c0_i32_0 : i32, i32
  }
  func.func @transform_4(%arg0: i32) -> (i32, i32) {
    %c0_i32 = arith.constant 0 : i32
    %c0_i32_0 = arith.constant 0 : i32
    %c0_i32_1 = arith.constant 0 : i32
    return %c0_i32, %c0_i32_0 : i32, i32
  }
  func.func @transform_5(%arg0: i32) -> (i32, i32) {
    %c0_i32 = arith.constant 0 : i32
    %c0_i32_0 = arith.constant 0 : i32
    %c0_i32_1 = arith.constant 0 : i32
    return %c0_i32, %c0_i32_0 : i32, i32
  }
  func.func @transform_6(%arg0: i32) -> (i32, i32) {
    %c0_i32 = arith.constant 0 : i32
    %c0_i32_0 = arith.constant 0 : i32
    %c0_i32_1 = arith.constant 0 : i32
    return %c0_i32, %c0_i32_0 : i32, i32
  }
  func.func @transform_7(%arg0: i32) -> (i32, i32) {
    %c0_i32 = arith.constant 0 : i32
    %c0_i32_0 = arith.constant 0 : i32
    %c0_i32_1 = arith.constant 0 : i32
    return %c0_i32, %c0_i32_0 : i32, i32
  }
  func.func @transform_8(%arg0: i32) -> (i32, i32) {
    %c0_i32 = arith.constant 0 : i32
    %c0_i32_0 = arith.constant 0 : i32
    %c0_i32_1 = arith.constant 0 : i32
    return %c0_i32, %c0_i32_0 : i32, i32
  }
  func.func @transform_9(%arg0: i32) -> (i32, i32) {
    %c0_i32 = arith.constant 0 : i32
    %c0_i32_0 = arith.constant 0 : i32
    %c0_i32_1 = arith.constant 0 : i32
    return %c0_i32, %c0_i32_0 : i32, i32
  }
  func.func @transform_10(%arg0: i32) -> (i32, i32) {
    %c0_i32 = arith.constant 0 : i32
    %c0_i32_0 = arith.constant 0 : i32
    %c0_i32_1 = arith.constant 0 : i32
    return %c0_i32, %c0_i32_0 : i32, i32
  }
  func.func @transform_11(%arg0: i32) -> (i32, i32) {
    %c0_i32 = arith.constant 0 : i32
    %c0_i32_0 = arith.constant 0 : i32
    %c0_i32_1 = arith.constant 0 : i32
    return %c0_i32, %c0_i32_0 : i32, i32
  }
}

</mosaic_0001>

<llo_original>
// kernel: encoder_forward.4
$region0: #{encoder_forward.4}
  #allocation0 [shape = 'u32[]', space=smem, size = 0x4, offset = 0x4, fixed_abs, tag = 'smem constant byte address 0x4 - core index']
  #allocation1 [shape = 'u32[144,128]{1,0:T(1,128)}', space=vmem, size = 0x12000, scoped, tag = 'internal scratch']
  %s0 = inlined_call_operand.vmem [shape: f32[2,48,7688], index: 0, kind: input, shape index: {}]
  %s1 = inlined_call_operand.vmem [shape: f32[4,48], index: 1, kind: input, shape index: {}]
  %s2 = inlined_call_operand.vmem [shape: f32[4,1], index: 2, kind: input, shape index: {}]
  %s3 = inlined_call_operand.vmem [shape: f32[2,4,7688], index: 3, kind: output, shape index: {}]
  %s4 = sld [smem:[#allocation0]]
  $region45: #{encoder_forward.4} parent=0
    _
  %s6 = ssub.s32 1, %s4
  %s7 = scalar_select 0, %s6, %s4
  loop: start=0, step=1, limit=4
  $region2: #{encoder_forward.4} parent=0 // loop_pre_header
    _
  $region3: #{encoder_forward.4} parent=0 // loop_header
    %s9 = sphi 0, %s13
    %p10 = scmp.ge.s32.totalorder %s9, 4
    %s19 = sphi 0, %s21
    %s22 = sphi 0, %s19
    %s23 = sphi 0, %s22
    %s39 = sphi 0, %s23
    %s43 = sphi 0, %s43
    %s45 = sphi 0, %s43
    %s46 = sphi 0, %s45
    %s60 = sphi 0, %s46
    %s64 = sphi 0, %s64
    %s66 = sphi 0, %s64
    %s67 = sphi 0, %s66
    %s81 = sphi 0, %s67
    %s87 = sphi 0, %s89
    %s90 = sphi 0, %s87
    %s91 = sphi 0, %s90
    %s107 = sphi 0, %s91
  $region4: #{encoder_forward.4} parent=0 // loop_header_branch
    %12 = sbr.rel (%p10) target = $region8
  $region5: #{encoder_forward.4} parent=0 // loop_body
    %s14 = ssub.s32 %s9, 1
    %s15 = ssub.s32 %s9, 2
    %s16 = sadd.s32 %s9, 1
    %s17 = ssub.s32 %s9, %s16
    %p18 = scmp.eq.s32.totalorder %s17, 0
    %s20 = sadd.s32 %s19, 1
    %s21 = scalar_select %p18, %s19, %s20
    %p24 = pneg %p18
    %p25 = scmp.eq.s32.totalorder %s9, 1
    %p26 = por %p24, %p25
    %p27 = scmp.ne.s32.totalorder %s19, %s22
    %p28 = scmp.eq.s32.totalorder %s9, 0
    %p29 = por %p27, %p28
    %p30 = scmp.ne.s32.totalorder %s19, %s22
    %p31 = scmp.eq.s32.totalorder %s14, 1
    %p32 = por %p30, %p31
    %p33 = scmp.ne.s32.totalorder %s22, %s23
    %p34 = scmp.eq.s32.totalorder %s14, 0
    %p35 = por %p33, %p34
    %p36 = scmp.ne.s32.totalorder %s22, %s23
    %p37 = scmp.eq.s32.totalorder %s15, 1
    %p38 = por %p36, %p37
    %p40 = scmp.ne.s32.totalorder %s23, %s39
    %p41 = scmp.eq.s32.totalorder %s15, 0
    %p42 = por %p40, %p41
    %s44 = sadd.s32 %s43, 1
    %p47 = scmp.eq.s32.totalorder %s9, 1
    %p48 = scmp.ne.s32.totalorder %s43, %s45
    %p49 = scmp.eq.s32.totalorder %s9, 0
    %p50 = por %p48, %p49
    %p51 = scmp.ne.s32.totalorder %s43, %s45
    %p52 = scmp.eq.s32.totalorder %s14, 1
    %p53 = por %p51, %p52
    %p54 = scmp.ne.s32.totalorder %s45, %s46
    %p55 = scmp.eq.s32.totalorder %s14, 0
    %p56 = por %p54, %p55
    %p57 = scmp.ne.s32.totalorder %s45, %s46
    %p58 = scmp.eq.s32.totalorder %s15, 1
    %p59 = por %p57, %p58
    %p61 = scmp.ne.s32.totalorder %s46, %s60
    %p62 = scmp.eq.s32.totalorder %s15, 0
    %p63 = por %p61, %p62
    %s65 = sadd.s32 %s64, 1
    %p68 = scmp.eq.s32.totalorder %s9, 1
    %p69 = scmp.ne.s32.totalorder %s64, %s66
    %p70 = scmp.eq.s32.totalorder %s9, 0
    %p71 = por %p69, %p70
    %p72 = scmp.ne.s32.totalorder %s64, %s66
    %p73 = scmp.eq.s32.totalorder %s14, 1
    %p74 = por %p72, %p73
    %p75 = scmp.ne.s32.totalorder %s66, %s67
    %p76 = scmp.eq.s32.totalorder %s14, 0
    %p77 = por %p75, %p76
    %p78 = scmp.ne.s32.totalorder %s66, %s67
    %p79 = scmp.eq.s32.totalorder %s15, 1
    %p80 = por %p78, %p79
    %p82 = scmp.ne.s32.totalorder %s67, %s81
    %p83 = scmp.eq.s32.totalorder %s15, 0
    %p84 = por %p82, %p83
    %s85 = ssub.s32 %s9, %s16
    %p86 = scmp.eq.s32.totalorder %s85, 0
    %s88 = sadd.s32 %s87, 1
    %s89 = scalar_select %p86, %s87, %s88
    %p92 = pneg %p86
    %p93 = scmp.eq.s32.totalorder %s9, 1
    %p94 = por %p92, %p93
    %p95 = scmp.ne.s32.totalorder %s87, %s90
    %p96 = scmp.eq.s32.totalorder %s9, 0
    %p97 = por %p95, %p96
    %p98 = scmp.ne.s32.totalorder %s87, %s90
    %p99 = scmp.eq.s32.totalorder %s14, 1
    %p100 = por %p98, %p99
    %p101 = scmp.ne.s32.totalorder %s90, %s91
    %p102 = scmp.eq.s32.totalorder %s14, 0
    %p103 = por %p101, %p102
    %p104 = scmp.ne.s32.totalorder %s90, %s91
    %p105 = scmp.eq.s32.totalorder %s15, 1
    %p106 = por %p104, %p105
    %p108 = scmp.ne.s32.totalorder %s91, %s107
    %p109 = scmp.eq.s32.totalorder %s15, 0
    %p110 = por %p108, %p109
    %p111 = scmp.le.s32.totalorder 1, %s9
    %p112 = scmp.lt.s32.totalorder %s9, 3
    %p113 = pnand %p111, %p112
    %p114 = pneg %p113
    // Predicated region
    $region9: #{encoder_forward.4} parent=5 // pred_check
      _
    $region10: #{encoder_forward.4} parent=5 // pred_check_branch
      %116 = sbr.rel (%p113) target = $region12
    $region11: #{encoder_forward.4} parent=5 // pred_region
      %s117 = ssub.s32 %s9, 1
      // Predicated region
      $region13: #{encoder_forward.4} parent=11 // pred_check
        %p118 = pneg %p56
      $region14: #{encoder_forward.4} parent=11 // pred_check_branch
        %120 = sbr.rel (%p118) target = $region16
      $region15: #{encoder_forward.4} parent=11 // pred_region
        _
      $region16: #{encoder_forward.4} parent=11 // pred_fallthru
        _
      // Predicated region
      $region17: #{encoder_forward.4} parent=11 // pred_check
        %p121 = pneg %p77
      $region18: #{encoder_forward.4} parent=11 // pred_check_branch
        %123 = sbr.rel (%p121) target = $region20
      $region19: #{encoder_forward.4} parent=11 // pred_region
        _
      $region20: #{encoder_forward.4} parent=11 // pred_fallthru
        _
    $region12: #{encoder_forward.4} parent=5 // pred_fallthru
      _
    %p124 = scmp.lt.s32.totalorder %s9, 2
    // Predicated region
    $region21: #{encoder_forward.4} parent=5 // pred_check
      %p125 = pneg %p124
    $region22: #{encoder_forward.4} parent=5 // pred_check_branch
      %127 = sbr.rel (%p125) target = $region24
    $region23: #{encoder_forward.4} parent=5 // pred_region
      // Predicated region
      $region25: #{encoder_forward.4} parent=23 // pred_check
        %p128 = pneg %p29
      $region26: #{encoder_forward.4} parent=23 // pred_check_branch
        %130 = sbr.rel (%p128) target = $region28
      $region27: #{encoder_forward.4} parent=23 // pred_region
        %p131 = scmp.lt.s32.totalorder %s9, 1
        %s132 = scalar_select %p131, %s9, 1
        %s133 = smul.addr %s132, 366
        %s134 = smul.addr %s133, 8
        %s135 = scalar_lea.vmem %s0, %s134
      $region28: #{encoder_forward.4} parent=23 // pred_fallthru
        _
    $region24: #{encoder_forward.4} parent=5 // pred_fallthru
      _
    %p136 = scmp.le.s32.totalorder 1, %s9
    %p137 = scmp.lt.s32.totalorder %s9, 3
    %p138 = pnand %p136, %p137
    %p139 = pneg %p138
    // Predicated region
    $region29: #{encoder_forward.4} parent=5 // pred_check
      _
    $region30: #{encoder_forward.4} parent=5 // pred_check_branch
      %141 = sbr.rel (%p138) target = $region32
    $region31: #{encoder_forward.4} parent=5 // pred_region
      %s142 = ssub.s32 %s9, 1
      %p143 = scmp.lt.s32.totalorder %s14, 1
      %s144 = scalar_select %p143, %s14, 1
      %s145 = smul.addr %s144, 366
      %s146 = smul.addr %s145, 8
      %s147 = scalar_lea.vmem %s0, %s146
      %p148 = pneg %p35
      %p149 = pneg %p32
      %p150 = pneg %p56
      %p151 = pneg %p53
      %p152 = pneg %p77
      %p153 = pneg %p74
      %p154 = pneg %p103
      %p155 = pneg %p100
      %p156 = scmp.lt.s32.totalorder %s14, 1
      %s157 = scalar_select %p156, %s14, 1
      %s158 = smul.addr %s157, 61
      %s159 = smul.addr %s158, 4
      %s160 = scalar_lea.vmem %s3, %s159
      %p161 = scmp.lt.s32.totalorder %s14, 1
      %s162 = scalar_select %p161, %s14, 1
      %s163 = smul.addr %s162, 366
      %s164 = smul.addr %s163, 8
      %s165 = scalar_lea.vmem %s0, %s164
      %p166 = scmp.lt.s32.totalorder %s14, 1
      %s167 = scalar_select %p166, %s14, 1
      %s168 = smul.addr %s167, 61
      %s169 = smul.addr %s168, 4
      %s170 = scalar_lea.vmem %s3, %s169
      %v171 = vld [vmem:[%s1] sm:$0xf]
      %v172 = vld [vmem:[%s165] sm:$0xff]
      %v173 = vld [vmem:[%s165 + $0x8] sm:$0xff]
      %v174 = vld [vmem:[%s165 + $0x10] sm:$0xff]
      %v175 = vld [vmem:[%s165 + $0x18] sm:$0xff]
      %v176 = vld [vmem:[%s165 + $0x20] sm:$0xff]
      %v177 = vld [vmem:[%s165 + $0x28] sm:$0xff]
      %v178 = vld [vmem:[%s165 + $0x30] sm:$0xff]
      %v179 = vld [vmem:[%s165 + $0x38] sm:$0xff]
      %v180 = vld [vmem:[%s165 + $0x40] sm:$0xff]
      %v181 = vld [vmem:[%s165 + $0x48] sm:$0xff]
      %v182 = vld [vmem:[%s165 + $0x50] sm:$0xff]
      %v183 = vld [vmem:[%s165 + $0x58] sm:$0xff]
      %v184 = vld [vmem:[%s165 + $0x60] sm:$0xff]
      %v185 = vld [vmem:[%s165 + $0x68] sm:$0xff]
      %v186 = vld [vmem:[%s165 + $0x70] sm:$0xff]
      %v187 = vld [vmem:[%s165 + $0x78] sm:$0xff]
      %v188 = vld [vmem:[%s165 + $0x80] sm:$0xff]
      %v189 = vld [vmem:[%s165 + $0x88] sm:$0xff]
      %v190 = vld [vmem:[%s165 + $0x90] sm:$0xff]
      %v191 = vld [vmem:[%s165 + $0x98] sm:$0xff]
      %v192 = vld [vmem:[%s165 + $0xa0] sm:$0xff]
      %v193 = vld [vmem:[%s165 + $0xa8] sm:$0xff]
      %v194 = vld [vmem:[%s165 + $0xb0] sm:$0xff]
      %v195 = vld [vmem:[%s165 + $0xb8] sm:$0xff]
      %v196 = vld [vmem:[%s165 + $0xc0] sm:$0xff]
      %v197 = vld [vmem:[%s165 + $0xc8] sm:$0xff]
      %v198 = vld [vmem:[%s165 + $0xd0] sm:$0xff]
      %v199 = vld [vmem:[%s165 + $0xd8] sm:$0xff]
      %v200 = vld [vmem:[%s165 + $0xe0] sm:$0xff]
      %v201 = vld [vmem:[%s165 + $0xe8] sm:$0xff]
      %v202 = vld [vmem:[%s165 + $0xf0] sm:$0xff]
      %v203 = vld [vmem:[%s165 + $0xf8] sm:$0xff]
      %v204 = vld [vmem:[%s165 + $0x100] sm:$0xff]
      %v205 = vld [vmem:[%s165 + $0x108] sm:$0xff]
      %v206 = vld [vmem:[%s165 + $0x110] sm:$0xff]
      %v207 = vld [vmem:[%s165 + $0x118] sm:$0xff]
      %v208 = vld [vmem:[%s165 + $0x120] sm:$0xff]
      %v209 = vld [vmem:[%s165 + $0x128] sm:$0xff]
      %v210 = vld [vmem:[%s165 + $0x130] sm:$0xff]
      %v211 = vld [vmem:[%s165 + $0x138] sm:$0xff]
      %v212 = vld [vmem:[%s165 + $0x140] sm:$0xff]
      %v213 = vld [vmem:[%s165 + $0x148] sm:$0xff]
      %v214 = vld [vmem:[%s165 + $0x150] sm:$0xff]
      %v215 = vld [vmem:[%s165 + $0x158] sm:$0xff]
      %v216 = vld [vmem:[%s165 + $0x160] sm:$0xff]
      %v217 = vld [vmem:[%s165 + $0x168] sm:$0xff]
      %v218 = vld [vmem:[%s165 + $0x170] sm:$0xff]
      %v219 = vld [vmem:[%s165 + $0x178] sm:$0xff]
      %v220 = vld [vmem:[%s165 + $0x180] sm:$0xff]
      %v221 = vld [vmem:[%s165 + $0x188] sm:$0xff]
      %v222 = vld [vmem:[%s165 + $0x190] sm:$0xff]
      %v223 = vld [vmem:[%s165 + $0x198] sm:$0xff]
      %v224 = vld [vmem:[%s165 + $0x1a0] sm:$0xff]
      %v225 = vld [vmem:[%s165 + $0x1a8] sm:$0xff]
      %v226 = vld [vmem:[%s165 + $0x1b0] sm:$0xff]
      %v227 = vld [vmem:[%s165 + $0x1b8] sm:$0xff]
      %v228 = vld [vmem:[%s165 + $0x1c0] sm:$0xff]
      %v229 = vld [vmem:[%s165 + $0x1c8] sm:$0xff]
      %v230 = vld [vmem:[%s165 + $0x1d0] sm:$0xff]
      %v231 = vld [vmem:[%s165 + $0x1d8] sm:$0xff]
      %v232 = vld [vmem:[%s165 + $0x1e0] sm:$0xff]
      %v233 = vld [vmem:[%s165 + $0x1e8] sm:$0xff]
      %v234 = vld [vmem:[%s165 + $0x1f0] sm:$0xff]
      %v235 = vld [vmem:[%s165 + $0x1f8] sm:$0xff]
      %v236 = vld [vmem:[%s165 + $0x200] sm:$0xff]
      %v237 = vld [vmem:[%s165 + $0x208] sm:$0xff]
      %v238 = vld [vmem:[%s165 + $0x210] sm:$0xff]
      %v239 = vld [vmem:[%s165 + $0x218] sm:$0xff]
      %v240 = vld [vmem:[%s165 + $0x220] sm:$0xff]
      %v241 = vld [vmem:[%s165 + $0x228] sm:$0xff]
      %v242 = vld [vmem:[%s165 + $0x230] sm:$0xff]
      %v243 = vld [vmem:[%s165 + $0x238] sm:$0xff]
      %v244 = vld [vmem:[%s165 + $0x240] sm:$0xff]
      %v245 = vld [vmem:[%s165 + $0x248] sm:$0xff]
      %v246 = vld [vmem:[%s165 + $0x250] sm:$0xff]
      %v247 = vld [vmem:[%s165 + $0x258] sm:$0xff]
      %v248 = vld [vmem:[%s165 + $0x260] sm:$0xff]
      %v249 = vld [vmem:[%s165 + $0x268] sm:$0xff]
      %v250 = vld [vmem:[%s165 + $0x270] sm:$0xff]
      %v251 = vld [vmem:[%s165 + $0x278] sm:$0xff]
      %v252 = vld [vmem:[%s165 + $0x280] sm:$0xff]
      %v253 = vld [vmem:[%s165 + $0x288] sm:$0xff]
      %v254 = vld [vmem:[%s165 + $0x290] sm:$0xff]
      %v255 = vld [vmem:[%s165 + $0x298] sm:$0xff]
      %v256 = vld [vmem:[%s165 + $0x2a0] sm:$0xff]
      %v257 = vld [vmem:[%s165 + $0x2a8] sm:$0xff]
      %v258 = vld [vmem:[%s165 + $0x2b0] sm:$0xff]
      %v259 = vld [vmem:[%s165 + $0x2b8] sm:$0xff]
      %v260 = vld [vmem:[%s165 + $0x2c0] sm:$0xff]
      %v261 = vld [vmem:[%s165 + $0x2c8] sm:$0xff]
      %v262 = vld [vmem:[%s165 + $0x2d0] sm:$0xff]
      %v263 = vld [vmem:[%s165 + $0x2d8] sm:$0xff]
      %v264 = vld [vmem:[%s165 + $0x2e0] sm:$0xff]
      %v265 = vld [vmem:[%s165 + $0x2e8] sm:$0xff]
      %v266 = vld [vmem:[%s165 + $0x2f0] sm:$0xff]
      %v267 = vld [vmem:[%s165 + $0x2f8] sm:$0xff]
      %v268 = vld [vmem:[%s165 + $0x300] sm:$0xff]
      %v269 = vld [vmem:[%s165 + $0x308] sm:$0xff]
      %v270 = vld [vmem:[%s165 + $0x310] sm:$0xff]
      %v271 = vld [vmem:[%s165 + $0x318] sm:$0xff]
      %v272 = vld [vmem:[%s165 + $0x320] sm:$0xff]
      %v273 = vld [vmem:[%s165 + $0x328] sm:$0xff]
      %v274 = vld [vmem:[%s165 + $0x330] sm:$0xff]
      %v275 = vld [vmem:[%s165 + $0x338] sm:$0xff]
      %v276 = vld [vmem:[%s165 + $0x340] sm:$0xff]
      %v277 = vld [vmem:[%s165 + $0x348] sm:$0xff]
      %v278 = vld [vmem:[%s165 + $0x350] sm:$0xff]
      %v279 = vld [vmem:[%s165 + $0x358] sm:$0xff]
      %v280 = vld [vmem:[%s165 + $0x360] sm:$0xff]
      %v281 = vld [vmem:[%s165 + $0x368] sm:$0xff]
      %v282 = vld [vmem:[%s165 + $0x370] sm:$0xff]
      %v283 = vld [vmem:[%s165 + $0x378] sm:$0xff]
      %v284 = vld [vmem:[%s165 + $0x380] sm:$0xff]
      %v285 = vld [vmem:[%s165 + $0x388] sm:$0xff]
      %v286 = vld [vmem:[%s165 + $0x390] sm:$0xff]
      %v287 = vld [vmem:[%s165 + $0x398] sm:$0xff]
      %v288 = vld [vmem:[%s165 + $0x3a0] sm:$0xff]
      %v289 = vld [vmem:[%s165 + $0x3a8] sm:$0xff]
      %v290 = vld [vmem:[%s165 + $0x3b0] sm:$0xff]
      %v291 = vld [vmem:[%s165 + $0x3b8] sm:$0xff]
      %v292 = vld [vmem:[%s165 + $0x3c0] sm:$0xff]
      %v293 = vld [vmem:[%s165 + $0x3c8] sm:$0xff]
      %v294 = vld [vmem:[%s165 + $0x3d0] sm:$0xff]
      %v295 = vld [vmem:[%s165 + $0x3d8] sm:$0xff]
      %v296 = vld [vmem:[%s165 + $0x3e0] sm:$0xff]
      %v297 = vld [vmem:[%s165 + $0x3e8] sm:$0xff]
      %v298 = vld [vmem:[%s165 + $0x3f0] sm:$0xff]
      %v299 = vld [vmem:[%s165 + $0x3f8] sm:$0xff]
      %v300 = vld [vmem:[%s165 + $0x400] sm:$0xff]
      %v301 = vld [vmem:[%s165 + $0x408] sm:$0xff]
      %v302 = vld [vmem:[%s165 + $0x410] sm:$0xff]
      %v303 = vld [vmem:[%s165 + $0x418] sm:$0xff]
      %v304 = vld [vmem:[%s165 + $0x420] sm:$0xff]
      %v305 = vld [vmem:[%s165 + $0x428] sm:$0xff]
      %v306 = vld [vmem:[%s165 + $0x430] sm:$0xff]
      %v307 = vld [vmem:[%s165 + $0x438] sm:$0xff]
      %v308 = vld [vmem:[%s165 + $0x440] sm:$0xff]
      %v309 = vld [vmem:[%s165 + $0x448] sm:$0xff]
      %v310 = vld [vmem:[%s165 + $0x450] sm:$0xff]
      %v311 = vld [vmem:[%s165 + $0x458] sm:$0xff]
      %v312 = vld [vmem:[%s165 + $0x460] sm:$0xff]
      %v313 = vld [vmem:[%s165 + $0x468] sm:$0xff]
      %v314 = vld [vmem:[%s165 + $0x470] sm:$0xff]
      %v315 = vld [vmem:[%s165 + $0x478] sm:$0xff]
      %v316 = vld [vmem:[%s165 + $0x480] sm:$0xff]
      %v317 = vld [vmem:[%s165 + $0x488] sm:$0xff]
      %v318 = vld [vmem:[%s165 + $0x490] sm:$0xff]
      %v319 = vld [vmem:[%s165 + $0x498] sm:$0xff]
      %v320 = vld [vmem:[%s165 + $0x4a0] sm:$0xff]
      %v321 = vld [vmem:[%s165 + $0x4a8] sm:$0xff]
      %v322 = vld [vmem:[%s165 + $0x4b0] sm:$0xff]
      %v323 = vld [vmem:[%s165 + $0x4b8] sm:$0xff]
      %v324 = vld [vmem:[%s165 + $0x4c0] sm:$0xff]
      %v325 = vld [vmem:[%s165 + $0x4c8] sm:$0xff]
      %v326 = vld [vmem:[%s165 + $0x4d0] sm:$0xff]
      %v327 = vld [vmem:[%s165 + $0x4d8] sm:$0xff]
      %v328 = vld [vmem:[%s165 + $0x4e0] sm:$0xff]
      %v329 = vld [vmem:[%s165 + $0x4e8] sm:$0xff]
      %v330 = vld [vmem:[%s165 + $0x4f0] sm:$0xff]
      %v331 = vld [vmem:[%s165 + $0x4f8] sm:$0xff]
      %v332 = vld [vmem:[%s165 + $0x500] sm:$0xff]
      %v333 = vld [vmem:[%s165 + $0x508] sm:$0xff]
      %v334 = vld [vmem:[%s165 + $0x510] sm:$0xff]
      %v335 = vld [vmem:[%s165 + $0x518] sm:$0xff]
      %v336 = vld [vmem:[%s165 + $0x520] sm:$0xff]
      %v337 = vld [vmem:[%s165 + $0x528] sm:$0xff]
      %v338 = vld [vmem:[%s165 + $0x530] sm:$0xff]
      %v339 = vld [vmem:[%s165 + $0x538] sm:$0xff]
      %v340 = vld [vmem:[%s165 + $0x540] sm:$0xff]
      %v341 = vld [vmem:[%s165 + $0x548] sm:$0xff]
      %v342 = vld [vmem:[%s165 + $0x550] sm:$0xff]
      %v343 = vld [vmem:[%s165 + $0x558] sm:$0xff]
      %v344 = vld [vmem:[%s165 + $0x560] sm:$0xff]
      %v345 = vld [vmem:[%s165 + $0x568] sm:$0xff]
      %v346 = vld [vmem:[%s165 + $0x570] sm:$0xff]
      %v347 = vld [vmem:[%s165 + $0x578] sm:$0xff]
      %v348 = vld [vmem:[%s165 + $0x580] sm:$0xff]
      %v349 = vld [vmem:[%s165 + $0x588] sm:$0xff]
      %v350 = vld [vmem:[%s165 + $0x590] sm:$0xff]
      %v351 = vld [vmem:[%s165 + $0x598] sm:$0xff]
      %v352 = vld [vmem:[%s165 + $0x5a0] sm:$0xff]
      %v353 = vld [vmem:[%s165 + $0x5a8] sm:$0xff]
      %v354 = vld [vmem:[%s165 + $0x5b0] sm:$0xff]
      %v355 = vld [vmem:[%s165 + $0x5b8] sm:$0xff]
      %v356 = vld [vmem:[%s165 + $0x5c0] sm:$0xff]
      %v357 = vld [vmem:[%s165 + $0x5c8] sm:$0xff]
      %v358 = vld [vmem:[%s165 + $0x5d0] sm:$0xff]
      %v359 = vld [vmem:[%s165 + $0x5d8] sm:$0xff]
      %v360 = vld [vmem:[%s165 + $0x5e0] sm:$0xff]
      %v361 = vld [vmem:[%s165 + $0x5e8] sm:$0xff]
      %v362 = vld [vmem:[%s165 + $0x5f0] sm:$0xff]
      %v363 = vld [vmem:[%s165 + $0x5f8] sm:$0xff]
      %v364 = vld [vmem:[%s165 + $0x600] sm:$0xff]
      %v365 = vld [vmem:[%s165 + $0x608] sm:$0xff]
      %v366 = vld [vmem:[%s165 + $0x610] sm:$0xff]
      %v367 = vld [vmem:[%s165 + $0x618] sm:$0xff]
      %v368 = vld [vmem:[%s165 + $0x620] sm:$0xff]
      %v369 = vld [vmem:[%s165 + $0x628] sm:$0xff]
      %v370 = vld [vmem:[%s165 + $0x630] sm:$0xff]
      %v371 = vld [vmem:[%s165 + $0x638] sm:$0xff]
      %v372 = vld [vmem:[%s165 + $0x640] sm:$0xff]
      %v373 = vld [vmem:[%s165 + $0x648] sm:$0xff]
      %v374 = vld [vmem:[%s165 + $0x650] sm:$0xff]
      %v375 = vld [vmem:[%s165 + $0x658] sm:$0xff]
      %v376 = vld [vmem:[%s165 + $0x660] sm:$0xff]
      %v377 = vld [vmem:[%s165 + $0x668] sm:$0xff]
      %v378 = vld [vmem:[%s165 + $0x670] sm:$0xff]
      %v379 = vld [vmem:[%s165 + $0x678] sm:$0xff]
      %v380 = vld [vmem:[%s165 + $0x680] sm:$0xff]
      %v381 = vld [vmem:[%s165 + $0x688] sm:$0xff]
      %v382 = vld [vmem:[%s165 + $0x690] sm:$0xff]
      %v383 = vld [vmem:[%s165 + $0x698] sm:$0xff]
      %v384 = vld [vmem:[%s165 + $0x6a0] sm:$0xff]
      %v385 = vld [vmem:[%s165 + $0x6a8] sm:$0xff]
      %v386 = vld [vmem:[%s165 + $0x6b0] sm:$0xff]
      %v387 = vld [vmem:[%s165 + $0x6b8] sm:$0xff]
      %v388 = vld [vmem:[%s165 + $0x6c0] sm:$0xff]
      %v389 = vld [vmem:[%s165 + $0x6c8] sm:$0xff]
      %v390 = vld [vmem:[%s165 + $0x6d0] sm:$0xff]
      %v391 = vld [vmem:[%s165 + $0x6d8] sm:$0xff]
      %v392 = vld [vmem:[%s165 + $0x6e0] sm:$0xff]
      %v393 = vld [vmem:[%s165 + $0x6e8] sm:$0xff]
      %v394 = vld [vmem:[%s165 + $0x6f0] sm:$0xff]
      %v395 = vld [vmem:[%s165 + $0x6f8] sm:$0xff]
      %v396 = vld [vmem:[%s165 + $0x700] sm:$0xff]
      %v397 = vld [vmem:[%s165 + $0x708] sm:$0xff]
      %v398 = vld [vmem:[%s165 + $0x710] sm:$0xff]
      %v399 = vld [vmem:[%s165 + $0x718] sm:$0xff]
      %v400 = vld [vmem:[%s165 + $0x720] sm:$0xff]
      %v401 = vld [vmem:[%s165 + $0x728] sm:$0xff]
      %v402 = vld [vmem:[%s165 + $0x730] sm:$0xff]
      %v403 = vld [vmem:[%s165 + $0x738] sm:$0xff]
      %v404 = vld [vmem:[%s165 + $0x740] sm:$0xff]
      %v405 = vld [vmem:[%s165 + $0x748] sm:$0xff]
      %v406 = vld [vmem:[%s165 + $0x750] sm:$0xff]
      %v407 = vld [vmem:[%s165 + $0x758] sm:$0xff]
      %v408 = vld [vmem:[%s165 + $0x760] sm:$0xff]
      %v409 = vld [vmem:[%s165 + $0x768] sm:$0xff]
      %v410 = vld [vmem:[%s165 + $0x770] sm:$0xff]
      %v411 = vld [vmem:[%s165 + $0x778] sm:$0xff]
      %v412 = vld [vmem:[%s165 + $0x780] sm:$0xff]
      %v413 = vld [vmem:[%s165 + $0x788] sm:$0xff]
      %v414 = vld [vmem:[%s165 + $0x790] sm:$0xff]
      %v415 = vld [vmem:[%s165 + $0x798] sm:$0xff]
      %v416 = vld [vmem:[%s165 + $0x7a0] sm:$0xff]
      %v417 = vld [vmem:[%s165 + $0x7a8] sm:$0xff]
      %v418 = vld [vmem:[%s165 + $0x7b0] sm:$0xff]
      %v419 = vld [vmem:[%s165 + $0x7b8] sm:$0xff]
      %v420 = vld [vmem:[%s165 + $0x7c0] sm:$0xff]
      %v421 = vld [vmem:[%s165 + $0x7c8] sm:$0xff]
      %v422 = vld [vmem:[%s165 + $0x7d0] sm:$0xff]
      %v423 = vld [vmem:[%s165 + $0x7d8] sm:$0xff]
      %v424 = vld [vmem:[%s165 + $0x7e0] sm:$0xff]
      %v425 = vld [vmem:[%s165 + $0x7e8] sm:$0xff]
      %v426 = vld [vmem:[%s165 + $0x7f0] sm:$0xff]
      %v427 = vld [vmem:[%s165 + $0x7f8] sm:$0xff]
      %v428 = vld [vmem:[%s165 + $0x800] sm:$0xff]
      %v429 = vld [vmem:[%s165 + $0x808] sm:$0xff]
      %v430 = vld [vmem:[%s165 + $0x810] sm:$0xff]
      %v431 = vld [vmem:[%s165 + $0x818] sm:$0xff]
      %v432 = vld [vmem:[%s165 + $0x820] sm:$0xff]
      %v433 = vld [vmem:[%s165 + $0x828] sm:$0xff]
      %v434 = vld [vmem:[%s165 + $0x830] sm:$0xff]
      %v435 = vld [vmem:[%s165 + $0x838] sm:$0xff]
      %v436 = vld [vmem:[%s165 + $0x840] sm:$0xff]
      %v437 = vld [vmem:[%s165 + $0x848] sm:$0xff]
      %v438 = vld [vmem:[%s165 + $0x850] sm:$0xff]
      %v439 = vld [vmem:[%s165 + $0x858] sm:$0xff]
      %v440 = vld [vmem:[%s165 + $0x860] sm:$0xff]
      %v441 = vld [vmem:[%s165 + $0x868] sm:$0xff]
      %v442 = vld [vmem:[%s165 + $0x870] sm:$0xff]
      %v443 = vld [vmem:[%s165 + $0x878] sm:$0xff]
      %v444 = vld [vmem:[%s165 + $0x880] sm:$0xff]
      %v445 = vld [vmem:[%s165 + $0x888] sm:$0xff]
      %v446 = vld [vmem:[%s165 + $0x890] sm:$0xff]
      %v447 = vld [vmem:[%s165 + $0x898] sm:$0xff]
      %v448 = vld [vmem:[%s165 + $0x8a0] sm:$0xff]
      %v449 = vld [vmem:[%s165 + $0x8a8] sm:$0xff]
      %v450 = vld [vmem:[%s165 + $0x8b0] sm:$0xff]
      %v451 = vld [vmem:[%s165 + $0x8b8] sm:$0xff]
      %v452 = vld [vmem:[%s165 + $0x8c0] sm:$0xff]
      %v453 = vld [vmem:[%s165 + $0x8c8] sm:$0xff]
      %v454 = vld [vmem:[%s165 + $0x8d0] sm:$0xff]
      %v455 = vld [vmem:[%s165 + $0x8d8] sm:$0xff]
      %v456 = vld [vmem:[%s165 + $0x8e0] sm:$0xff]
      %v457 = vld [vmem:[%s165 + $0x8e8] sm:$0xff]
      %v458 = vld [vmem:[%s165 + $0x8f0] sm:$0xff]
      %v459 = vld [vmem:[%s165 + $0x8f8] sm:$0xff]
      %v460 = vld [vmem:[%s165 + $0x900] sm:$0xff]
      %v461 = vld [vmem:[%s165 + $0x908] sm:$0xff]
      %v462 = vld [vmem:[%s165 + $0x910] sm:$0xff]
      %v463 = vld [vmem:[%s165 + $0x918] sm:$0xff]
      %v464 = vld [vmem:[%s165 + $0x920] sm:$0xff]
      %v465 = vld [vmem:[%s165 + $0x928] sm:$0xff]
      %v466 = vld [vmem:[%s165 + $0x930] sm:$0xff]
      %v467 = vld [vmem:[%s165 + $0x938] sm:$0xff]
      %v468 = vld [vmem:[%s165 + $0x940] sm:$0xff]
      %v469 = vld [vmem:[%s165 + $0x948] sm:$0xff]
      %v470 = vld [vmem:[%s165 + $0x950] sm:$0xff]
      %v471 = vld [vmem:[%s165 + $0x958] sm:$0xff]
      %v472 = vld [vmem:[%s165 + $0x960] sm:$0xff]
      %v473 = vld [vmem:[%s165 + $0x968] sm:$0xff]
      %v474 = vld [vmem:[%s165 + $0x970] sm:$0xff]
      %v475 = vld [vmem:[%s165 + $0x978] sm:$0xff]
      %v476 = vld [vmem:[%s165 + $0x980] sm:$0xff]
      %v477 = vld [vmem:[%s165 + $0x988] sm:$0xff]
      %v478 = vld [vmem:[%s165 + $0x990] sm:$0xff]
      %v479 = vld [vmem:[%s165 + $0x998] sm:$0xff]
      %v480 = vld [vmem:[%s165 + $0x9a0] sm:$0xff]
      %v481 = vld [vmem:[%s165 + $0x9a8] sm:$0xff]
      %v482 = vld [vmem:[%s165 + $0x9b0] sm:$0xff]
      %v483 = vld [vmem:[%s165 + $0x9b8] sm:$0xff]
      %v484 = vld [vmem:[%s165 + $0x9c0] sm:$0xff]
      %v485 = vld [vmem:[%s165 + $0x9c8] sm:$0xff]
      %v486 = vld [vmem:[%s165 + $0x9d0] sm:$0xff]
      %v487 = vld [vmem:[%s165 + $0x9d8] sm:$0xff]
      %v488 = vld [vmem:[%s165 + $0x9e0] sm:$0xff]
      %v489 = vld [vmem:[%s165 + $0x9e8] sm:$0xff]
      %v490 = vld [vmem:[%s165 + $0x9f0] sm:$0xff]
      %v491 = vld [vmem:[%s165 + $0x9f8] sm:$0xff]
      %v492 = vld [vmem:[%s165 + $0xa00] sm:$0xff]
      %v493 = vld [vmem:[%s165 + $0xa08] sm:$0xff]
      %v494 = vld [vmem:[%s165 + $0xa10] sm:$0xff]
      %v495 = vld [vmem:[%s165 + $0xa18] sm:$0xff]
      %v496 = vld [vmem:[%s165 + $0xa20] sm:$0xff]
      %v497 = vld [vmem:[%s165 + $0xa28] sm:$0xff]
      %v498 = vld [vmem:[%s165 + $0xa30] sm:$0xff]
      %v499 = vld [vmem:[%s165 + $0xa38] sm:$0xff]
      %v500 = vld [vmem:[%s165 + $0xa40] sm:$0xff]
      %v501 = vld [vmem:[%s165 + $0xa48] sm:$0xff]
      %v502 = vld [vmem:[%s165 + $0xa50] sm:$0xff]
      %v503 = vld [vmem:[%s165 + $0xa58] sm:$0xff]
      %v504 = vld [vmem:[%s165 + $0xa60] sm:$0xff]
      %v505 = vld [vmem:[%s165 + $0xa68] sm:$0xff]
      %v506 = vld [vmem:[%s165 + $0xa70] sm:$0xff]
      %v507 = vld [vmem:[%s165 + $0xa78] sm:$0xff]
      %v508 = vld [vmem:[%s165 + $0xa80] sm:$0xff]
      %v509 = vld [vmem:[%s165 + $0xa88] sm:$0xff]
      %v510 = vld [vmem:[%s165 + $0xa90] sm:$0xff]
      %v511 = vld [vmem:[%s165 + $0xa98] sm:$0xff]
      %v512 = vld [vmem:[%s165 + $0xaa0] sm:$0xff]
      %v513 = vld [vmem:[%s165 + $0xaa8] sm:$0xff]
      %v514 = vld [vmem:[%s165 + $0xab0] sm:$0xff]
      %v515 = vld [vmem:[%s165 + $0xab8] sm:$0xff]
      %v516 = vld [vmem:[%s165 + $0xac0] sm:$0xff]
      %v517 = vld [vmem:[%s165 + $0xac8] sm:$0xff]
      %v518 = vld [vmem:[%s165 + $0xad0] sm:$0xff]
      %v519 = vld [vmem:[%s165 + $0xad8] sm:$0xff]
      %v520 = vld [vmem:[%s165 + $0xae0] sm:$0xff]
      %v521 = vld [vmem:[%s165 + $0xae8] sm:$0xff]
      %v522 = vld [vmem:[%s165 + $0xaf0] sm:$0xff]
      %v523 = vld [vmem:[%s165 + $0xaf8] sm:$0xff]
      %v524 = vld [vmem:[%s165 + $0xb00] sm:$0xff]
      %v525 = vld [vmem:[%s165 + $0xb08] sm:$0xff]
      %v526 = vld [vmem:[%s165 + $0xb10] sm:$0xff]
      %v527 = vld [vmem:[%s165 + $0xb18] sm:$0xff]
      %v528 = vld [vmem:[%s165 + $0xb20] sm:$0xff]
      %v529 = vld [vmem:[%s165 + $0xb28] sm:$0xff]
      %v530 = vld [vmem:[%s165 + $0xb30] sm:$0xff]
      %v531 = vld [vmem:[%s165 + $0xb38] sm:$0xff]
      %v532 = vld [vmem:[%s165 + $0xb40] sm:$0xff]
      %v533 = vld [vmem:[%s165 + $0xb48] sm:$0xff]
      %v534 = vld [vmem:[%s165 + $0xb50] sm:$0xff]
      %v535 = vld [vmem:[%s165 + $0xb58] sm:$0xff]
      %v536 = vld [vmem:[%s165 + $0xb60] sm:$0xff]
      %v537 = vld [vmem:[%s165 + $0xb68] sm:$0xff]
      %v538 = vld [vmem:[%s2] sm:$0xf]
      %540 = vset.pattern.permute.xlu0 0
      %541 = vperm.xlu0 %540, %v538
      %v542 = vpop.permute.xlu0 %541
      %vm544 = vcmask 392192
      %v546 = vsel %vm544, %v171, 0
      %548 = vmatprep.subr.mxu0 %v173
      %549 = vmatpush1.msra.mxu0 %v172
      %550 = vmatprep.subr.mxu0 %v234
      %551 = vmatpush1.msra.mxu0 %v233
      %552 = vmatprep.subr.mxu0 %v295
      %553 = vmatpush1.msra.mxu0 %v294
      %554 = vmatprep.subr.mxu0 %v356
      %555 = vmatpush1.msra.mxu0 %v355
      %556 = vmatprep.subr.mxu0 %v417
      %557 = vmatpush1.msra.mxu0 %v416
      %558 = vmatprep.subr.mxu0 %v478
      %559 = vmatpush1.msra.mxu0 %v477
      %560 = vmatprep.subr.mxu0 0.0
      %561 = vmatpush1.msra.mxu0 0.0
      %562 = vmatprep.subr.mxu0 0.0
      %563 = vmatpush1.msra.mxu0 0.0
      %564 = vmatprep.subr.mxu0 0.0
      %565 = vmatpush1.msra.mxu0 0.0
      %566 = vmatprep.subr.mxu0 0.0
      %567 = vmatpush1.msra.mxu0 0.0
      %568 = vmatprep.subr.mxu0 0.0
      %569 = vmatpush1.msra.mxu0 0.0
      %570 = vmatprep.subr.mxu0 0.0
      %571 = vmatpush1.msra.mxu0 0.0
      %572 = vmatprep.subr.mxu0 0.0
      %573 = vmatpush1.msra.mxu0 0.0
      %574 = vmatprep.subr.mxu0 0.0
      %575 = vmatpush1.msra.mxu0 0.0
      %576 = vmatprep.subr.mxu0 0.0
      %577 = vmatpush1.msra.mxu0 0.0
      %578 = vmatprep.subr.mxu0 0.0
      %579 = vmatpush1.msra.mxu0 0.0
      %580 = vmatprep.subr.mxu0 0.0
      %581 = vmatpush1.msra.mxu0 0.0
      %582 = vmatprep.subr.mxu0 0.0
      %583 = vmatpush1.msra.mxu0 0.0
      %584 = vmatprep.subr.mxu0 0.0
      %585 = vmatpush1.msra.mxu0 0.0
      %586 = vmatprep.subr.mxu0 0.0
      %587 = vmatpush1.msra.mxu0 0.0
      %588 = vmatprep.subr.mxu0 0.0
      %589 = vmatpush1.msra.mxu0 0.0
      %590 = vmatprep.subr.mxu0 0.0
      %591 = vmatpush1.msra.mxu0 0.0
      %592 = vmatprep.subr.mxu0 0.0
      %593 = vmatpush1.msra.mxu0 0.0
      %594 = vmatprep.subr.mxu0 0.0
      %595 = vmatpush1.msra.mxu0 0.0
      %596 = vmatprep.subr.mxu0 0.0
      %597 = vmatpush1.msra.mxu0 0.0
      %598 = vmatprep.subr.mxu0 0.0
      %599 = vmatpush1.msra.mxu0 0.0
      %600 = vmatprep.subr.mxu0 0.0
      %601 = vmatpush1.msra.mxu0 0.0
      %602 = vmatprep.subr.mxu0 0.0
      %603 = vmatpush1.msra.mxu0 0.0
      %604 = vmatprep.subr.mxu0 0.0
      %605 = vmatpush1.msra.mxu0 0.0
      %606 = vmatprep.subr.mxu0 0.0
      %607 = vmatpush1.msra.mxu0 0.0
      %608 = vmatprep.subr.mxu0 0.0
      %609 = vmatpush1.msra.mxu0 0.0
      %610 = vmatprep.subr.mxu0 0.0
      %611 = vmatpush1.msra.mxu0 0.0
      %612 = vmatprep.mubr.f32.mxu0 0.0
      %613 = vmatmul.mubr.f32.gmra.mrb[0].mxu0 %v546
      %v614 = vpop.f32.mrb[0].mxu0
      %v615 = vadd.f32 %v542, %v614
      %v616 = vpop.f32.mrb[0].mxu0
      %v617 = vadd.f32 %v542, %v616
      %618 = vdwg.mxu0
      %619 = vmatprep.subr.mxu0 %v175
      %620 = vmatpush1.msra.mxu0 %v174
      %621 = vmatprep.subr.mxu0 %v236
      %622 = vmatpush1.msra.mxu0 %v235
      %623 = vmatprep.subr.mxu0 %v297
      %624 = vmatpush1.msra.mxu0 %v296
      %625 = vmatprep.subr.mxu0 %v358
      %626 = vmatpush1.msra.mxu0 %v357
      %627 = vmatprep.subr.mxu0 %v419
      %628 = vmatpush1.msra.mxu0 %v418
      %629 = vmatprep.subr.mxu0 %v480
      %630 = vmatpush1.msra.mxu0 %v479
      %631 = vmatprep.subr.mxu0 0.0
      %632 = vmatpush1.msra.mxu0 0.0
      %633 = vmatprep.subr.mxu0 0.0
      %634 = vmatpush1.msra.mxu0 0.0
      %635 = vmatprep.subr.mxu0 0.0
      %636 = vmatpush1.msra.mxu0 0.0
      %637 = vmatprep.subr.mxu0 0.0
      %638 = vmatpush1.msra.mxu0 0.0
      %639 = vmatprep.subr.mxu0 0.0
      %640 = vmatpush1.msra.mxu0 0.0
      %641 = vmatprep.subr.mxu0 0.0
      %642 = vmatpush1.msra.mxu0 0.0
      %643 = vmatprep.subr.mxu0 0.0
      %644 = vmatpush1.msra.mxu0 0.0
      %645 = vmatprep.subr.mxu0 0.0
      %646 = vmatpush1.msra.mxu0 0.0
      %647 = vmatprep.subr.mxu0 0.0
      %648 = vmatpush1.msra.mxu0 0.0
      %649 = vmatprep.subr.mxu0 0.0
      %650 = vmatpush1.msra.mxu0 0.0
      %651 = vmatprep.subr.mxu0 0.0
      %652 = vmatpush1.msra.mxu0 0.0
      %653 = vmatprep.subr.mxu0 0.0
      %654 = vmatpush1.msra.mxu0 0.0
      %655 = vmatprep.subr.mxu0 0.0
      %656 = vmatpush1.msra.mxu0 0.0
      %657 = vmatprep.subr.mxu0 0.0
      %658 = vmatpush1.msra.mxu0 0.0
      %659 = vmatprep.subr.mxu0 0.0
      %660 = vmatpush1.msra.mxu0 0.0
      %661 = vmatprep.subr.mxu0 0.0
      %662 = vmatpush1.msra.mxu0 0.0
      %663 = vmatprep.subr.mxu0 0.0
      %664 = vmatpush1.msra.mxu0 0.0
      %665 = vmatprep.subr.mxu0 0.0
      %666 = vmatpush1.msra.mxu0 0.0
      %667 = vmatprep.subr.mxu0 0.0
      %668 = vmatpush1.msra.mxu0 0.0
      %669 = vmatprep.subr.mxu0 0.0
      %670 = vmatpush1.msra.mxu0 0.0
      %671 = vmatprep.subr.mxu0 0.0
      %672 = vmatpush1.msra.mxu0 0.0
      %673 = vmatprep.subr.mxu0 0.0
      %674 = vmatpush1.msra.mxu0 0.0
      %675 = vmatprep.subr.mxu0 0.0
      %676 = vmatpush1.msra.mxu0 0.0
      %677 = vmatprep.subr.mxu0 0.0
      %678 = vmatpush1.msra.mxu0 0.0
      %679 = vmatprep.subr.mxu0 0.0
      %680 = vmatpush1.msra.mxu0 0.0
      %681 = vmatprep.subr.mxu0 0.0
      %682 = vmatpush1.msra.mxu0 0.0
      %683 = vmatprep.mubr.f32.mxu0 0.0
      %684 = vmatmul.mubr.f32.gmra.mrb[0].mxu0 %v546
      %v685 = vpop.f32.mrb[0].mxu0
      %v686 = vadd.f32 %v542, %v685
      %v687 = vpop.f32.mrb[0].mxu0
      %v688 = vadd.f32 %v542, %v687
      %689 = vdwg.mxu0
      %690 = vmatprep.subr.mxu0 %v177
      %691 = vmatpush1.msra.mxu0 %v176
      %692 = vmatprep.subr.mxu0 %v238
      %693 = vmatpush1.msra.mxu0 %v237
      %694 = vmatprep.subr.mxu0 %v299
      %695 = vmatpush1.msra.mxu0 %v298
      %696 = vmatprep.subr.mxu0 %v360
      %697 = vmatpush1.msra.mxu0 %v359
      %698 = vmatprep.subr.mxu0 %v421
      %699 = vmatpush1.msra.mxu0 %v420
      %700 = vmatprep.subr.mxu0 %v482
      %701 = vmatpush1.msra.mxu0 %v481
      %702 = vmatprep.subr.mxu0 0.0
      %703 = vmatpush1.msra.mxu0 0.0
      %704 = vmatprep.subr.mxu0 0.0
      %705 = vmatpush1.msra.mxu0 0.0
      %706 = vmatprep.subr.mxu0 0.0
      %707 = vmatpush1.msra.mxu0 0.0
      %708 = vmatprep.subr.mxu0 0.0
      %709 = vmatpush1.msra.mxu0 0.0
      %710 = vmatprep.subr.mxu0 0.0
      %711 = vmatpush1.msra.mxu0 0.0
      %712 = vmatprep.subr.mxu0 0.0
      %713 = vmatpush1.msra.mxu0 0.0
      %714 = vmatprep.subr.mxu0 0.0
      %715 = vmatpush1.msra.mxu0 0.0
      %716 = vmatprep.subr.mxu0 0.0
      %717 = vmatpush1.msra.mxu0 0.0
      %718 = vmatprep.subr.mxu0 0.0
      %719 = vmatpush1.msra.mxu0 0.0
      %720 = vmatprep.subr.mxu0 0.0
      %721 = vmatpush1.msra.mxu0 0.0
      %722 = vmatprep.subr.mxu0 0.0
      %723 = vmatpush1.msra.mxu0 0.0
      %724 = vmatprep.subr.mxu0 0.0
      %725 = vmatpush1.msra.mxu0 0.0
      %726 = vmatprep.subr.mxu0 0.0
      %727 = vmatpush1.msra.mxu0 0.0
      %728 = vmatprep.subr.mxu0 0.0
      %729 = vmatpush1.msra.mxu0 0.0
      %730 = vmatprep.subr.mxu0 0.0
      %731 = vmatpush1.msra.mxu0 0.0
      %732 = vmatprep.subr.mxu0 0.0
      %733 = vmatpush1.msra.mxu0 0.0
      %734 = vmatprep.subr.mxu0 0.0
      %735 = vmatpush1.msra.mxu0 0.0
      %736 = vmatprep.subr.mxu0 0.0
      %737 = vmatpush1.msra.mxu0 0.0
      %738 = vmatprep.subr.mxu0 0.0
      %739 = vmatpush1.msra.mxu0 0.0
      %740 = vmatprep.subr.mxu0 0.0
      %741 = vmatpush1.msra.mxu0 0.0
      %742 = vmatprep.subr.mxu0 0.0
      %743 = vmatpush1.msra.mxu0 0.0
      %744 = vmatprep.subr.mxu0 0.0
      %745 = vmatpush1.msra.mxu0 0.0
      %746 = vmatprep.subr.mxu0 0.0
      %747 = vmatpush1.msra.mxu0 0.0
      %748 = vmatprep.subr.mxu0 0.0
      %749 = vmatpush1.msra.mxu0 0.0
      %750 = vmatprep.subr.mxu0 0.0
      %751 = vmatpush1.msra.mxu0 0.0
      %752 = vmatprep.subr.mxu0 0.0
      %753 = vmatpush1.msra.mxu0 0.0
      %754 = vmatprep.mubr.f32.mxu0 0.0
      %755 = vmatmul.mubr.f32.gmra.mrb[0].mxu0 %v546
      %v756 = vpop.f32.mrb[0].mxu0
      %v757 = vadd.f32 %v542, %v756
      %v758 = vpop.f32.mrb[0].mxu0
      %v759 = vadd.f32 %v542, %v758
      %760 = vdwg.mxu0
      %761 = vmatprep.subr.mxu0 %v179
      %762 = vmatpush1.msra.mxu0 %v178
      %763 = vmatprep.subr.mxu0 %v240
      %764 = vmatpush1.msra.mxu0 %v239
      %765 = vmatprep.subr.mxu0 %v301
      %766 = vmatpush1.msra.mxu0 %v300
      %767 = vmatprep.subr.mxu0 %v362
      %768 = vmatpush1.msra.mxu0 %v361
      %769 = vmatprep.subr.mxu0 %v423
      %770 = vmatpush1.msra.mxu0 %v422
      %771 = vmatprep.subr.mxu0 %v484
      %772 = vmatpush1.msra.mxu0 %v483
      %773 = vmatprep.subr.mxu0 0.0
      %774 = vmatpush1.msra.mxu0 0.0
      %775 = vmatprep.subr.mxu0 0.0
      %776 = vmatpush1.msra.mxu0 0.0
      %777 = vmatprep.subr.mxu0 0.0
      %778 = vmatpush1.msra.mxu0 0.0
      %779 = vmatprep.subr.mxu0 0.0
      %780 = vmatpush1.msra.mxu0 0.0
      %781 = vmatprep.subr.mxu0 0.0
      %782 = vmatpush1.msra.mxu0 0.0
      %783 = vmatprep.subr.mxu0 0.0
      %784 = vmatpush1.msra.mxu0 0.0
      %785 = vmatprep.subr.mxu0 0.0
      %786 = vmatpush1.msra.mxu0 0.0
      %787 = vmatprep.subr.mxu0 0.0
      %788 = vmatpush1.msra.mxu0 0.0
      %789 = vmatprep.subr.mxu0 0.0
      %790 = vmatpush1.msra.mxu0 0.0
      %791 = vmatprep.subr.mxu0 0.0
      %792 = vmatpush1.msra.mxu0 0.0
      %793 = vmatprep.subr.mxu0 0.0
      %794 = vmatpush1.msra.mxu0 0.0
      %795 = vmatprep.subr.mxu0 0.0
      %796 = vmatpush1.msra.mxu0 0.0
      %797 = vmatprep.subr.mxu0 0.0
      %798 = vmatpush1.msra.mxu0 0.0
      %799 = vmatprep.subr.mxu0 0.0
      %800 = vmatpush1.msra.mxu0 0.0
      %801 = vmatprep.subr.mxu0 0.0
      %802 = vmatpush1.msra.mxu0 0.0
      %803 = vmatprep.subr.mxu0 0.0
      %804 = vmatpush1.msra.mxu0 0.0
      %805 = vmatprep.subr.mxu0 0.0
      %806 = vmatpush1.msra.mxu0 0.0
      %807 = vmatprep.subr.mxu0 0.0
      %808 = vmatpush1.msra.mxu0 0.0
      %809 = vmatprep.subr.mxu0 0.0
      %810 = vmatpush1.msra.mxu0 0.0
      %811 = vmatprep.subr.mxu0 0.0
      %812 = vmatpush1.msra.mxu0 0.0
      %813 = vmatprep.subr.mxu0 0.0
      %814 = vmatpush1.msra.mxu0 0.0
      %815 = vmatprep.subr.mxu0 0.0
      %816 = vmatpush1.msra.mxu0 0.0
      %817 = vmatprep.subr.mxu0 0.0
      %818 = vmatpush1.msra.mxu0 0.0
      %819 = vmatprep.subr.mxu0 0.0
      %820 = vmatpush1.msra.mxu0 0.0
      %821 = vmatprep.subr.mxu0 0.0
      %822 = vmatpush1.msra.mxu0 0.0
      %823 = vmatprep.subr.mxu0 0.0
      %824 = vmatpush1.msra.mxu0 0.0
      %825 = vmatprep.mubr.f32.mxu0 0.0
      %826 = vmatmul.mubr.f32.gmra.mrb[0].mxu0 %v546
      %v827 = vpop.f32.mrb[0].mxu0
      %v828 = vadd.f32 %v542, %v827
      %v829 = vpop.f32.mrb[0].mxu0
      %v830 = vadd.f32 %v542, %v829
      %831 = vdwg.mxu0
      %832 = vmatprep.subr.mxu0 %v181
      %833 = vmatpush1.msra.mxu0 %v180
      %834 = vmatprep.subr.mxu0 %v242
      %835 = vmatpush1.msra.mxu0 %v241
      %836 = vmatprep.subr.mxu0 %v303
      %837 = vmatpush1.msra.mxu0 %v302
      %838 = vmatprep.subr.mxu0 %v364
      %839 = vmatpush1.msra.mxu0 %v363
      %840 = vmatprep.subr.mxu0 %v425
      %841 = vmatpush1.msra.mxu0 %v424
      %842 = vmatprep.subr.mxu0 %v486
      %843 = vmatpush1.msra.mxu0 %v485
      %844 = vmatprep.subr.mxu0 0.0
      %845 = vmatpush1.msra.mxu0 0.0
      %846 = vmatprep.subr.mxu0 0.0
      %847 = vmatpush1.msra.mxu0 0.0
      %848 = vmatprep.subr.mxu0 0.0
      %849 = vmatpush1.msra.mxu0 0.0
      %850 = vmatprep.subr.mxu0 0.0
      %851 = vmatpush1.msra.mxu0 0.0
      %852 = vmatprep.subr.mxu0 0.0
      %853 = vmatpush1.msra.mxu0 0.0
      %854 = vmatprep.subr.mxu0 0.0
      %855 = vmatpush1.msra.mxu0 0.0
      %856 = vmatprep.subr.mxu0 0.0
      %857 = vmatpush1.msra.mxu0 0.0
      %858 = vmatprep.subr.mxu0 0.0
      %859 = vmatpush1.msra.mxu0 0.0
      %860 = vmatprep.subr.mxu0 0.0
      %861 = vmatpush1.msra.mxu0 0.0
      %862 = vmatprep.subr.mxu0 0.0
      %863 = vmatpush1.msra.mxu0 0.0
      %864 = vmatprep.subr.mxu0 0.0
      %865 = vmatpush1.msra.mxu0 0.0
      %866 = vmatprep.subr.mxu0 0.0
      %867 = vmatpush1.msra.mxu0 0.0
      %868 = vmatprep.subr.mxu0 0.0
      %869 = vmatpush1.msra.mxu0 0.0
      %870 = vmatprep.subr.mxu0 0.0
      %871 = vmatpush1.msra.mxu0 0.0
      %872 = vmatprep.subr.mxu0 0.0
      %873 = vmatpush1.msra.mxu0 0.0
      %874 = vmatprep.subr.mxu0 0.0
      %875 = vmatpush1.msra.mxu0 0.0
      %876 = vmatprep.subr.mxu0 0.0
      %877 = vmatpush1.msra.mxu0 0.0
      %878 = vmatprep.subr.mxu0 0.0
      %879 = vmatpush1.msra.mxu0 0.0
      %880 = vmatprep.subr.mxu0 0.0
      %881 = vmatpush1.msra.mxu0 0.0
      %882 = vmatprep.subr.mxu0 0.0
      %883 = vmatpush1.msra.mxu0 0.0
      %884 = vmatprep.subr.mxu0 0.0
      %885 = vmatpush1.msra.mxu0 0.0
      %886 = vmatprep.subr.mxu0 0.0
      %887 = vmatpush1.msra.mxu0 0.0
      %888 = vmatprep.subr.mxu0 0.0
      %889 = vmatpush1.msra.mxu0 0.0
      %890 = vmatprep.subr.mxu0 0.0
      %891 = vmatpush1.msra.mxu0 0.0
      %892 = vmatprep.subr.mxu0 0.0
      %893 = vmatpush1.msra.mxu0 0.0
      %894 = vmatprep.subr.mxu0 0.0
      %895 = vmatpush1.msra.mxu0 0.0
      %896 = vmatprep.mubr.f32.mxu0 0.0
      %897 = vmatmul.mubr.f32.gmra.mrb[0].mxu0 %v546
      %v898 = vpop.f32.mrb[0].mxu0
      %v899 = vadd.f32 %v542, %v898
      %v900 = vpop.f32.mrb[0].mxu0
      %v901 = vadd.f32 %v542, %v900
      %902 = vdwg.mxu0
      %903 = vmatprep.subr.mxu0 %v183
      %904 = vmatpush1.msra.mxu0 %v182
      %905 = vmatprep.subr.mxu0 %v244
      %906 = vmatpush1.msra.mxu0 %v243
      %907 = vmatprep.subr.mxu0 %v305
      %908 = vmatpush1.msra.mxu0 %v304
      %909 = vmatprep.subr.mxu0 %v366
      %910 = vmatpush1.msra.mxu0 %v365
      %911 = vmatprep.subr.mxu0 %v427
      %912 = vmatpush1.msra.mxu0 %v426
      %913 = vmatprep.subr.mxu0 %v488
      %914 = vmatpush1.msra.mxu0 %v487
      %915 = vmatprep.subr.mxu0 0.0
      %916 = vmatpush1.msra.mxu0 0.0
      %917 = vmatprep.subr.mxu0 0.0
      %918 = vmatpush1.msra.mxu0 0.0
      %919 = vmatprep.subr.mxu0 0.0
      %920 = vmatpush1.msra.mxu0 0.0
      %921 = vmatprep.subr.mxu0 0.0
      %922 = vmatpush1.msra.mxu0 0.0
      %923 = vmatprep.subr.mxu0 0.0
      %924 = vmatpush1.msra.mxu0 0.0
      %925 = vmatprep.subr.mxu0 0.0
      %926 = vmatpush1.msra.mxu0 0.0
      %927 = vmatprep.subr.mxu0 0.0
      %928 = vmatpush1.msra.mxu0 0.0
      %929 = vmatprep.subr.mxu0 0.0
      %930 = vmatpush1.msra.mxu0 0.0
      %931 = vmatprep.subr.mxu0 0.0
      %932 = vmatpush1.msra.mxu0 0.0
      %933 = vmatprep.subr.mxu0 0.0
      %934 = vmatpush1.msra.mxu0 0.0
      %935 = vmatprep.subr.mxu0 0.0
      %936 = vmatpush1.msra.mxu0 0.0
      %937 = vmatprep.subr.mxu0 0.0
      %938 = vmatpush1.msra.mxu0 0.0
      %939 = vmatprep.subr.mxu0 0.0
      %940 = vmatpush1.msra.mxu0 0.0
      %941 = vmatprep.subr.mxu0 0.0
      %942 = vmatpush1.msra.mxu0 0.0
      %943 = vmatprep.subr.mxu0 0.0
      %944 = vmatpush1.msra.mxu0 0.0
      %945 = vmatprep.subr.mxu0 0.0
      %946 = vmatpush1.msra.mxu0 0.0
      %947 = vmatprep.subr.mxu0 0.0
      %948 = vmatpush1.msra.mxu0 0.0
      %949 = vmatprep.subr.mxu0 0.0
      %950 = vmatpush1.msra.mxu0 0.0
      %951 = vmatprep.subr.mxu0 0.0
      %952 = vmatpush1.msra.mxu0 0.0
      %953 = vmatprep.subr.mxu0 0.0
      %954 = vmatpush1.msra.mxu0 0.0
      %955 = vmatprep.subr.mxu0 0.0
      %956 = vmatpush1.msra.mxu0 0.0
      %957 = vmatprep.subr.mxu0 0.0
      %958 = vmatpush1.msra.mxu0 0.0
      %959 = vmatprep.subr.mxu0 0.0
      %960 = vmatpush1.msra.mxu0 0.0
      %961 = vmatprep.subr.mxu0 0.0
      %962 = vmatpush1.msra.mxu0 0.0
      %963 = vmatprep.subr.mxu0 0.0
      %964 = vmatpush1.msra.mxu0 0.0
      %965 = vmatprep.subr.mxu0 0.0
      %966 = vmatpush1.msra.mxu0 0.0
      %967 = vmatprep.mubr.f32.mxu0 0.0
      %968 = vmatmul.mubr.f32.gmra.mrb[0].mxu0 %v546
      %v969 = vpop.f32.mrb[0].mxu0
      %v970 = vadd.f32 %v542, %v969
      %v971 = vpop.f32.mrb[0].mxu0
      %v972 = vadd.f32 %v542, %v971
      %973 = vdwg.mxu0
      %974 = vmatprep.subr.mxu0 %v185
      %975 = vmatpush1.msra.mxu0 %v184
      %976 = vmatprep.subr.mxu0 %v246
      %977 = vmatpush1.msra.mxu0 %v245
      %978 = vmatprep.subr.mxu0 %v307
      %979 = vmatpush1.msra.mxu0 %v306
      %980 = vmatprep.subr.mxu0 %v368
      %981 = vmatpush1.msra.mxu0 %v367
      %982 = vmatprep.subr.mxu0 %v429
      %983 = vmatpush1.msra.mxu0 %v428
      %984 = vmatprep.subr.mxu0 %v490
      %985 = vmatpush1.msra.mxu0 %v489
      %986 = vmatprep.subr.mxu0 0.0
      %987 = vmatpush1.msra.mxu0 0.0
      %988 = vmatprep.subr.mxu0 0.0
      %989 = vmatpush1.msra.mxu0 0.0
      %990 = vmatprep.subr.mxu0 0.0
      %991 = vmatpush1.msra.mxu0 0.0
      %992 = vmatprep.subr.mxu0 0.0
      %993 = vmatpush1.msra.mxu0 0.0
      %994 = vmatprep.subr.mxu0 0.0
      %995 = vmatpush1.msra.mxu0 0.0
      %996 = vmatprep.subr.mxu0 0.0
      %997 = vmatpush1.msra.mxu0 0.0
      %998 = vmatprep.subr.mxu0 0.0
      %999 = vmatpush1.msra.mxu0 0.0
      %1000 = vmatprep.subr.mxu0 0.0
      %1001 = vmatpush1.msra.mxu0 0.0
      %1002 = vmatprep.subr.mxu0 0.0
      %1003 = vmatpush1.msra.mxu0 0.0
      %1004 = vmatprep.subr.mxu0 0.0
      %1005 = vmatpush1.msra.mxu0 0.0
      %1006 = vmatprep.subr.mxu0 0.0
      %1007 = vmatpush1.msra.mxu0 0.0
      %1008 = vmatprep.subr.mxu0 0.0
      %1009 = vmatpush1.msra.mxu0 0.0
      %1010 = vmatprep.subr.mxu0 0.0
      %1011 = vmatpush1.msra.mxu0 0.0
      %1012 = vmatprep.subr.mxu0 0.0
      %1013 = vmatpush1.msra.mxu0 0.0
      %1014 = vmatprep.subr.mxu0 0.0
      %1015 = vmatpush1.msra.mxu0 0.0
      %1016 = vmatprep.subr.mxu0 0.0
      %1017 = vmatpush1.msra.mxu0 0.0
      %1018 = vmatprep.subr.mxu0 0.0
      %1019 = vmatpush1.msra.mxu0 0.0
      %1020 = vmatprep.subr.mxu0 0.0
      %1021 = vmatpush1.msra.mxu0 0.0
      %1022 = vmatprep.subr.mxu0 0.0
      %1023 = vmatpush1.msra.mxu0 0.0
      %1024 = vmatprep.subr.mxu0 0.0
      %1025 = vmatpush1.msra.mxu0 0.0
      %1026 = vmatprep.subr.mxu0 0.0
      %1027 = vmatpush1.msra.mxu0 0.0
      %1028 = vmatprep.subr.mxu0 0.0
      %1029 = vmatpush1.msra.mxu0 0.0
      %1030 = vmatprep.subr.mxu0 0.0
      %1031 = vmatpush1.msra.mxu0 0.0
      %1032 = vmatprep.subr.mxu0 0.0
      %1033 = vmatpush1.msra.mxu0 0.0
      %1034 = vmatprep.subr.mxu0 0.0
      %1035 = vmatpush1.msra.mxu0 0.0
      %1036 = vmatprep.subr.mxu0 0.0
      %1037 = vmatpush1.msra.mxu0 0.0
      %1038 = vmatprep.mubr.f32.mxu0 0.0
      %1039 = vmatmul.mubr.f32.gmra.mrb[0].mxu0 %v546
      %v1040 = vpop.f32.mrb[0].mxu0
      %v1041 = vadd.f32 %v542, %v1040
      %v1042 = vpop.f32.mrb[0].mxu0
      %v1043 = vadd.f32 %v542, %v1042
      %1044 = vdwg.mxu0
      %1045 = vmatprep.subr.mxu0 %v187
      %1046 = vmatpush1.msra.mxu0 %v186
      %1047 = vmatprep.subr.mxu0 %v248
      %1048 = vmatpush1.msra.mxu0 %v247
      %1049 = vmatprep.subr.mxu0 %v309
      %1050 = vmatpush1.msra.mxu0 %v308
      %1051 = vmatprep.subr.mxu0 %v370
      %1052 = vmatpush1.msra.mxu0 %v369
      %1053 = vmatprep.subr.mxu0 %v431
      %1054 = vmatpush1.msra.mxu0 %v430
      %1055 = vmatprep.subr.mxu0 %v492
      %1056 = vmatpush1.msra.mxu0 %v491
      %1057 = vmatprep.subr.mxu0 0.0
      %1058 = vmatpush1.msra.mxu0 0.0
      %1059 = vmatprep.subr.mxu0 0.0
      %1060 = vmatpush1.msra.mxu0 0.0
      %1061 = vmatprep.subr.mxu0 0.0
      %1062 = vmatpush1.msra.mxu0 0.0
      %1063 = vmatprep.subr.mxu0 0.0
      %1064 = vmatpush1.msra.mxu0 0.0
      %1065 = vmatprep.subr.mxu0 0.0
      %1066 = vmatpush1.msra.mxu0 0.0
      %1067 = vmatprep.subr.mxu0 0.0
      %1068 = vmatpush1.msra.mxu0 0.0
      %1069 = vmatprep.subr.mxu0 0.0
      %1070 = vmatpush1.msra.mxu0 0.0
      %1071 = vmatprep.subr.mxu0 0.0
      %1072 = vmatpush1.msra.mxu0 0.0
      %1073 = vmatprep.subr.mxu0 0.0
      %1074 = vmatpush1.msra.mxu0 0.0
      %1075 = vmatprep.subr.mxu0 0.0
      %1076 = vmatpush1.msra.mxu0 0.0
      %1077 = vmatprep.subr.mxu0 0.0
      %1078 = vmatpush1.msra.mxu0 0.0
      %1079 = vmatprep.subr.mxu0 0.0
      %1080 = vmatpush1.msra.mxu0 0.0
      %1081 = vmatprep.subr.mxu0 0.0
      %1082 = vmatpush1.msra.mxu0 0.0
      %1083 = vmatprep.subr.mxu0 0.0
      %1084 = vmatpush1.msra.mxu0 0.0
      %1085 = vmatprep.subr.mxu0 0.0
      %1086 = vmatpush1.msra.mxu0 0.0
      %1087 = vmatprep.subr.mxu0 0.0
      %1088 = vmatpush1.msra.mxu0 0.0
      %1089 = vmatprep.subr.mxu0 0.0
      %1090 = vmatpush1.msra.mxu0 0.0
      %1091 = vmatprep.subr.mxu0 0.0
      %1092 = vmatpush1.msra.mxu0 0.0
      %1093 = vmatprep.subr.mxu0 0.0
      %1094 = vmatpush1.msra.mxu0 0.0
      %1095 = vmatprep.subr.mxu0 0.0
      %1096 = vmatpush1.msra.mxu0 0.0
      %1097 = vmatprep.subr.mxu0 0.0
      %1098 = vmatpush1.msra.mxu0 0.0
      %1099 = vmatprep.subr.mxu0 0.0
      %1100 = vmatpush1.msra.mxu0 0.0
      %1101 = vmatprep.subr.mxu0 0.0
      %1102 = vmatpush1.msra.mxu0 0.0
      %1103 = vmatprep.subr.mxu0 0.0
      %1104 = vmatpush1.msra.mxu0 0.0
      %1105 = vmatprep.subr.mxu0 0.0
      %1106 = vmatpush1.msra.mxu0 0.0
      %1107 = vmatprep.subr.mxu0 0.0
      %1108 = vmatpush1.msra.mxu0 0.0
      %1109 = vmatprep.mubr.f32.mxu0 0.0
      %1110 = vmatmul.mubr.f32.gmra.mrb[0].mxu0 %v546
      %v1111 = vpop.f32.mrb[0].mxu0
      %v1112 = vadd.f32 %v542, %v1111
      %v1113 = vpop.f32.mrb[0].mxu0
      %v1114 = vadd.f32 %v542, %v1113
      %1115 = vdwg.mxu0
      %1116 = vmatprep.subr.mxu0 %v189
      %1117 = vmatpush1.msra.mxu0 %v188
      %1118 = vmatprep.subr.mxu0 %v250
      %1119 = vmatpush1.msra.mxu0 %v249
      %1120 = vmatprep.subr.mxu0 %v311
      %1121 = vmatpush1.msra.mxu0 %v310
      %1122 = vmatprep.subr.mxu0 %v372
      %1123 = vmatpush1.msra.mxu0 %v371
      %1124 = vmatprep.subr.mxu0 %v433
      %1125 = vmatpush1.msra.mxu0 %v432
      %1126 = vmatprep.subr.mxu0 %v494
      %1127 = vmatpush1.msra.mxu0 %v493
      %1128 = vmatprep.subr.mxu0 0.0
      %1129 = vmatpush1.msra.mxu0 0.0
      %1130 = vmatprep.subr.mxu0 0.0
      %1131 = vmatpush1.msra.mxu0 0.0
      %1132 = vmatprep.subr.mxu0 0.0
      %1133 = vmatpush1.msra.mxu0 0.0
      %1134 = vmatprep.subr.mxu0 0.0
      %1135 = vmatpush1.msra.mxu0 0.0
      %1136 = vmatprep.subr.mxu0 0.0
      %1137 = vmatpush1.msra.mxu0 0.0
      %1138 = vmatprep.subr.mxu0 0.0
      %1139 = vmatpush1.msra.mxu0 0.0
      %1140 = vmatprep.subr.mxu0 0.0
      %1141 = vmatpush1.msra.mxu0 0.0
      %1142 = vmatprep.subr.mxu0 0.0
      %1143 = vmatpush1.msra.mxu0 0.0
      %1144 = vmatprep.subr.mxu0 0.0
      %1145 = vmatpush1.msra.mxu0 0.0
      %1146 = vmatprep.subr.mxu0 0.0
      %1147 = vmatpush1.msra.mxu0 0.0
      %1148 = vmatprep.subr.mxu0 0.0
      %1149 = vmatpush1.msra.mxu0 0.0
      %1150 = vmatprep.subr.mxu0 0.0
      %1151 = vmatpush1.msra.mxu0 0.0
      %1152 = vmatprep.subr.mxu0 0.0
      %1153 = vmatpush1.msra.mxu0 0.0
      %1154 = vmatprep.subr.mxu0 0.0
      %1155 = vmatpush1.msra.mxu0 0.0
      %1156 = vmatprep.subr.mxu0 0.0
      %1157 = vmatpush1.msra.mxu0 0.0
      %1158 = vmatprep.subr.mxu0 0.0
      %1159 = vmatpush1.msra.mxu0 0.0
      %1160 = vmatprep.subr.mxu0 0.0
      %1161 = vmatpush1.msra.mxu0 0.0
      %1162 = vmatprep.subr.mxu0 0.0
      %1163 = vmatpush1.msra.mxu0 0.0
      %1164 = vmatprep.subr.mxu0 0.0
      %1165 = vmatpush1.msra.mxu0 0.0
      %1166 = vmatprep.subr.mxu0 0.0
      %1167 = vmatpush1.msra.mxu0 0.0
      %1168 = vmatprep.subr.mxu0 0.0
      %1169 = vmatpush1.msra.mxu0 0.0
      %1170 = vmatprep.subr.mxu0 0.0
      %1171 = vmatpush1.msra.mxu0 0.0
      %1172 = vmatprep.subr.mxu0 0.0
      %1173 = vmatpush1.msra.mxu0 0.0
      %1174 = vmatprep.subr.mxu0 0.0
      %1175 = vmatpush1.msra.mxu0 0.0
      %1176 = vmatprep.subr.mxu0 0.0
      %1177 = vmatpush1.msra.mxu0 0.0
      %1178 = vmatprep.subr.mxu0 0.0
      %1179 = vmatpush1.msra.mxu0 0.0
      %1180 = vmatprep.mubr.f32.mxu0 0.0
      %1181 = vmatmul.mubr.f32.gmra.mrb[0].mxu0 %v546
      %v1182 = vpop.f32.mrb[0].mxu0
      %v1183 = vadd.f32 %v542, %v1182
      %v1184 = vpop.f32.mrb[0].mxu0
      %v1185 = vadd.f32 %v542, %v1184
      %1186 = vdwg.mxu0
      %1187 = vmatprep.subr.mxu0 %v191
      %1188 = vmatpush1.msra.mxu0 %v190
      %1189 = vmatprep.subr.mxu0 %v252
      %1190 = vmatpush1.msra.mxu0 %v251
      %1191 = vmatprep.subr.mxu0 %v313
      %1192 = vmatpush1.msra.mxu0 %v312
      %1193 = vmatprep.subr.mxu0 %v374
      %1194 = vmatpush1.msra.mxu0 %v373
      %1195 = vmatprep.subr.mxu0 %v435
      %1196 = vmatpush1.msra.mxu0 %v434
      %1197 = vmatprep.subr.mxu0 %v496
      %1198 = vmatpush1.msra.mxu0 %v495
      %1199 = vmatprep.subr.mxu0 0.0
      %1200 = vmatpush1.msra.mxu0 0.0
      %1201 = vmatprep.subr.mxu0 0.0
      %1202 = vmatpush1.msra.mxu0 0.0
      %1203 = vmatprep.subr.mxu0 0.0
      %1204 = vmatpush1.msra.mxu0 0.0
      %1205 = vmatprep.subr.mxu0 0.0
      %1206 = vmatpush1.msra.mxu0 0.0
      %1207 = vmatprep.subr.mxu0 0.0
      %1208 = vmatpush1.msra.mxu0 0.0
      %1209 = vmatprep.subr.mxu0 0.0
      %1210 = vmatpush1.msra.mxu0 0.0
      %1211 = vmatprep.subr.mxu0 0.0
      %1212 = vmatpush1.msra.mxu0 0.0
      %1213 = vmatprep.subr.mxu0 0.0
      %1214 = vmatpush1.msra.mxu0 0.0
      %1215 = vmatprep.subr.mxu0 0.0
      %1216 = vmatpush1.msra.mxu0 0.0
      %1217 = vmatprep.subr.mxu0 0.0
      %1218 = vmatpush1.msra.mxu0 0.0
      %1219 = vmatprep.subr.mxu0 0.0
      %1220 = vmatpush1.msra.mxu0 0.0
      %1221 = vmatprep.subr.mxu0 0.0
      %1222 = vmatpush1.msra.mxu0 0.0
      %1223 = vmatprep.subr.mxu0 0.0
      %1224 = vmatpush1.msra.mxu0 0.0
      %1225 = vmatprep.subr.mxu0 0.0
      %1226 = vmatpush1.msra.mxu0 0.0
      %1227 = vmatprep.subr.mxu0 0.0
      %1228 = vmatpush1.msra.mxu0 0.0
      %1229 = vmatprep.subr.mxu0 0.0
      %1230 = vmatpush1.msra.mxu0 0.0
      %1231 = vmatprep.subr.mxu0 0.0
      %1232 = vmatpush1.msra.mxu0 0.0
      %1233 = vmatprep.subr.mxu0 0.0
      %1234 = vmatpush1.msra.mxu0 0.0
      %1235 = vmatprep.subr.mxu0 0.0
      %1236 = vmatpush1.msra.mxu0 0.0
      %1237 = vmatprep.subr.mxu0 0.0
      %1238 = vmatpush1.msra.mxu0 0.0
      %1239 = vmatprep.subr.mxu0 0.0
      %1240 = vmatpush1.msra.mxu0 0.0
      %1241 = vmatprep.subr.mxu0 0.0
      %1242 = vmatpush1.msra.mxu0 0.0
      %1243 = vmatprep.subr.mxu0 0.0
      %1244 = vmatpush1.msra.mxu0 0.0
      %1245 = vmatprep.subr.mxu0 0.0
      %1246 = vmatpush1.msra.mxu0 0.0
      %1247 = vmatprep.subr.mxu0 0.0
      %1248 = vmatpush1.msra.mxu0 0.0
      %1249 = vmatprep.subr.mxu0 0.0
      %1250 = vmatpush1.msra.mxu0 0.0
      %1251 = vmatprep.mubr.f32.mxu0 0.0
      %1252 = vmatmul.mubr.f32.gmra.mrb[0].mxu0 %v546
      %v1253 = vpop.f32.mrb[0].mxu0
      %v1254 = vadd.f32 %v542, %v1253
      %v1255 = vpop.f32.mrb[0].mxu0
      %v1256 = vadd.f32 %v542, %v1255
      %1257 = vdwg.mxu0
      %1258 = vmatprep.subr.mxu0 %v193
      %1259 = vmatpush1.msra.mxu0 %v192
      %1260 = vmatprep.subr.mxu0 %v254
      %1261 = vmatpush1.msra.mxu0 %v253
      %1262 = vmatprep.subr.mxu0 %v315
      %1263 = vmatpush1.msra.mxu0 %v314
      %1264 = vmatprep.subr.mxu0 %v376
      %1265 = vmatpush1.msra.mxu0 %v375
      %1266 = vmatprep.subr.mxu0 %v437
      %1267 = vmatpush1.msra.mxu0 %v436
      %1268 = vmatprep.subr.mxu0 %v498
      %1269 = vmatpush1.msra.mxu0 %v497
      %1270 = vmatprep.subr.mxu0 0.0
      %1271 = vmatpush1.msra.mxu0 0.0
      %1272 = vmatprep.subr.mxu0 0.0
      %1273 = vmatpush1.msra.mxu0 0.0
      %1274 = vmatprep.subr.mxu0 0.0
      %1275 = vmatpush1.msra.mxu0 0.0
      %1276 = vmatprep.subr.mxu0 0.0
      %1277 = vmatpush1.msra.mxu0 0.0
      %1278 = vmatprep.subr.mxu0 0.0
      %1279 = vmatpush1.msra.mxu0 0.0
      %1280 = vmatprep.subr.mxu0 0.0
      %1281 = vmatpush1.msra.mxu0 0.0
      %1282 = vmatprep.subr.mxu0 0.0
      %1283 = vmatpush1.msra.mxu0 0.0
      %1284 = vmatprep.subr.mxu0 0.0
      %1285 = vmatpush1.msra.mxu0 0.0
      %1286 = vmatprep.subr.mxu0 0.0
      %1287 = vmatpush1.msra.mxu0 0.0
      %1288 = vmatprep.subr.mxu0 0.0
      %1289 = vmatpush1.msra.mxu0 0.0
      %1290 = vmatprep.subr.mxu0 0.0
      %1291 = vmatpush1.msra.mxu0 0.0
      %1292 = vmatprep.subr.mxu0 0.0
      %1293 = vmatpush1.msra.mxu0 0.0
      %1294 = vmatprep.subr.mxu0 0.0
      %1295 = vmatpush1.msra.mxu0 0.0
      %1296 = vmatprep.subr.mxu0 0.0
      %1297 = vmatpush1.msra.mxu0 0.0
      %1298 = vmatprep.subr.mxu0 0.0
      %1299 = vmatpush1.msra.mxu0 0.0
      %1300 = vmatprep.subr.mxu0 0.0
      %1301 = vmatpush1.msra.mxu0 0.0
      %1302 = vmatprep.subr.mxu0 0.0
      %1303 = vmatpush1.msra.mxu0 0.0
      %1304 = vmatprep.subr.mxu0 0.0
      %1305 = vmatpush1.msra.mxu0 0.0
      %1306 = vmatprep.subr.mxu0 0.0
      %1307 = vmatpush1.msra.mxu0 0.0
      %1308 = vmatprep.subr.mxu0 0.0
      %1309 = vmatpush1.msra.mxu0 0.0
      %1310 = vmatprep.subr.mxu0 0.0
      %1311 = vmatpush1.msra.mxu0 0.0
      %1312 = vmatprep.subr.mxu0 0.0
      %1313 = vmatpush1.msra.mxu0 0.0
      %1314 = vmatprep.subr.mxu0 0.0
      %1315 = vmatpush1.msra.mxu0 0.0
      %1316 = vmatprep.subr.mxu0 0.0
      %1317 = vmatpush1.msra.mxu0 0.0
      %1318 = vmatprep.subr.mxu0 0.0
      %1319 = vmatpush1.msra.mxu0 0.0
      %1320 = vmatprep.subr.mxu0 0.0
      %1321 = vmatpush1.msra.mxu0 0.0
      %1322 = vmatprep.mubr.f32.mxu0 0.0
      %1323 = vmatmul.mubr.f32.gmra.mrb[0].mxu0 %v546
      %v1324 = vpop.f32.mrb[0].mxu0
      %v1325 = vadd.f32 %v542, %v1324
      %v1326 = vpop.f32.mrb[0].mxu0
      %v1327 = vadd.f32 %v542, %v1326
      %1328 = vdwg.mxu0
      %1329 = vmatprep.subr.mxu0 %v195
      %1330 = vmatpush1.msra.mxu0 %v194
      %1331 = vmatprep.subr.mxu0 %v256
      %1332 = vmatpush1.msra.mxu0 %v255
      %1333 = vmatprep.subr.mxu0 %v317
      %1334 = vmatpush1.msra.mxu0 %v316
      %1335 = vmatprep.subr.mxu0 %v378
      %1336 = vmatpush1.msra.mxu0 %v377
      %1337 = vmatprep.subr.mxu0 %v439
      %1338 = vmatpush1.msra.mxu0 %v438
      %1339 = vmatprep.subr.mxu0 %v500
      %1340 = vmatpush1.msra.mxu0 %v499
      %1341 = vmatprep.subr.mxu0 0.0
      %1342 = vmatpush1.msra.mxu0 0.0
      %1343 = vmatprep.subr.mxu0 0.0
      %1344 = vmatpush1.msra.mxu0 0.0
      %1345 = vmatprep.subr.mxu0 0.0
      %1346 = vmatpush1.msra.mxu0 0.0
      %1347 = vmatprep.subr.mxu0 0.0
      %1348 = vmatpush1.msra.mxu0 0.0
      %1349 = vmatprep.subr.mxu0 0.0
      %1350 = vmatpush1.msra.mxu0 0.0
      %1351 = vmatprep.subr.mxu0 0.0
      %1352 = vmatpush1.msra.mxu0 0.0
      %1353 = vmatprep.subr.mxu0 0.0
      %1354 = vmatpush1.msra.mxu0 0.0
      %1355 = vmatprep.subr.mxu0 0.0
      %1356 = vmatpush1.msra.mxu0 0.0
      %1357 = vmatprep.subr.mxu0 0.0
      %1358 = vmatpush1.msra.mxu0 0.0
      %1359 = vmatprep.subr.mxu0 0.0
      %1360 = vmatpush1.msra.mxu0 0.0
      %1361 = vmatprep.subr.mxu0 0.0
      %1362 = vmatpush1.msra.mxu0 0.0
      %1363 = vmatprep.subr.mxu0 0.0
      %1364 = vmatpush1.msra.mxu0 0.0
      %1365 = vmatprep.subr.mxu0 0.0
      %1366 = vmatpush1.msra.mxu0 0.0
      %1367 = vmatprep.subr.mxu0 0.0
      %1368 = vmatpush1.msra.mxu0 0.0
      %1369 = vmatprep.subr.mxu0 0.0
      %1370 = vmatpush1.msra.mxu0 0.0
      %1371 = vmatprep.subr.mxu0 0.0
      %1372 = vmatpush1.msra.mxu0 0.0
      %1373 = vmatprep.subr.mxu0 0.0
      %1374 = vmatpush1.msra.mxu0 0.0
      %1375 = vmatprep.subr.mxu0 0.0
      %1376 = vmatpush1.msra.mxu0 0.0
      %1377 = vmatprep.subr.mxu0 0.0
      %1378 = vmatpush1.msra.mxu0 0.0
      %1379 = vmatprep.subr.mxu0 0.0
      %1380 = vmatpush1.msra.mxu0 0.0
      %1381 = vmatprep.subr.mxu0 0.0
      %1382 = vmatpush1.msra.mxu0 0.0
      %1383 = vmatprep.subr.mxu0 0.0
      %1384 = vmatpush1.msra.mxu0 0.0
      %1385 = vmatprep.subr.mxu0 0.0
      %1386 = vmatpush1.msra.mxu0 0.0
      %1387 = vmatprep.subr.mxu0 0.0
      %1388 = vmatpush1.msra.mxu0 0.0
      %1389 = vmatprep.subr.mxu0 0.0
      %1390 = vmatpush1.msra.mxu0 0.0
      %1391 = vmatprep.subr.mxu0 0.0
      %1392 = vmatpush1.msra.mxu0 0.0
      %1393 = vmatprep.mubr.f32.mxu0 0.0
      %1394 = vmatmul.mubr.f32.gmra.mrb[0].mxu0 %v546
      %v1395 = vpop.f32.mrb[0].mxu0
      %v1396 = vadd.f32 %v542, %v1395
      %v1397 = vpop.f32.mrb[0].mxu0
      %v1398 = vadd.f32 %v542, %v1397
      %1399 = vdwg.mxu0
      %1400 = vmatprep.subr.mxu0 %v197
      %1401 = vmatpush1.msra.mxu0 %v196
      %1402 = vmatprep.subr.mxu0 %v258
      %1403 = vmatpush1.msra.mxu0 %v257
      %1404 = vmatprep.subr.mxu0 %v319
      %1405 = vmatpush1.msra.mxu0 %v318
      %1406 = vmatprep.subr.mxu0 %v380
      %1407 = vmatpush1.msra.mxu0 %v379
      %1408 = vmatprep.subr.mxu0 %v441
      %1409 = vmatpush1.msra.mxu0 %v440
      %1410 = vmatprep.subr.mxu0 %v502
      %1411 = vmatpush1.msra.mxu0 %v501
      %1412 = vmatprep.subr.mxu0 0.0
      %1413 = vmatpush1.msra.mxu0 0.0
      %1414 = vmatprep.subr.mxu0 0.0
      %1415 = vmatpush1.msra.mxu0 0.0
      %1416 = vmatprep.subr.mxu0 0.0
      %1417 = vmatpush1.msra.mxu0 0.0
      %1418 = vmatprep.subr.mxu0 0.0
      %1419 = vmatpush1.msra.mxu0 0.0
      %1420 = vmatprep.subr.mxu0 0.0
      %1421 = vmatpush1.msra.mxu0 0.0
      %1422 = vmatprep.subr.mxu0 0.0
      %1423 = vmatpush1.msra.mxu0 0.0
      %1424 = vmatprep.subr.mxu0 0.0
      %1425 = vmatpush1.msra.mxu0 0.0
      %1426 = vmatprep.subr.mxu0 0.0
      %1427 = vmatpush1.msra.mxu0 0.0
      %1428 = vmatprep.subr.mxu0 0.0
      %1429 = vmatpush1.msra.mxu0 0.0
      %1430 = vmatprep.subr.mxu0 0.0
      %1431 = vmatpush1.msra.mxu0 0.0
      %1432 = vmatprep.subr.mxu0 0.0
      %1433 = vmatpush1.msra.mxu0 0.0
      %1434 = vmatprep.subr.mxu0 0.0
      %1435 = vmatpush1.msra.mxu0 0.0
      %1436 = vmatprep.subr.mxu0 0.0
      %1437 = vmatpush1.msra.mxu0 0.0
      %1438 = vmatprep.subr.mxu0 0.0
      %1439 = vmatpush1.msra.mxu0 0.0
      %1440 = vmatprep.subr.mxu0 0.0
      %1441 = vmatpush1.msra.mxu0 0.0
      %1442 = vmatprep.subr.mxu0 0.0
      %1443 = vmatpush1.msra.mxu0 0.0
      %1444 = vmatprep.subr.mxu0 0.0
      %1445 = vmatpush1.msra.mxu0 0.0
      %1446 = vmatprep.subr.mxu0 0.0
      %1447 = vmatpush1.msra.mxu0 0.0
      %1448 = vmatprep.subr.mxu0 0.0
      %1449 = vmatpush1.msra.mxu0 0.0
      %1450 = vmatprep.subr.mxu0 0.0
      %1451 = vmatpush1.msra.mxu0 0.0
      %1452 = vmatprep.subr.mxu0 0.0
      %1453 = vmatpush1.msra.mxu0 0.0
      %1454 = vmatprep.subr.mxu0 0.0
      %1455 = vmatpush1.msra.mxu0 0.0
      %1456 = vmatprep.subr.mxu0 0.0
      %1457 = vmatpush1.msra.mxu0 0.0
      %1458 = vmatprep.subr.mxu0 0.0
      %1459 = vmatpush1.msra.mxu0 0.0
      %1460 = vmatprep.subr.mxu0 0.0
      %1461 = vmatpush1.msra.mxu0 0.0
      %1462 = vmatprep.subr.mxu0 0.0
      %1463 = vmatpush1.msra.mxu0 0.0
      %1464 = vmatprep.mubr.f32.mxu0 0.0
      %1465 = vmatmul.mubr.f32.gmra.mrb[0].mxu0 %v546
      %v1466 = vpop.f32.mrb[0].mxu0
      %v1467 = vadd.f32 %v542, %v1466
      %v1468 = vpop.f32.mrb[0].mxu0
      %v1469 = vadd.f32 %v542, %v1468
      %1470 = vdwg.mxu0
      %1471 = vmatprep.subr.mxu0 %v199
      %1472 = vmatpush1.msra.mxu0 %v198
      %1473 = vmatprep.subr.mxu0 %v260
      %1474 = vmatpush1.msra.mxu0 %v259
      %1475 = vmatprep.subr.mxu0 %v321
      %1476 = vmatpush1.msra.mxu0 %v320
      %1477 = vmatprep.subr.mxu0 %v382
      %1478 = vmatpush1.msra.mxu0 %v381
      %1479 = vmatprep.subr.mxu0 %v443
      %1480 = vmatpush1.msra.mxu0 %v442
      %1481 = vmatprep.subr.mxu0 %v504
      %1482 = vmatpush1.msra.mxu0 %v503
      %1483 = vmatprep.subr.mxu0 0.0
      %1484 = vmatpush1.msra.mxu0 0.0
      %1485 = vmatprep.subr.mxu0 0.0
      %1486 = vmatpush1.msra.mxu0 0.0
      %1487 = vmatprep.subr.mxu0 0.0
      %1488 = vmatpush1.msra.mxu0 0.0
      %1489 = vmatprep.subr.mxu0 0.0
      %1490 = vmatpush1.msra.mxu0 0.0
      %1491 = vmatprep.subr.mxu0 0.0
      %1492 = vmatpush1.msra.mxu0 0.0
      %1493 = vmatprep.subr.mxu0 0.0
      %1494 = vmatpush1.msra.mxu0 0.0
      %1495 = vmatprep.subr.mxu0 0.0
      %1496 = vmatpush1.msra.mxu0 0.0
      %1497 = vmatprep.subr.mxu0 0.0
      %1498 = vmatpush1.msra.mxu0 0.0
      %1499 = vmatprep.subr.mxu0 0.0
      %1500 = vmatpush1.msra.mxu0 0.0
      %1501 = vmatprep.subr.mxu0 0.0
      %1502 = vmatpush1.msra.mxu0 0.0
      %1503 = vmatprep.subr.mxu0 0.0
      %1504 = vmatpush1.msra.mxu0 0.0
      %1505 = vmatprep.subr.mxu0 0.0
      %1506 = vmatpush1.msra.mxu0 0.0
      %1507 = vmatprep.subr.mxu0 0.0
      %1508 = vmatpush1.msra.mxu0 0.0
      %1509 = vmatprep.subr.mxu0 0.0
      %1510 = vmatpush1.msra.mxu0 0.0
      %1511 = vmatprep.subr.mxu0 0.0
      %1512 = vmatpush1.msra.mxu0 0.0
      %1513 = vmatprep.subr.mxu0 0.0
      %1514 = vmatpush1.msra.mxu0 0.0
      %1515 = vmatprep.subr.mxu0 0.0
      %1516 = vmatpush1.msra.mxu0 0.0
      %1517 = vmatprep.subr.mxu0 0.0
      %1518 = vmatpush1.msra.mxu0 0.0
      %1519 = vmatprep.subr.mxu0 0.0
      %1520 = vmatpush1.msra.mxu0 0.0
      %1521 = vmatprep.subr.mxu0 0.0
      %1522 = vmatpush1.msra.mxu0 0.0
      %1523 = vmatprep.subr.mxu0 0.0
      %1524 = vmatpush1.msra.mxu0 0.0
      %1525 = vmatprep.subr.mxu0 0.0
      %1526 = vmatpush1.msra.mxu0 0.0
      %1527 = vmatprep.subr.mxu0 0.0
      %1528 = vmatpush1.msra.mxu0 0.0
      %1529 = vmatprep.subr.mxu0 0.0
      %1530 = vmatpush1.msra.mxu0 0.0
      %1531 = vmatprep.subr.mxu0 0.0
      %1532 = vmatpush1.msra.mxu0 0.0
      %1533 = vmatprep.subr.mxu0 0.0
      %1534 = vmatpush1.msra.mxu0 0.0
      %1535 = vmatprep.mubr.f32.mxu0 0.0
      %1536 = vmatmul.mubr.f32.gmra.mrb[0].mxu0 %v546
      %v1537 = vpop.f32.mrb[0].mxu0
      %v1538 = vadd.f32 %v542, %v1537
      %v1539 = vpop.f32.mrb[0].mxu0
      %v1540 = vadd.f32 %v542, %v1539
      %1541 = vdwg.mxu0
      %1542 = vmatprep.subr.mxu0 %v201
      %1543 = vmatpush1.msra.mxu0 %v200
      %1544 = vmatprep.subr.mxu0 %v262
      %1545 = vmatpush1.msra.mxu0 %v261
      %1546 = vmatprep.subr.mxu0 %v323
      %1547 = vmatpush1.msra.mxu0 %v322
      %1548 = vmatprep.subr.mxu0 %v384
      %1549 = vmatpush1.msra.mxu0 %v383
      %1550 = vmatprep.subr.mxu0 %v445
      %1551 = vmatpush1.msra.mxu0 %v444
      %1552 = vmatprep.subr.mxu0 %v506
      %1553 = vmatpush1.msra.mxu0 %v505
      %1554 = vmatprep.subr.mxu0 0.0
      %1555 = vmatpush1.msra.mxu0 0.0
      %1556 = vmatprep.subr.mxu0 0.0
      %1557 = vmatpush1.msra.mxu0 0.0
      %1558 = vmatprep.subr.mxu0 0.0
      %1559 = vmatpush1.msra.mxu0 0.0
      %1560 = vmatprep.subr.mxu0 0.0
      %1561 = vmatpush1.msra.mxu0 0.0
      %1562 = vmatprep.subr.mxu0 0.0
      %1563 = vmatpush1.msra.mxu0 0.0
      %1564 = vmatprep.subr.mxu0 0.0
      %1565 = vmatpush1.msra.mxu0 0.0
      %1566 = vmatprep.subr.mxu0 0.0
      %1567 = vmatpush1.msra.mxu0 0.0
      %1568 = vmatprep.subr.mxu0 0.0
      %1569 = vmatpush1.msra.mxu0 0.0
      %1570 = vmatprep.subr.mxu0 0.0
      %1571 = vmatpush1.msra.mxu0 0.0
      %1572 = vmatprep.subr.mxu0 0.0
      %1573 = vmatpush1.msra.mxu0 0.0
      %1574 = vmatprep.subr.mxu0 0.0
      %1575 = vmatpush1.msra.mxu0 0.0
      %1576 = vmatprep.subr.mxu0 0.0
      %1577 = vmatpush1.msra.mxu0 0.0
      %1578 = vmatprep.subr.mxu0 0.0
      %1579 = vmatpush1.msra.mxu0 0.0
      %1580 = vmatprep.subr.mxu0 0.0
      %1581 = vmatpush1.msra.mxu0 0.0
      %1582 = vmatprep.subr.mxu0 0.0
      %1583 = vmatpush1.msra.mxu0 0.0
      %1584 = vmatprep.subr.mxu0 0.0
      %1585 = vmatpush1.msra.mxu0 0.0
      %1586 = vmatprep.subr.mxu0 0.0
      %1587 = vmatpush1.msra.mxu0 0.0
      %1588 = vmatprep.subr.mxu0 0.0
      %1589 = vmatpush1.msra.mxu0 0.0
      %1590 = vmatprep.subr.mxu0 0.0
      %1591 = vmatpush1.msra.mxu0 0.0
      %1592 = vmatprep.subr.mxu0 0.0
      %1593 = vmatpush1.msra.mxu0 0.0
      %1594 = vmatprep.subr.mxu0 0.0
      %1595 = vmatpush1.msra.mxu0 0.0
      %1596 = vmatprep.subr.mxu0 0.0
      %1597 = vmatpush1.msra.mxu0 0.0
      %1598 = vmatprep.subr.mxu0 0.0
      %1599 = vmatpush1.msra.mxu0 0.0
      %1600 = vmatprep.subr.mxu0 0.0
      %1601 = vmatpush1.msra.mxu0 0.0
      %1602 = vmatprep.subr.mxu0 0.0
      %1603 = vmatpush1.msra.mxu0 0.0
      %1604 = vmatprep.subr.mxu0 0.0
      %1605 = vmatpush1.msra.mxu0 0.0
      %1606 = vmatprep.mubr.f32.mxu0 0.0
      %1607 = vmatmul.mubr.f32.gmra.mrb[0].mxu0 %v546
      %v1608 = vpop.f32.mrb[0].mxu0
      %v1609 = vadd.f32 %v542, %v1608
      %v1610 = vpop.f32.mrb[0].mxu0
      %v1611 = vadd.f32 %v542, %v1610
      %1612 = vdwg.mxu0
      %1613 = vmatprep.subr.mxu0 %v203
      %1614 = vmatpush1.msra.mxu0 %v202
      %1615 = vmatprep.subr.mxu0 %v264
      %1616 = vmatpush1.msra.mxu0 %v263
      %1617 = vmatprep.subr.mxu0 %v325
      %1618 = vmatpush1.msra.mxu0 %v324
      %1619 = vmatprep.subr.mxu0 %v386
      %1620 = vmatpush1.msra.mxu0 %v385
      %1621 = vmatprep.subr.mxu0 %v447
      %1622 = vmatpush1.msra.mxu0 %v446
      %1623 = vmatprep.subr.mxu0 %v508
      %1624 = vmatpush1.msra.mxu0 %v507
      %1625 = vmatprep.subr.mxu0 0.0
      %1626 = vmatpush1.msra.mxu0 0.0
      %1627 = vmatprep.subr.mxu0 0.0
      %1628 = vmatpush1.msra.mxu0 0.0
      %1629 = vmatprep.subr.mxu0 0.0
      %1630 = vmatpush1.msra.mxu0 0.0
      %1631 = vmatprep.subr.mxu0 0.0
      %1632 = vmatpush1.msra.mxu0 0.0
      %1633 = vmatprep.subr.mxu0 0.0
      %1634 = vmatpush1.msra.mxu0 0.0
      %1635 = vmatprep.subr.mxu0 0.0
      %1636 = vmatpush1.msra.mxu0 0.0
      %1637 = vmatprep.subr.mxu0 0.0
      %1638 = vmatpush1.msra.mxu0 0.0
      %1639 = vmatprep.subr.mxu0 0.0
      %1640 = vmatpush1.msra.mxu0 0.0
      %1641 = vmatprep.subr.mxu0 0.0
      %1642 = vmatpush1.msra.mxu0 0.0
      %1643 = vmatprep.subr.mxu0 0.0
      %1644 = vmatpush1.msra.mxu0 0.0
      %1645 = vmatprep.subr.mxu0 0.0
      %1646 = vmatpush1.msra.mxu0 0.0
      %1647 = vmatprep.subr.mxu0 0.0
      %1648 = vmatpush1.msra.mxu0 0.0
      %1649 = vmatprep.subr.mxu0 0.0
      %1650 = vmatpush1.msra.mxu0 0.0
      %1651 = vmatprep.subr.mxu0 0.0
      %1652 = vmatpush1.msra.mxu0 0.0
      %1653 = vmatprep.subr.mxu0 0.0
      %1654 = vmatpush1.msra.mxu0 0.0
      %1655 = vmatprep.subr.mxu0 0.0
      %1656 = vmatpush1.msra.mxu0 0.0
      %1657 = vmatprep.subr.mxu0 0.0
      %1658 = vmatpush1.msra.mxu0 0.0
      %1659 = vmatprep.subr.mxu0 0.0
      %1660 = vmatpush1.msra.mxu0 0.0
      %1661 = vmatprep.subr.mxu0 0.0
      %1662 = vmatpush1.msra.mxu0 0.0
      %1663 = vmatprep.subr.mxu0 0.0
      %1664 = vmatpush1.msra.mxu0 0.0
      %1665 = vmatprep.subr.mxu0 0.0
      %1666 = vmatpush1.msra.mxu0 0.0
      %1667 = vmatprep.subr.mxu0 0.0
      %1668 = vmatpush1.msra.mxu0 0.0
      %1669 = vmatprep.subr.mxu0 0.0
      %1670 = vmatpush1.msra.mxu0 0.0
      %1671 = vmatprep.subr.mxu0 0.0
      %1672 = vmatpush1.msra.mxu0 0.0
      %1673 = vmatprep.subr.mxu0 0.0
      %1674 = vmatpush1.msra.mxu0 0.0
      %1675 = vmatprep.subr.mxu0 0.0
      %1676 = vmatpush1.msra.mxu0 0.0
      %1677 = vmatprep.mubr.f32.mxu0 0.0
      %1678 = vmatmul.mubr.f32.gmra.mrb[0].mxu0 %v546
      %v1679 = vpop.f32.mrb[0].mxu0
      %v1680 = vadd.f32 %v542, %v1679
      %v1681 = vpop.f32.mrb[0].mxu0
      %v1682 = vadd.f32 %v542, %v1681
      %1683 = vdwg.mxu0
      %1684 = vmatprep.subr.mxu0 %v205
      %1685 = vmatpush1.msra.mxu0 %v204
      %1686 = vmatprep.subr.mxu0 %v266
      %1687 = vmatpush1.msra.mxu0 %v265
      %1688 = vmatprep.subr.mxu0 %v327
      %1689 = vmatpush1.msra.mxu0 %v326
      %1690 = vmatprep.subr.mxu0 %v388
      %1691 = vmatpush1.msra.mxu0 %v387
      %1692 = vmatprep.subr.mxu0 %v449
      %1693 = vmatpush1.msra.mxu0 %v448
      %1694 = vmatprep.subr.mxu0 %v510
      %1695 = vmatpush1.msra.mxu0 %v509
      %1696 = vmatprep.subr.mxu0 0.0
      %1697 = vmatpush1.msra.mxu0 0.0
      %1698 = vmatprep.subr.mxu0 0.0
      %1699 = vmatpush1.msra.mxu0 0.0
      %1700 = vmatprep.subr.mxu0 0.0
      %1701 = vmatpush1.msra.mxu0 0.0
      %1702 = vmatprep.subr.mxu0 0.0
      %1703 = vmatpush1.msra.mxu0 0.0
      %1704 = vmatprep.subr.mxu0 0.0
      %1705 = vmatpush1.msra.mxu0 0.0
      %1706 = vmatprep.subr.mxu0 0.0
      %1707 = vmatpush1.msra.mxu0 0.0
      %1708 = vmatprep.subr.mxu0 0.0
      %1709 = vmatpush1.msra.mxu0 0.0
      %1710 = vmatprep.subr.mxu0 0.0
      %1711 = vmatpush1.msra.mxu0 0.0
      %1712 = vmatprep.subr.mxu0 0.0
      %1713 = vmatpush1.msra.mxu0 0.0
      %1714 = vmatprep.subr.mxu0 0.0
      %1715 = vmatpush1.msra.mxu0 0.0
      %1716 = vmatprep.subr.mxu0 0.0
      %1717 = vmatpush1.msra.mxu0 0.0
      %1718 = vmatprep.subr.mxu0 0.0
      %1719 = vmatpush1.msra.mxu0 0.0
      %1720 = vmatprep.subr.mxu0 0.0
      %1721 = vmatpush1.msra.mxu0 0.0
      %1722 = vmatprep.subr.mxu0 0.0
      %1723 = vmatpush1.msra.mxu0 0.0
      %1724 = vmatprep.subr.mxu0 0.0
      %1725 = vmatpush1.msra.mxu0 0.0
      %1726 = vmatprep.subr.mxu0 0.0
      %1727 = vmatpush1.msra.mxu0 0.0
      %1728 = vmatprep.subr.mxu0 0.0
      %1729 = vmatpush1.msra.mxu0 0.0
      %1730 = vmatprep.subr.mxu0 0.0
      %1731 = vmatpush1.msra.mxu0 0.0
      %1732 = vmatprep.subr.mxu0 0.0
      %1733 = vmatpush1.msra.mxu0 0.0
      %1734 = vmatprep.subr.mxu0 0.0
      %1735 = vmatpush1.msra.mxu0 0.0
      %1736 = vmatprep.subr.mxu0 0.0
      %1737 = vmatpush1.msra.mxu0 0.0
      %1738 = vmatprep.subr.mxu0 0.0
      %1739 = vmatpush1.msra.mxu0 0.0
      %1740 = vmatprep.subr.mxu0 0.0
      %1741 = vmatpush1.msra.mxu0 0.0
      %1742 = vmatprep.subr.mxu0 0.0
      %1743 = vmatpush1.msra.mxu0 0.0
      %1744 = vmatprep.subr.mxu0 0.0
      %1745 = vmatpush1.msra.mxu0 0.0
      %1746 = vmatprep.subr.mxu0 0.0
      %1747 = vmatpush1.msra.mxu0 0.0
      %1748 = vmatprep.mubr.f32.mxu0 0.0
      %1749 = vmatmul.mubr.f32.gmra.mrb[0].mxu0 %v546
      %v1750 = vpop.f32.mrb[0].mxu0
      %v1751 = vadd.f32 %v542, %v1750
      %v1752 = vpop.f32.mrb[0].mxu0
      %v1753 = vadd.f32 %v542, %v1752
      %1754 = vdwg.mxu0
      %1755 = vmatprep.subr.mxu0 %v207
      %1756 = vmatpush1.msra.mxu0 %v206
      %1757 = vmatprep.subr.mxu0 %v268
      %1758 = vmatpush1.msra.mxu0 %v267
      %1759 = vmatprep.subr.mxu0 %v329
      %1760 = vmatpush1.msra.mxu0 %v328
      %1761 = vmatprep.subr.mxu0 %v390
      %1762 = vmatpush1.msra.mxu0 %v389
      %1763 = vmatprep.subr.mxu0 %v451
      %1764 = vmatpush1.msra.mxu0 %v450
      %1765 = vmatprep.subr.mxu0 %v512
      %1766 = vmatpush1.msra.mxu0 %v511
      %1767 = vmatprep.subr.mxu0 0.0
      %1768 = vmatpush1.msra.mxu0 0.0
      %1769 = vmatprep.subr.mxu0 0.0
      %1770 = vmatpush1.msra.mxu0 0.0
      %1771 = vmatprep.subr.mxu0 0.0
      %1772 = vmatpush1.msra.mxu0 0.0
      %1773 = vmatprep.subr.mxu0 0.0
      %1774 = vmatpush1.msra.mxu0 0.0
      %1775 = vmatprep.subr.mxu0 0.0
      %1776 = vmatpush1.msra.mxu0 0.0
      %1777 = vmatprep.subr.mxu0 0.0
      %1778 = vmatpush1.msra.mxu0 0.0
      %1779 = vmatprep.subr.mxu0 0.0
      %1780 = vmatpush1.msra.mxu0 0.0
      %1781 = vmatprep.subr.mxu0 0.0
      %1782 = vmatpush1.msra.mxu0 0.0
      %1783 = vmatprep.subr.mxu0 0.0
      %1784 = vmatpush1.msra.mxu0 0.0
      %1785 = vmatprep.subr.mxu0 0.0
      %1786 = vmatpush1.msra.mxu0 0.0
      %1787 = vmatprep.subr.mxu0 0.0
      %1788 = vmatpush1.msra.mxu0 0.0
      %1789 = vmatprep.subr.mxu0 0.0
      %1790 = vmatpush1.msra.mxu0 0.0
      %1791 = vmatprep.subr.mxu0 0.0
      %1792 = vmatpush1.msra.mxu0 0.0
      %1793 = vmatprep.subr.mxu0 0.0
      %1794 = vmatpush1.msra.mxu0 0.0
      %1795 = vmatprep.subr.mxu0 0.0
      %1796 = vmatpush1.msra.mxu0 0.0
      %1797 = vmatprep.subr.mxu0 0.0
      %1798 = vmatpush1.msra.mxu0 0.0
      %1799 = vmatprep.subr.mxu0 0.0
      %1800 = vmatpush1.msra.mxu0 0.0
      %1801 = vmatprep.subr.mxu0 0.0
      %1802 = vmatpush1.msra.mxu0 0.0
      %1803 = vmatprep.subr.mxu0 0.0
      %1804 = vmatpush1.msra.mxu0 0.0
      %1805 = vmatprep.subr.mxu0 0.0
      %1806 = vmatpush1.msra.mxu0 0.0
      %1807 = vmatprep.subr.mxu0 0.0
      %1808 = vmatpush1.msra.mxu0 0.0
      %1809 = vmatprep.subr.mxu0 0.0
      %1810 = vmatpush1.msra.mxu0 0.0
      %1811 = vmatprep.subr.mxu0 0.0
      %1812 = vmatpush1.msra.mxu0 0.0
      %1813 = vmatprep.subr.mxu0 0.0
      %1814 = vmatpush1.msra.mxu0 0.0
      %1815 = vmatprep.subr.mxu0 0.0
      %1816 = vmatpush1.msra.mxu0 0.0
      %1817 = vmatprep.subr.mxu0 0.0
      %1818 = vmatpush1.msra.mxu0 0.0
      %1819 = vmatprep.mubr.f32.mxu0 0.0
      %1820 = vmatmul.mubr.f32.gmra.mrb[0].mxu0 %v546
      %v1821 = vpop.f32.mrb[0].mxu0
      %v1822 = vadd.f32 %v542, %v1821
      %v1823 = vpop.f32.mrb[0].mxu0
      %v1824 = vadd.f32 %v542, %v1823
      %1825 = vdwg.mxu0
      %1826 = vmatprep.subr.mxu0 %v209
      %1827 = vmatpush1.msra.mxu0 %v208
      %1828 = vmatprep.subr.mxu0 %v270
      %1829 = vmatpush1.msra.mxu0 %v269
      %1830 = vmatprep.subr.mxu0 %v331
      %1831 = vmatpush1.msra.mxu0 %v330
      %1832 = vmatprep.subr.mxu0 %v392
      %1833 = vmatpush1.msra.mxu0 %v391
      %1834 = vmatprep.subr.mxu0 %v453
      %1835 = vmatpush1.msra.mxu0 %v452
      %1836 = vmatprep.subr.mxu0 %v514
      %1837 = vmatpush1.msra.mxu0 %v513
      %1838 = vmatprep.subr.mxu0 0.0
      %1839 = vmatpush1.msra.mxu0 0.0
      %1840 = vmatprep.subr.mxu0 0.0
      %1841 = vmatpush1.msra.mxu0 0.0
      %1842 = vmatprep.subr.mxu0 0.0
      %1843 = vmatpush1.msra.mxu0 0.0
      %1844 = vmatprep.subr.mxu0 0.0
      %1845 = vmatpush1.msra.mxu0 0.0
      %1846 = vmatprep.subr.mxu0 0.0
      %1847 = vmatpush1.msra.mxu0 0.0
      %1848 = vmatprep.subr.mxu0 0.0
      %1849 = vmatpush1.msra.mxu0 0.0
      %1850 = vmatprep.subr.mxu0 0.0
      %1851 = vmatpush1.msra.mxu0 0.0
      %1852 = vmatprep.subr.mxu0 0.0
      %1853 = vmatpush1.msra.mxu0 0.0
      %1854 = vmatprep.subr.mxu0 0.0
      %1855 = vmatpush1.msra.mxu0 0.0
      %1856 = vmatprep.subr.mxu0 0.0
      %1857 = vmatpush1.msra.mxu0 0.0
      %1858 = vmatprep.subr.mxu0 0.0
      %1859 = vmatpush1.msra.mxu0 0.0
      %1860 = vmatprep.subr.mxu0 0.0
      %1861 = vmatpush1.msra.mxu0 0.0
      %1862 = vmatprep.subr.mxu0 0.0
      %1863 = vmatpush1.msra.mxu0 0.0
      %1864 = vmatprep.subr.mxu0 0.0
      %1865 = vmatpush1.msra.mxu0 0.0
      %1866 = vmatprep.subr.mxu0 0.0
      %1867 = vmatpush1.msra.mxu0 0.0
      %1868 = vmatprep.subr.mxu0 0.0
      %1869 = vmatpush1.msra.mxu0 0.0
      %1870 = vmatprep.subr.mxu0 0.0
      %1871 = vmatpush1.msra.mxu0 0.0
      %1872 = vmatprep.subr.mxu0 0.0
      %1873 = vmatpush1.msra.mxu0 0.0
      %1874 = vmatprep.subr.mxu0 0.0
      %1875 = vmatpush1.msra.mxu0 0.0
      %1876 = vmatprep.subr.mxu0 0.0
      %1877 = vmatpush1.msra.mxu0 0.0
      %1878 = vmatprep.subr.mxu0 0.0
      %1879 = vmatpush1.msra.mxu0 0.0
      %1880 = vmatprep.subr.mxu0 0.0
      %1881 = vmatpush1.msra.mxu0 0.0
      %1882 = vmatprep.subr.mxu0 0.0
      %1883 = vmatpush1.msra.mxu0 0.0
      %1884 = vmatprep.subr.mxu0 0.0
      %1885 = vmatpush1.msra.mxu0 0.0
      %1886 = vmatprep.subr.mxu0 0.0
      %1887 = vmatpush1.msra.mxu0 0.0
      %1888 = vmatprep.subr.mxu0 0.0
      %1889 = vmatpush1.msra.mxu0 0.0
      %1890 = vmatprep.mubr.f32.mxu0 0.0
      %1891 = vmatmul.mubr.f32.gmra.mrb[0].mxu0 %v546
      %v1892 = vpop.f32.mrb[0].mxu0
      %v1893 = vadd.f32 %v542, %v1892
      %v1894 = vpop.f32.mrb[0].mxu0
      %v1895 = vadd.f32 %v542, %v1894
      %1896 = vdwg.mxu0
      %1897 = vmatprep.subr.mxu0 %v211
      %1898 = vmatpush1.msra.mxu0 %v210
      %1899 = vmatprep.subr.mxu0 %v272
      %1900 = vmatpush1.msra.mxu0 %v271
      %1901 = vmatprep.subr.mxu0 %v333
      %1902 = vmatpush1.msra.mxu0 %v332
      %1903 = vmatprep.subr.mxu0 %v394
      %1904 = vmatpush1.msra.mxu0 %v393
      %1905 = vmatprep.subr.mxu0 %v455
      %1906 = vmatpush1.msra.mxu0 %v454
      %1907 = vmatprep.subr.mxu0 %v516
      %1908 = vmatpush1.msra.mxu0 %v515
      %1909 = vmatprep.subr.mxu0 0.0
      %1910 = vmatpush1.msra.mxu0 0.0
      %1911 = vmatprep.subr.mxu0 0.0
      %1912 = vmatpush1.msra.mxu0 0.0
      %1913 = vmatprep.subr.mxu0 0.0
      %1914 = vmatpush1.msra.mxu0 0.0
      %1915 = vmatprep.subr.mxu0 0.0
      %1916 = vmatpush1.msra.mxu0 0.0
      %1917 = vmatprep.subr.mxu0 0.0
      %1918 = vmatpush1.msra.mxu0 0.0
      %1919 = vmatprep.subr.mxu0 0.0
      %1920 = vmatpush1.msra.mxu0 0.0
      %1921 = vmatprep.subr.mxu0 0.0
      %1922 = vmatpush1.msra.mxu0 0.0
      %1923 = vmatprep.subr.mxu0 0.0
      %1924 = vmatpush1.msra.mxu0 0.0
      %1925 = vmatprep.subr.mxu0 0.0
      %1926 = vmatpush1.msra.mxu0 0.0
      %1927 = vmatprep.subr.mxu0 0.0
      %1928 = vmatpush1.msra.mxu0 0.0
      %1929 = vmatprep.subr.mxu0 0.0
      %1930 = vmatpush1.msra.mxu0 0.0
      %1931 = vmatprep.subr.mxu0 0.0
      %1932 = vmatpush1.msra.mxu0 0.0
      %1933 = vmatprep.subr.mxu0 0.0
      %1934 = vmatpush1.msra.mxu0 0.0
      %1935 = vmatprep.subr.mxu0 0.0
      %1936 = vmatpush1.msra.mxu0 0.0
      %1937 = vmatprep.subr.mxu0 0.0
      %1938 = vmatpush1.msra.mxu0 0.0
      %1939 = vmatprep.subr.mxu0 0.0
      %1940 = vmatpush1.msra.mxu0 0.0
      %1941 = vmatprep.subr.mxu0 0.0
      %1942 = vmatpush1.msra.mxu0 0.0
      %1943 = vmatprep.subr.mxu0 0.0
      %1944 = vmatpush1.msra.mxu0 0.0
      %1945 = vmatprep.subr.mxu0 0.0
      %1946 = vmatpush1.msra.mxu0 0.0
      %1947 = vmatprep.subr.mxu0 0.0
      %1948 = vmatpush1.msra.mxu0 0.0
      %1949 = vmatprep.subr.mxu0 0.0
      %1950 = vmatpush1.msra.mxu0 0.0
      %1951 = vmatprep.subr.mxu0 0.0
      %1952 = vmatpush1.msra.mxu0 0.0
      %1953 = vmatprep.subr.mxu0 0.0
      %1954 = vmatpush1.msra.mxu0 0.0
      %1955 = vmatprep.subr.mxu0 0.0
      %1956 = vmatpush1.msra.mxu0 0.0
      %1957 = vmatprep.subr.mxu0 0.0
      %1958 = vmatpush1.msra.mxu0 0.0
      %1959 = vmatprep.subr.mxu0 0.0
      %1960 = vmatpush1.msra.mxu0 0.0
      %1961 = vmatprep.mubr.f32.mxu0 0.0
      %1962 = vmatmul.mubr.f32.gmra.mrb[0].mxu0 %v546
      %v1963 = vpop.f32.mrb[0].mxu0
      %v1964 = vadd.f32 %v542, %v1963
      %v1965 = vpop.f32.mrb[0].mxu0
      %v1966 = vadd.f32 %v542, %v1965
      %1967 = vdwg.mxu0
      %1968 = vmatprep.subr.mxu0 %v213
      %1969 = vmatpush1.msra.mxu0 %v212
      %1970 = vmatprep.subr.mxu0 %v274
      %1971 = vmatpush1.msra.mxu0 %v273
      %1972 = vmatprep.subr.mxu0 %v335
      %1973 = vmatpush1.msra.mxu0 %v334
      %1974 = vmatprep.subr.mxu0 %v396
      %1975 = vmatpush1.msra.mxu0 %v395
      %1976 = vmatprep.subr.mxu0 %v457
      %1977 = vmatpush1.msra.mxu0 %v456
      %1978 = vmatprep.subr.mxu0 %v518
      %1979 = vmatpush1.msra.mxu0 %v517
      %1980 = vmatprep.subr.mxu0 0.0
      %1981 = vmatpush1.msra.mxu0 0.0
      %1982 = vmatprep.subr.mxu0 0.0
      %1983 = vmatpush1.msra.mxu0 0.0
      %1984 = vmatprep.subr.mxu0 0.0
      %1985 = vmatpush1.msra.mxu0 0.0
      %1986 = vmatprep.subr.mxu0 0.0
      %1987 = vmatpush1.msra.mxu0 0.0
      %1988 = vmatprep.subr.mxu0 0.0
      %1989 = vmatpush1.msra.mxu0 0.0
      %1990 = vmatprep.subr.mxu0 0.0
      %1991 = vmatpush1.msra.mxu0 0.0
      %1992 = vmatprep.subr.mxu0 0.0
      %1993 = vmatpush1.msra.mxu0 0.0
      %1994 = vmatprep.subr.mxu0 0.0
      %1995 = vmatpush1.msra.mxu0 0.0
      %1996 = vmatprep.subr.mxu0 0.0
      %1997 = vmatpush1.msra.mxu0 0.0
      %1998 = vmatprep.subr.mxu0 0.0
      %1999 = vmatpush1.msra.mxu0 0.0
      %2000 = vmatprep.subr.mxu0 0.0
      %2001 = vmatpush1.msra.mxu0 0.0
      %2002 = vmatprep.subr.mxu0 0.0
      %2003 = vmatpush1.msra.mxu0 0.0
      %2004 = vmatprep.subr.mxu0 0.0
      %2005 = vmatpush1.msra.mxu0 0.0
      %2006 = vmatprep.subr.mxu0 0.0
      %2007 = vmatpush1.msra.mxu0 0.0
      %2008 = vmatprep.subr.mxu0 0.0
      %2009 = vmatpush1.msra.mxu0 0.0
      %2010 = vmatprep.subr.mxu0 0.0
      %2011 = vmatpush1.msra.mxu0 0.0
      %2012 = vmatprep.subr.mxu0 0.0
      %2013 = vmatpush1.msra.mxu0 0.0
      %2014 = vmatprep.subr.mxu0 0.0
      %2015 = vmatpush1.msra.mxu0 0.0
      %2016 = vmatprep.subr.mxu0 0.0
      %2017 = vmatpush1.msra.mxu0 0.0
      %2018 = vmatprep.subr.mxu0 0.0
      %2019 = vmatpush1.msra.mxu0 0.0
      %2020 = vmatprep.subr.mxu0 0.0
      %2021 = vmatpush1.msra.mxu0 0.0
      %2022 = vmatprep.subr.mxu0 0.0
      %2023 = vmatpush1.msra.mxu0 0.0
      %2024 = vmatprep.subr.mxu0 0.0
      %2025 = vmatpush1.msra.mxu0 0.0
      %2026 = vmatprep.subr.mxu0 0.0
      %2027 = vmatpush1.msra.mxu0 0.0
      %2028 = vmatprep.subr.mxu0 0.0
      %2029 = vmatpush1.msra.mxu0 0.0
      %2030 = vmatprep.subr.mxu0 0.0
      %2031 = vmatpush1.msra.mxu0 0.0
      %2032 = vmatprep.mubr.f32.mxu0 0.0
      %2033 = vmatmul.mubr.f32.gmra.mrb[0].mxu0 %v546
      %v2034 = vpop.f32.mrb[0].mxu0
      %v2035 = vadd.f32 %v542, %v2034
      %v2036 = vpop.f32.mrb[0].mxu0
      %v2037 = vadd.f32 %v542, %v2036
      %2038 = vdwg.mxu0
      %2039 = vmatprep.subr.mxu0 %v215
      %2040 = vmatpush1.msra.mxu0 %v214
      %2041 = vmatprep.subr.mxu0 %v276
      %2042 = vmatpush1.msra.mxu0 %v275
      %2043 = vmatprep.subr.mxu0 %v337
      %2044 = vmatpush1.msra.mxu0 %v336
      %2045 = vmatprep.subr.mxu0 %v398
      %2046 = vmatpush1.msra.mxu0 %v397
      %2047 = vmatprep.subr.mxu0 %v459
      %2048 = vmatpush1.msra.mxu0 %v458
      %2049 = vmatprep.subr.mxu0 %v520
      %2050 = vmatpush1.msra.mxu0 %v519
      %2051 = vmatprep.subr.mxu0 0.0
      %2052 = vmatpush1.msra.mxu0 0.0
      %2053 = vmatprep.subr.mxu0 0.0
      %2054 = vmatpush1.msra.mxu0 0.0
      %2055 = vmatprep.subr.mxu0 0.0
      %2056 = vmatpush1.msra.mxu0 0.0
      %2057 = vmatprep.subr.mxu0 0.0
      %2058 = vmatpush1.msra.mxu0 0.0
      %2059 = vmatprep.subr.mxu0 0.0
      %2060 = vmatpush1.msra.mxu0 0.0
      %2061 = vmatprep.subr.mxu0 0.0
      %2062 = vmatpush1.msra.mxu0 0.0
      %2063 = vmatprep.subr.mxu0 0.0
      %2064 = vmatpush1.msra.mxu0 0.0
      %2065 = vmatprep.subr.mxu0 0.0
      %2066 = vmatpush1.msra.mxu0 0.0
      %2067 = vmatprep.subr.mxu0 0.0
      %2068 = vmatpush1.msra.mxu0 0.0
      %2069 = vmatprep.subr.mxu0 0.0
      %2070 = vmatpush1.msra.mxu0 0.0
      %2071 = vmatprep.subr.mxu0 0.0
      %2072 = vmatpush1.msra.mxu0 0.0
      %2073 = vmatprep.subr.mxu0 0.0
      %2074 = vmatpush1.msra.mxu0 0.0
      %2075 = vmatprep.subr.mxu0 0.0
      %2076 = vmatpush1.msra.mxu0 0.0
      %2077 = vmatprep.subr.mxu0 0.0
      %2078 = vmatpush1.msra.mxu0 0.0
      %2079 = vmatprep.subr.mxu0 0.0
      %2080 = vmatpush1.msra.mxu0 0.0
      %2081 = vmatprep.subr.mxu0 0.0
      %2082 = vmatpush1.msra.mxu0 0.0
      %2083 = vmatprep.subr.mxu0 0.0
      %2084 = vmatpush1.msra.mxu0 0.0
      %2085 = vmatprep.subr.mxu0 0.0
      %2086 = vmatpush1.msra.mxu0 0.0
      %2087 = vmatprep.subr.mxu0 0.0
      %2088 = vmatpush1.msra.mxu0 0.0
      %2089 = vmatprep.subr.mxu0 0.0
      %2090 = vmatpush1.msra.mxu0 0.0
      %2091 = vmatprep.subr.mxu0 0.0
      %2092 = vmatpush1.msra.mxu0 0.0
      %2093 = vmatprep.subr.mxu0 0.0
      %2094 = vmatpush1.msra.mxu0 0.0
      %2095 = vmatprep.subr.mxu0 0.0
      %2096 = vmatpush1.msra.mxu0 0.0
      %2097 = vmatprep.subr.mxu0 0.0
      %2098 = vmatpush1.msra.mxu0 0.0
      %2099 = vmatprep.subr.mxu0 0.0
      %2100 = vmatpush1.msra.mxu0 0.0
      %2101 = vmatprep.subr.mxu0 0.0
      %2102 = vmatpush1.msra.mxu0 0.0
      %2103 = vmatprep.mubr.f32.mxu0 0.0
      %2104 = vmatmul.mubr.f32.gmra.mrb[0].mxu0 %v546
      %v2105 = vpop.f32.mrb[0].mxu0
      %v2106 = vadd.f32 %v542, %v2105
      %v2107 = vpop.f32.mrb[0].mxu0
      %v2108 = vadd.f32 %v542, %v2107
      %2109 = vdwg.mxu0
      %2110 = vmatprep.subr.mxu0 %v217
      %2111 = vmatpush1.msra.mxu0 %v216
      %2112 = vmatprep.subr.mxu0 %v278
      %2113 = vmatpush1.msra.mxu0 %v277
      %2114 = vmatprep.subr.mxu0 %v339
      %2115 = vmatpush1.msra.mxu0 %v338
      %2116 = vmatprep.subr.mxu0 %v400
      %2117 = vmatpush1.msra.mxu0 %v399
      %2118 = vmatprep.subr.mxu0 %v461
      %2119 = vmatpush1.msra.mxu0 %v460
      %2120 = vmatprep.subr.mxu0 %v522
      %2121 = vmatpush1.msra.mxu0 %v521
      %2122 = vmatprep.subr.mxu0 0.0
      %2123 = vmatpush1.msra.mxu0 0.0
      %2124 = vmatprep.subr.mxu0 0.0
      %2125 = vmatpush1.msra.mxu0 0.0
      %2126 = vmatprep.subr.mxu0 0.0
      %2127 = vmatpush1.msra.mxu0 0.0
      %2128 = vmatprep.subr.mxu0 0.0
      %2129 = vmatpush1.msra.mxu0 0.0
      %2130 = vmatprep.subr.mxu0 0.0
      %2131 = vmatpush1.msra.mxu0 0.0
      %2132 = vmatprep.subr.mxu0 0.0
      %2133 = vmatpush1.msra.mxu0 0.0
      %2134 = vmatprep.subr.mxu0 0.0
      %2135 = vmatpush1.msra.mxu0 0.0
      %2136 = vmatprep.subr.mxu0 0.0
      %2137 = vmatpush1.msra.mxu0 0.0
      %2138 = vmatprep.subr.mxu0 0.0
      %2139 = vmatpush1.msra.mxu0 0.0
      %2140 = vmatprep.subr.mxu0 0.0
      %2141 = vmatpush1.msra.mxu0 0.0
      %2142 = vmatprep.subr.mxu0 0.0
      %2143 = vmatpush1.msra.mxu0 0.0
      %2144 = vmatprep.subr.mxu0 0.0
      %2145 = vmatpush1.msra.mxu0 0.0
      %2146 = vmatprep.subr.mxu0 0.0
      %2147 = vmatpush1.msra.mxu0 0.0
      %2148 = vmatprep.subr.mxu0 0.0
      %2149 = vmatpush1.msra.mxu0 0.0
      %2150 = vmatprep.subr.mxu0 0.0
      %2151 = vmatpush1.msra.mxu0 0.0
      %2152 = vmatprep.subr.mxu0 0.0
      %2153 = vmatpush1.msra.mxu0 0.0
      %2154 = vmatprep.subr.mxu0 0.0
      %2155 = vmatpush1.msra.mxu0 0.0
      %2156 = vmatprep.subr.mxu0 0.0
      %2157 = vmatpush1.msra.mxu0 0.0
      %2158 = vmatprep.subr.mxu0 0.0
      %2159 = vmatpush1.msra.mxu0 0.0
      %2160 = vmatprep.subr.mxu0 0.0
      %2161 = vmatpush1.msra.mxu0 0.0
      %2162 = vmatprep.subr.mxu0 0.0
      %2163 = vmatpush1.msra.mxu0 0.0
      %2164 = vmatprep.subr.mxu0 0.0
      %2165 = vmatpush1.msra.mxu0 0.0
      %2166 = vmatprep.subr.mxu0 0.0
      %2167 = vmatpush1.msra.mxu0 0.0
      %2168 = vmatprep.subr.mxu0 0.0
      %2169 = vmatpush1.msra.mxu0 0.0
      %2170 = vmatprep.subr.mxu0 0.0
      %2171 = vmatpush1.msra.mxu0 0.0
      %2172 = vmatprep.subr.mxu0 0.0
      %2173 = vmatpush1.msra.mxu0 0.0
      %2174 = vmatprep.mubr.f32.mxu0 0.0
      %2175 = vmatmul.mubr.f32.gmra.mrb[0].mxu0 %v546
      %v2176 = vpop.f32.mrb[0].mxu0
      %v2177 = vadd.f32 %v542, %v2176
      %v2178 = vpop.f32.mrb[0].mxu0
      %v2179 = vadd.f32 %v542, %v2178
      %2180 = vdwg.mxu0
      %2181 = vmatprep.subr.mxu0 %v219
      %2182 = vmatpush1.msra.mxu0 %v218
      %2183 = vmatprep.subr.mxu0 %v280
      %2184 = vmatpush1.msra.mxu0 %v279
      %2185 = vmatprep.subr.mxu0 %v341
      %2186 = vmatpush1.msra.mxu0 %v340
      %2187 = vmatprep.subr.mxu0 %v402
      %2188 = vmatpush1.msra.mxu0 %v401
      %2189 = vmatprep.subr.mxu0 %v463
      %2190 = vmatpush1.msra.mxu0 %v462
      %2191 = vmatprep.subr.mxu0 %v524
      %2192 = vmatpush1.msra.mxu0 %v523
      %2193 = vmatprep.subr.mxu0 0.0
      %2194 = vmatpush1.msra.mxu0 0.0
      %2195 = vmatprep.subr.mxu0 0.0
      %2196 = vmatpush1.msra.mxu0 0.0
      %2197 = vmatprep.subr.mxu0 0.0
      %2198 = vmatpush1.msra.mxu0 0.0
      %2199 = vmatprep.subr.mxu0 0.0
      %2200 = vmatpush1.msra.mxu0 0.0
      %2201 = vmatprep.subr.mxu0 0.0
      %2202 = vmatpush1.msra.mxu0 0.0
      %2203 = vmatprep.subr.mxu0 0.0
      %2204 = vmatpush1.msra.mxu0 0.0
      %2205 = vmatprep.subr.mxu0 0.0
      %2206 = vmatpush1.msra.mxu0 0.0
      %2207 = vmatprep.subr.mxu0 0.0
      %2208 = vmatpush1.msra.mxu0 0.0
      %2209 = vmatprep.subr.mxu0 0.0
      %2210 = vmatpush1.msra.mxu0 0.0
      %2211 = vmatprep.subr.mxu0 0.0
      %2212 = vmatpush1.msra.mxu0 0.0
      %2213 = vmatprep.subr.mxu0 0.0
      %2214 = vmatpush1.msra.mxu0 0.0
      %2215 = vmatprep.subr.mxu0 0.0
      %2216 = vmatpush1.msra.mxu0 0.0
      %2217 = vmatprep.subr.mxu0 0.0
      %2218 = vmatpush1.msra.mxu0 0.0
      %2219 = vmatprep.subr.mxu0 0.0
      %2220 = vmatpush1.msra.mxu0 0.0
      %2221 = vmatprep.subr.mxu0 0.0
      %2222 = vmatpush1.msra.mxu0 0.0
      %2223 = vmatprep.subr.mxu0 0.0
      %2224 = vmatpush1.msra.mxu0 0.0
      %2225 = vmatprep.subr.mxu0 0.0
      %2226 = vmatpush1.msra.mxu0 0.0
      %2227 = vmatprep.subr.mxu0 0.0
      %2228 = vmatpush1.msra.mxu0 0.0
      %2229 = vmatprep.subr.mxu0 0.0
      %2230 = vmatpush1.msra.mxu0 0.0
      %2231 = vmatprep.subr.mxu0 0.0
      %2232 = vmatpush1.msra.mxu0 0.0
      %2233 = vmatprep.subr.mxu0 0.0
      %2234 = vmatpush1.msra.mxu0 0.0
      %2235 = vmatprep.subr.mxu0 0.0
      %2236 = vmatpush1.msra.mxu0 0.0
      %2237 = vmatprep.subr.mxu0 0.0
      %2238 = vmatpush1.msra.mxu0 0.0
      %2239 = vmatprep.subr.mxu0 0.0
      %2240 = vmatpush1.msra.mxu0 0.0
      %2241 = vmatprep.subr.mxu0 0.0
      %2242 = vmatpush1.msra.mxu0 0.0
      %2243 = vmatprep.subr.mxu0 0.0
      %2244 = vmatpush1.msra.mxu0 0.0
      %2245 = vmatprep.mubr.f32.mxu0 0.0
      %2246 = vmatmul.mubr.f32.gmra.mrb[0].mxu0 %v546
      %v2247 = vpop.f32.mrb[0].mxu0
      %v2248 = vadd.f32 %v542, %v2247
      %v2249 = vpop.f32.mrb[0].mxu0
      %v2250 = vadd.f32 %v542, %v2249
      %2251 = vdwg.mxu0
      %2252 = vmatprep.subr.mxu0 %v221
      %2253 = vmatpush1.msra.mxu0 %v220
      %2254 = vmatprep.subr.mxu0 %v282
      %2255 = vmatpush1.msra.mxu0 %v281
      %2256 = vmatprep.subr.mxu0 %v343
      %2257 = vmatpush1.msra.mxu0 %v342
      %2258 = vmatprep.subr.mxu0 %v404
      %2259 = vmatpush1.msra.mxu0 %v403
      %2260 = vmatprep.subr.mxu0 %v465
      %2261 = vmatpush1.msra.mxu0 %v464
      %2262 = vmatprep.subr.mxu0 %v526
      %2263 = vmatpush1.msra.mxu0 %v525
      %2264 = vmatprep.subr.mxu0 0.0
      %2265 = vmatpush1.msra.mxu0 0.0
      %2266 = vmatprep.subr.mxu0 0.0
      %2267 = vmatpush1.msra.mxu0 0.0
      %2268 = vmatprep.subr.mxu0 0.0
      %2269 = vmatpush1.msra.mxu0 0.0
      %2270 = vmatprep.subr.mxu0 0.0
      %2271 = vmatpush1.msra.mxu0 0.0
      %2272 = vmatprep.subr.mxu0 0.0
      %2273 = vmatpush1.msra.mxu0 0.0
      %2274 = vmatprep.subr.mxu0 0.0
      %2275 = vmatpush1.msra.mxu0 0.0
      %2276 = vmatprep.subr.mxu0 0.0
      %2277 = vmatpush1.msra.mxu0 0.0
      %2278 = vmatprep.subr.mxu0 0.0
      %2279 = vmatpush1.msra.mxu0 0.0
      %2280 = vmatprep.subr.mxu0 0.0
      %2281 = vmatpush1.msra.mxu0 0.0
      %2282 = vmatprep.subr.mxu0 0.0
      %2283 = vmatpush1.msra.mxu0 0.0
      %2284 = vmatprep.subr.mxu0 0.0
      %2285 = vmatpush1.msra.mxu0 0.0
      %2286 = vmatprep.subr.mxu0 0.0
      %2287 = vmatpush1.msra.mxu0 0.0
      %2288 = vmatprep.subr.mxu0 0.0
      %2289 = vmatpush1.msra.mxu0 0.0
      %2290 = vmatprep.subr.mxu0 0.0
      %2291 = vmatpush1.msra.mxu0 0.0
      %2292 = vmatprep.subr.mxu0 0.0
      %2293 = vmatpush1.msra.mxu0 0.0
      %2294 = vmatprep.subr.mxu0 0.0
      %2295 = vmatpush1.msra.mxu0 0.0
      %2296 = vmatprep.subr.mxu0 0.0
      %2297 = vmatpush1.msra.mxu0 0.0
      %2298 = vmatprep.subr.mxu0 0.0
      %2299 = vmatpush1.msra.mxu0 0.0
      %2300 = vmatprep.subr.mxu0 0.0
      %2301 = vmatpush1.msra.mxu0 0.0
      %2302 = vmatprep.subr.mxu0 0.0
      %2303 = vmatpush1.msra.mxu0 0.0
      %2304 = vmatprep.subr.mxu0 0.0
      %2305 = vmatpush1.msra.mxu0 0.0
      %2306 = vmatprep.subr.mxu0 0.0
      %2307 = vmatpush1.msra.mxu0 0.0
      %2308 = vmatprep.subr.mxu0 0.0
      %2309 = vmatpush1.msra.mxu0 0.0
      %2310 = vmatprep.subr.mxu0 0.0
      %2311 = vmatpush1.msra.mxu0 0.0
      %2312 = vmatprep.subr.mxu0 0.0
      %2313 = vmatpush1.msra.mxu0 0.0
      %2314 = vmatprep.subr.mxu0 0.0
      %2315 = vmatpush1.msra.mxu0 0.0
      %2316 = vmatprep.mubr.f32.mxu0 0.0
      %2317 = vmatmul.mubr.f32.gmra.mrb[0].mxu0 %v546
      %v2318 = vpop.f32.mrb[0].mxu0
      %v2319 = vadd.f32 %v542, %v2318
      %v2320 = vpop.f32.mrb[0].mxu0
      %v2321 = vadd.f32 %v542, %v2320
      %2322 = vdwg.mxu0
      %2323 = vmatprep.subr.mxu0 %v223
      %2324 = vmatpush1.msra.mxu0 %v222
      %2325 = vmatprep.subr.mxu0 %v284
      %2326 = vmatpush1.msra.mxu0 %v283
      %2327 = vmatprep.subr.mxu0 %v345
      %2328 = vmatpush1.msra.mxu0 %v344
      %2329 = vmatprep.subr.mxu0 %v406
      %2330 = vmatpush1.msra.mxu0 %v405
      %2331 = vmatprep.subr.mxu0 %v467
      %2332 = vmatpush1.msra.mxu0 %v466
      %2333 = vmatprep.subr.mxu0 %v528
      %2334 = vmatpush1.msra.mxu0 %v527
      %2335 = vmatprep.subr.mxu0 0.0
      %2336 = vmatpush1.msra.mxu0 0.0
      %2337 = vmatprep.subr.mxu0 0.0
      %2338 = vmatpush1.msra.mxu0 0.0
      %2339 = vmatprep.subr.mxu0 0.0
      %2340 = vmatpush1.msra.mxu0 0.0
      %2341 = vmatprep.subr.mxu0 0.0
      %2342 = vmatpush1.msra.mxu0 0.0
      %2343 = vmatprep.subr.mxu0 0.0
      %2344 = vmatpush1.msra.mxu0 0.0
      %2345 = vmatprep.subr.mxu0 0.0
      %2346 = vmatpush1.msra.mxu0 0.0
      %2347 = vmatprep.subr.mxu0 0.0
      %2348 = vmatpush1.msra.mxu0 0.0
      %2349 = vmatprep.subr.mxu0 0.0
      %2350 = vmatpush1.msra.mxu0 0.0
      %2351 = vmatprep.subr.mxu0 0.0
      %2352 = vmatpush1.msra.mxu0 0.0
      %2353 = vmatprep.subr.mxu0 0.0
      %2354 = vmatpush1.msra.mxu0 0.0
      %2355 = vmatprep.subr.mxu0 0.0
      %2356 = vmatpush1.msra.mxu0 0.0
      %2357 = vmatprep.subr.mxu0 0.0
      %2358 = vmatpush1.msra.mxu0 0.0
      %2359 = vmatprep.subr.mxu0 0.0
      %2360 = vmatpush1.msra.mxu0 0.0
      %2361 = vmatprep.subr.mxu0 0.0
      %2362 = vmatpush1.msra.mxu0 0.0
      %2363 = vmatprep.subr.mxu0 0.0
      %2364 = vmatpush1.msra.mxu0 0.0
      %2365 = vmatprep.subr.mxu0 0.0
      %2366 = vmatpush1.msra.mxu0 0.0
      %2367 = vmatprep.subr.mxu0 0.0
      %2368 = vmatpush1.msra.mxu0 0.0
      %2369 = vmatprep.subr.mxu0 0.0
      %2370 = vmatpush1.msra.mxu0 0.0
      %2371 = vmatprep.subr.mxu0 0.0
      %2372 = vmatpush1.msra.mxu0 0.0
      %2373 = vmatprep.subr.mxu0 0.0
      %2374 = vmatpush1.msra.mxu0 0.0
      %2375 = vmatprep.subr.mxu0 0.0
      %2376 = vmatpush1.msra.mxu0 0.0
      %2377 = vmatprep.subr.mxu0 0.0
      %2378 = vmatpush1.msra.mxu0 0.0
      %2379 = vmatprep.subr.mxu0 0.0
      %2380 = vmatpush1.msra.mxu0 0.0
      %2381 = vmatprep.subr.mxu0 0.0
      %2382 = vmatpush1.msra.mxu0 0.0
      %2383 = vmatprep.subr.mxu0 0.0
      %2384 = vmatpush1.msra.mxu0 0.0
      %2385 = vmatprep.subr.mxu0 0.0
      %2386 = vmatpush1.msra.mxu0 0.0
      %2387 = vmatprep.mubr.f32.mxu0 0.0
      %2388 = vmatmul.mubr.f32.gmra.mrb[0].mxu0 %v546
      %v2389 = vpop.f32.mrb[0].mxu0
      %v2390 = vadd.f32 %v542, %v2389
      %v2391 = vpop.f32.mrb[0].mxu0
      %v2392 = vadd.f32 %v542, %v2391
      %2393 = vdwg.mxu0
      %2394 = vmatprep.subr.mxu0 %v225
      %2395 = vmatpush1.msra.mxu0 %v224
      %2396 = vmatprep.subr.mxu0 %v286
      %2397 = vmatpush1.msra.mxu0 %v285
      %2398 = vmatprep.subr.mxu0 %v347
      %2399 = vmatpush1.msra.mxu0 %v346
      %2400 = vmatprep.subr.mxu0 %v408
      %2401 = vmatpush1.msra.mxu0 %v407
      %2402 = vmatprep.subr.mxu0 %v469
      %2403 = vmatpush1.msra.mxu0 %v468
      %2404 = vmatprep.subr.mxu0 %v530
      %2405 = vmatpush1.msra.mxu0 %v529
      %2406 = vmatprep.subr.mxu0 0.0
      %2407 = vmatpush1.msra.mxu0 0.0
      %2408 = vmatprep.subr.mxu0 0.0
      %2409 = vmatpush1.msra.mxu0 0.0
      %2410 = vmatprep.subr.mxu0 0.0
      %2411 = vmatpush1.msra.mxu0 0.0
      %2412 = vmatprep.subr.mxu0 0.0
      %2413 = vmatpush1.msra.mxu0 0.0
      %2414 = vmatprep.subr.mxu0 0.0
      %2415 = vmatpush1.msra.mxu0 0.0
      %2416 = vmatprep.subr.mxu0 0.0
      %2417 = vmatpush1.msra.mxu0 0.0
      %2418 = vmatprep.subr.mxu0 0.0
      %2419 = vmatpush1.msra.mxu0 0.0
      %2420 = vmatprep.subr.mxu0 0.0
      %2421 = vmatpush1.msra.mxu0 0.0
      %2422 = vmatprep.subr.mxu0 0.0
      %2423 = vmatpush1.msra.mxu0 0.0
      %2424 = vmatprep.subr.mxu0 0.0
      %2425 = vmatpush1.msra.mxu0 0.0
      %2426 = vmatprep.subr.mxu0 0.0
      %2427 = vmatpush1.msra.mxu0 0.0
      %2428 = vmatprep.subr.mxu0 0.0
      %2429 = vmatpush1.msra.mxu0 0.0
      %2430 = vmatprep.subr.mxu0 0.0
      %2431 = vmatpush1.msra.mxu0 0.0
      %2432 = vmatprep.subr.mxu0 0.0
      %2433 = vmatpush1.msra.mxu0 0.0
      %2434 = vmatprep.subr.mxu0 0.0
      %2435 = vmatpush1.msra.mxu0 0.0
      %2436 = vmatprep.subr.mxu0 0.0
      %2437 = vmatpush1.msra.mxu0 0.0
      %2438 = vmatprep.subr.mxu0 0.0
      %2439 = vmatpush1.msra.mxu0 0.0
      %2440 = vmatprep.subr.mxu0 0.0
      %2441 = vmatpush1.msra.mxu0 0.0
      %2442 = vmatprep.subr.mxu0 0.0
      %2443 = vmatpush1.msra.mxu0 0.0
      %2444 = vmatprep.subr.mxu0 0.0
      %2445 = vmatpush1.msra.mxu0 0.0
      %2446 = vmatprep.subr.mxu0 0.0
      %2447 = vmatpush1.msra.mxu0 0.0
      %2448 = vmatprep.subr.mxu0 0.0
      %2449 = vmatpush1.msra.mxu0 0.0
      %2450 = vmatprep.subr.mxu0 0.0
      %2451 = vmatpush1.msra.mxu0 0.0
      %2452 = vmatprep.subr.mxu0 0.0
      %2453 = vmatpush1.msra.mxu0 0.0
      %2454 = vmatprep.subr.mxu0 0.0
      %2455 = vmatpush1.msra.mxu0 0.0
      %2456 = vmatprep.subr.mxu0 0.0
      %2457 = vmatpush1.msra.mxu0 0.0
      %2458 = vmatprep.mubr.f32.mxu0 0.0
      %2459 = vmatmul.mubr.f32.gmra.mrb[0].mxu0 %v546
      %v2460 = vpop.f32.mrb[0].mxu0
      %v2461 = vadd.f32 %v542, %v2460
      %v2462 = vpop.f32.mrb[0].mxu0
      %v2463 = vadd.f32 %v542, %v2462
      %2464 = vdwg.mxu0
      %2465 = vmatprep.subr.mxu0 %v227
      %2466 = vmatpush1.msra.mxu0 %v226
      %2467 = vmatprep.subr.mxu0 %v288
      %2468 = vmatpush1.msra.mxu0 %v287
      %2469 = vmatprep.subr.mxu0 %v349
      %2470 = vmatpush1.msra.mxu0 %v348
      %2471 = vmatprep.subr.mxu0 %v410
      %2472 = vmatpush1.msra.mxu0 %v409
      %2473 = vmatprep.subr.mxu0 %v471
      %2474 = vmatpush1.msra.mxu0 %v470
      %2475 = vmatprep.subr.mxu0 %v532
      %2476 = vmatpush1.msra.mxu0 %v531
      %2477 = vmatprep.subr.mxu0 0.0
      %2478 = vmatpush1.msra.mxu0 0.0
      %2479 = vmatprep.subr.mxu0 0.0
      %2480 = vmatpush1.msra.mxu0 0.0
      %2481 = vmatprep.subr.mxu0 0.0
      %2482 = vmatpush1.msra.mxu0 0.0
      %2483 = vmatprep.subr.mxu0 0.0
      %2484 = vmatpush1.msra.mxu0 0.0
      %2485 = vmatprep.subr.mxu0 0.0
      %2486 = vmatpush1.msra.mxu0 0.0
      %2487 = vmatprep.subr.mxu0 0.0
      %2488 = vmatpush1.msra.mxu0 0.0
      %2489 = vmatprep.subr.mxu0 0.0
      %2490 = vmatpush1.msra.mxu0 0.0
      %2491 = vmatprep.subr.mxu0 0.0
      %2492 = vmatpush1.msra.mxu0 0.0
      %2493 = vmatprep.subr.mxu0 0.0
      %2494 = vmatpush1.msra.mxu0 0.0
      %2495 = vmatprep.subr.mxu0 0.0
      %2496 = vmatpush1.msra.mxu0 0.0
      %2497 = vmatprep.subr.mxu0 0.0
      %2498 = vmatpush1.msra.mxu0 0.0
      %2499 = vmatprep.subr.mxu0 0.0
      %2500 = vmatpush1.msra.mxu0 0.0
      %2501 = vmatprep.subr.mxu0 0.0
      %2502 = vmatpush1.msra.mxu0 0.0
      %2503 = vmatprep.subr.mxu0 0.0
      %2504 = vmatpush1.msra.mxu0 0.0
      %2505 = vmatprep.subr.mxu0 0.0
      %2506 = vmatpush1.msra.mxu0 0.0
      %2507 = vmatprep.subr.mxu0 0.0
      %2508 = vmatpush1.msra.mxu0 0.0
      %2509 = vmatprep.subr.mxu0 0.0
      %2510 = vmatpush1.msra.mxu0 0.0
      %2511 = vmatprep.subr.mxu0 0.0
      %2512 = vmatpush1.msra.mxu0 0.0
      %2513 = vmatprep.subr.mxu0 0.0
      %2514 = vmatpush1.msra.mxu0 0.0
      %2515 = vmatprep.subr.mxu0 0.0
      %2516 = vmatpush1.msra.mxu0 0.0
      %2517 = vmatprep.subr.mxu0 0.0
      %2518 = vmatpush1.msra.mxu0 0.0
      %2519 = vmatprep.subr.mxu0 0.0
      %2520 = vmatpush1.msra.mxu0 0.0
      %2521 = vmatprep.subr.mxu0 0.0
      %2522 = vmatpush1.msra.mxu0 0.0
      %2523 = vmatprep.subr.mxu0 0.0
      %2524 = vmatpush1.msra.mxu0 0.0
      %2525 = vmatprep.subr.mxu0 0.0
      %2526 = vmatpush1.msra.mxu0 0.0
      %2527 = vmatprep.subr.mxu0 0.0
      %2528 = vmatpush1.msra.mxu0 0.0
      %2529 = vmatprep.mubr.f32.mxu0 0.0
      %2530 = vmatmul.mubr.f32.gmra.mrb[0].mxu0 %v546
      %v2531 = vpop.f32.mrb[0].mxu0
      %v2532 = vadd.f32 %v542, %v2531
      %v2533 = vpop.f32.mrb[0].mxu0
      %v2534 = vadd.f32 %v542, %v2533
      %2535 = vdwg.mxu0
      %2536 = vmatprep.subr.mxu0 %v229
      %2537 = vmatpush1.msra.mxu0 %v228
      %2538 = vmatprep.subr.mxu0 %v290
      %2539 = vmatpush1.msra.mxu0 %v289
      %2540 = vmatprep.subr.mxu0 %v351
      %2541 = vmatpush1.msra.mxu0 %v350
      %2542 = vmatprep.subr.mxu0 %v412
      %2543 = vmatpush1.msra.mxu0 %v411
      %2544 = vmatprep.subr.mxu0 %v473
      %2545 = vmatpush1.msra.mxu0 %v472
      %2546 = vmatprep.subr.mxu0 %v534
      %2547 = vmatpush1.msra.mxu0 %v533
      %2548 = vmatprep.subr.mxu0 0.0
      %2549 = vmatpush1.msra.mxu0 0.0
      %2550 = vmatprep.subr.mxu0 0.0
      %2551 = vmatpush1.msra.mxu0 0.0
      %2552 = vmatprep.subr.mxu0 0.0
      %2553 = vmatpush1.msra.mxu0 0.0
      %2554 = vmatprep.subr.mxu0 0.0
      %2555 = vmatpush1.msra.mxu0 0.0
      %2556 = vmatprep.subr.mxu0 0.0
      %2557 = vmatpush1.msra.mxu0 0.0
      %2558 = vmatprep.subr.mxu0 0.0
      %2559 = vmatpush1.msra.mxu0 0.0
      %2560 = vmatprep.subr.mxu0 0.0
      %2561 = vmatpush1.msra.mxu0 0.0
      %2562 = vmatprep.subr.mxu0 0.0
      %2563 = vmatpush1.msra.mxu0 0.0
      %2564 = vmatprep.subr.mxu0 0.0
      %2565 = vmatpush1.msra.mxu0 0.0
      %2566 = vmatprep.subr.mxu0 0.0
      %2567 = vmatpush1.msra.mxu0 0.0
      %2568 = vmatprep.subr.mxu0 0.0
      %2569 = vmatpush1.msra.mxu0 0.0
      %2570 = vmatprep.subr.mxu0 0.0
      %2571 = vmatpush1.msra.mxu0 0.0
      %2572 = vmatprep.subr.mxu0 0.0
      %2573 = vmatpush1.msra.mxu0 0.0
      %2574 = vmatprep.subr.mxu0 0.0
      %2575 = vmatpush1.msra.mxu0 0.0
      %2576 = vmatprep.subr.mxu0 0.0
      %2577 = vmatpush1.msra.mxu0 0.0
      %2578 = vmatprep.subr.mxu0 0.0
      %2579 = vmatpush1.msra.mxu0 0.0
      %2580 = vmatprep.subr.mxu0 0.0
      %2581 = vmatpush1.msra.mxu0 0.0
      %2582 = vmatprep.subr.mxu0 0.0
      %2583 = vmatpush1.msra.mxu0 0.0
      %2584 = vmatprep.subr.mxu0 0.0
      %2585 = vmatpush1.msra.mxu0 0.0
      %2586 = vmatprep.subr.mxu0 0.0
      %2587 = vmatpush1.msra.mxu0 0.0
      %2588 = vmatprep.subr.mxu0 0.0
      %2589 = vmatpush1.msra.mxu0 0.0
      %2590 = vmatprep.subr.mxu0 0.0
      %2591 = vmatpush1.msra.mxu0 0.0
      %2592 = vmatprep.subr.mxu0 0.0
      %2593 = vmatpush1.msra.mxu0 0.0
      %2594 = vmatprep.subr.mxu0 0.0
      %2595 = vmatpush1.msra.mxu0 0.0
      %2596 = vmatprep.subr.mxu0 0.0
      %2597 = vmatpush1.msra.mxu0 0.0
      %2598 = vmatprep.subr.mxu0 0.0
      %2599 = vmatpush1.msra.mxu0 0.0
      %2600 = vmatprep.mubr.f32.mxu0 0.0
      %2601 = vmatmul.mubr.f32.gmra.mrb[0].mxu0 %v546
      %v2602 = vpop.f32.mrb[0].mxu0
      %v2603 = vadd.f32 %v542, %v2602
      %v2604 = vpop.f32.mrb[0].mxu0
      %v2605 = vadd.f32 %v542, %v2604
      %2606 = vdwg.mxu0
      %2607 = vmatprep.subr.mxu0 %v231
      %2608 = vmatpush1.msra.mxu0 %v230
      %2609 = vmatprep.subr.mxu0 %v292
      %2610 = vmatpush1.msra.mxu0 %v291
      %2611 = vmatprep.subr.mxu0 %v353
      %2612 = vmatpush1.msra.mxu0 %v352
      %2613 = vmatprep.subr.mxu0 %v414
      %2614 = vmatpush1.msra.mxu0 %v413
      %2615 = vmatprep.subr.mxu0 %v475
      %2616 = vmatpush1.msra.mxu0 %v474
      %2617 = vmatprep.subr.mxu0 %v536
      %2618 = vmatpush1.msra.mxu0 %v535
      %2619 = vmatprep.subr.mxu0 0.0
      %2620 = vmatpush1.msra.mxu0 0.0
      %2621 = vmatprep.subr.mxu0 0.0
      %2622 = vmatpush1.msra.mxu0 0.0
      %2623 = vmatprep.subr.mxu0 0.0
      %2624 = vmatpush1.msra.mxu0 0.0
      %2625 = vmatprep.subr.mxu0 0.0
      %2626 = vmatpush1.msra.mxu0 0.0
      %2627 = vmatprep.subr.mxu0 0.0
      %2628 = vmatpush1.msra.mxu0 0.0
      %2629 = vmatprep.subr.mxu0 0.0
      %2630 = vmatpush1.msra.mxu0 0.0
      %2631 = vmatprep.subr.mxu0 0.0
      %2632 = vmatpush1.msra.mxu0 0.0
      %2633 = vmatprep.subr.mxu0 0.0
      %2634 = vmatpush1.msra.mxu0 0.0
      %2635 = vmatprep.subr.mxu0 0.0
      %2636 = vmatpush1.msra.mxu0 0.0
      %2637 = vmatprep.subr.mxu0 0.0
      %2638 = vmatpush1.msra.mxu0 0.0
      %2639 = vmatprep.subr.mxu0 0.0
      %2640 = vmatpush1.msra.mxu0 0.0
      %2641 = vmatprep.subr.mxu0 0.0
      %2642 = vmatpush1.msra.mxu0 0.0
      %2643 = vmatprep.subr.mxu0 0.0
      %2644 = vmatpush1.msra.mxu0 0.0
      %2645 = vmatprep.subr.mxu0 0.0
      %2646 = vmatpush1.msra.mxu0 0.0
      %2647 = vmatprep.subr.mxu0 0.0
      %2648 = vmatpush1.msra.mxu0 0.0
      %2649 = vmatprep.subr.mxu0 0.0
      %2650 = vmatpush1.msra.mxu0 0.0
      %2651 = vmatprep.subr.mxu0 0.0
      %2652 = vmatpush1.msra.mxu0 0.0
      %2653 = vmatprep.subr.mxu0 0.0
      %2654 = vmatpush1.msra.mxu0 0.0
      %2655 = vmatprep.subr.mxu0 0.0
      %2656 = vmatpush1.msra.mxu0 0.0
      %2657 = vmatprep.subr.mxu0 0.0
      %2658 = vmatpush1.msra.mxu0 0.0
      %2659 = vmatprep.subr.mxu0 0.0
      %2660 = vmatpush1.msra.mxu0 0.0
      %2661 = vmatprep.subr.mxu0 0.0
      %2662 = vmatpush1.msra.mxu0 0.0
      %2663 = vmatprep.subr.mxu0 0.0
      %2664 = vmatpush1.msra.mxu0 0.0
      %2665 = vmatprep.subr.mxu0 0.0
      %2666 = vmatpush1.msra.mxu0 0.0
      %2667 = vmatprep.subr.mxu0 0.0
      %2668 = vmatpush1.msra.mxu0 0.0
      %2669 = vmatprep.subr.mxu0 0.0
      %2670 = vmatpush1.msra.mxu0 0.0
      %2671 = vmatprep.mubr.f32.mxu0 0.0
      %2672 = vmatmul.mubr.f32.gmra.mrb[0].mxu0 %v546
      %v2673 = vpop.f32.mrb[0].mxu0
      %v2674 = vadd.f32 %v542, %v2673
      %v2675 = vpop.f32.mrb[0].mxu0
      %v2676 = vadd.f32 %v542, %v2675
      %2677 = vdwg.mxu0
      %2678 = vmatprep.subr.mxu0 0.0
      %2679 = vmatpush1.msra.mxu0 %v232
      %2680 = vmatprep.subr.mxu0 0.0
      %2681 = vmatpush1.msra.mxu0 %v293
      %2682 = vmatprep.subr.mxu0 0.0
      %2683 = vmatpush1.msra.mxu0 %v354
      %2684 = vmatprep.subr.mxu0 0.0
      %2685 = vmatpush1.msra.mxu0 %v415
      %2686 = vmatprep.subr.mxu0 0.0
      %2687 = vmatpush1.msra.mxu0 %v476
      %2688 = vmatprep.subr.mxu0 0.0
      %2689 = vmatpush1.msra.mxu0 %v537
      %2690 = vmatprep.subr.mxu0 0.0
      %2691 = vmatpush1.msra.mxu0 0.0
      %2692 = vmatprep.subr.mxu0 0.0
      %2693 = vmatpush1.msra.mxu0 0.0
      %2694 = vmatprep.subr.mxu0 0.0
      %2695 = vmatpush1.msra.mxu0 0.0
      %2696 = vmatprep.subr.mxu0 0.0
      %2697 = vmatpush1.msra.mxu0 0.0
      %2698 = vmatprep.subr.mxu0 0.0
      %2699 = vmatpush1.msra.mxu0 0.0
      %2700 = vmatprep.subr.mxu0 0.0
      %2701 = vmatpush1.msra.mxu0 0.0
      %2702 = vmatprep.subr.mxu0 0.0
      %2703 = vmatpush1.msra.mxu0 0.0
      %2704 = vmatprep.subr.mxu0 0.0
      %2705 = vmatpush1.msra.mxu0 0.0
      %2706 = vmatprep.subr.mxu0 0.0
      %2707 = vmatpush1.msra.mxu0 0.0
      %2708 = vmatprep.subr.mxu0 0.0
      %2709 = vmatpush1.msra.mxu0 0.0
      %2710 = vmatprep.subr.mxu0 0.0
      %2711 = vmatpush1.msra.mxu0 0.0
      %2712 = vmatprep.subr.mxu0 0.0
      %2713 = vmatpush1.msra.mxu0 0.0
      %2714 = vmatprep.subr.mxu0 0.0
      %2715 = vmatpush1.msra.mxu0 0.0
      %2716 = vmatprep.subr.mxu0 0.0
      %2717 = vmatpush1.msra.mxu0 0.0
      %2718 = vmatprep.subr.mxu0 0.0
      %2719 = vmatpush1.msra.mxu0 0.0
      %2720 = vmatprep.subr.mxu0 0.0
      %2721 = vmatpush1.msra.mxu0 0.0
      %2722 = vmatprep.subr.mxu0 0.0
      %2723 = vmatpush1.msra.mxu0 0.0
      %2724 = vmatprep.subr.mxu0 0.0
      %2725 = vmatpush1.msra.mxu0 0.0
      %2726 = vmatprep.subr.mxu0 0.0
      %2727 = vmatpush1.msra.mxu0 0.0
      %2728 = vmatprep.subr.mxu0 0.0
      %2729 = vmatpush1.msra.mxu0 0.0
      %2730 = vmatprep.subr.mxu0 0.0
      %2731 = vmatpush1.msra.mxu0 0.0
      %2732 = vmatprep.subr.mxu0 0.0
      %2733 = vmatpush1.msra.mxu0 0.0
      %2734 = vmatprep.subr.mxu0 0.0
      %2735 = vmatpush1.msra.mxu0 0.0
      %2736 = vmatprep.subr.mxu0 0.0
      %2737 = vmatpush1.msra.mxu0 0.0
      %2738 = vmatprep.subr.mxu0 0.0
      %2739 = vmatpush1.msra.mxu0 0.0
      %2740 = vmatprep.subr.mxu0 0.0
      %2741 = vmatpush1.msra.mxu0 0.0
      %2742 = vmatprep.mubr.f32.mxu0 0.0
      %2743 = vmatmul.mubr.f32.gmra.mrb[0].mxu0 %v546
      %v2744 = vpop.f32.mrb[0].mxu0
      %v2745 = vadd.f32 %v542, %v2744
      %v2746 = vpop.f32.mrb[0].mxu0
      %2747 = vdwg.mxu0
      %v2748 = vmul.f32 %v615, 0.2
      %v2749 = vmul.f32 %v617, 0.2
      %v2750 = vmul.f32 %v686, 0.2
      %v2751 = vmul.f32 %v688, 0.2
      %v2752 = vmul.f32 %v757, 0.2
      %v2753 = vmul.f32 %v759, 0.2
      %v2754 = vmul.f32 %v828, 0.2
      %v2755 = vmul.f32 %v830, 0.2
      %v2756 = vmul.f32 %v899, 0.2
      %v2757 = vmul.f32 %v901, 0.2
      %v2758 = vmul.f32 %v970, 0.2
      %v2759 = vmul.f32 %v972, 0.2
      %v2760 = vmul.f32 %v1041, 0.2
      %v2761 = vmul.f32 %v1043, 0.2
      %v2762 = vmul.f32 %v1112, 0.2
      %v2763 = vmul.f32 %v1114, 0.2
      %v2764 = vmul.f32 %v1183, 0.2
      %v2765 = vmul.f32 %v1185, 0.2
      %v2766 = vmul.f32 %v1254, 0.2
      %v2767 = vmul.f32 %v1256, 0.2
      %v2768 = vmul.f32 %v1325, 0.2
      %v2769 = vmul.f32 %v1327, 0.2
      %v2770 = vmul.f32 %v1396, 0.2
      %v2771 = vmul.f32 %v1398, 0.2
      %v2772 = vmul.f32 %v1467, 0.2
      %v2773 = vmul.f32 %v1469, 0.2
      %v2774 = vmul.f32 %v1538, 0.2
      %v2775 = vmul.f32 %v1540, 0.2
      %v2776 = vmul.f32 %v1609, 0.2
      %v2777 = vmul.f32 %v1611, 0.2
      %v2778 = vmul.f32 %v1680, 0.2
      %v2779 = vmul.f32 %v1682, 0.2
      %v2780 = vmul.f32 %v1751, 0.2
      %v2781 = vmul.f32 %v1753, 0.2
      %v2782 = vmul.f32 %v1822, 0.2
      %v2783 = vmul.f32 %v1824, 0.2
      %v2784 = vmul.f32 %v1893, 0.2
      %v2785 = vmul.f32 %v1895, 0.2
      %v2786 = vmul.f32 %v1964, 0.2
      %v2787 = vmul.f32 %v1966, 0.2
      %v2788 = vmul.f32 %v2035, 0.2
      %v2789 = vmul.f32 %v2037, 0.2
      %v2790 = vmul.f32 %v2106, 0.2
      %v2791 = vmul.f32 %v2108, 0.2
      %v2792 = vmul.f32 %v2177, 0.2
      %v2793 = vmul.f32 %v2179, 0.2
      %v2794 = vmul.f32 %v2248, 0.2
      %v2795 = vmul.f32 %v2250, 0.2
      %v2796 = vmul.f32 %v2319, 0.2
      %v2797 = vmul.f32 %v2321, 0.2
      %v2798 = vmul.f32 %v2390, 0.2
      %v2799 = vmul.f32 %v2392, 0.2
      %v2800 = vmul.f32 %v2461, 0.2
      %v2801 = vmul.f32 %v2463, 0.2
      %v2802 = vmul.f32 %v2532, 0.2
      %v2803 = vmul.f32 %v2534, 0.2
      %v2804 = vmul.f32 %v2603, 0.2
      %v2805 = vmul.f32 %v2605, 0.2
      %v2806 = vmul.f32 %v2674, 0.2
      %v2807 = vmul.f32 %v2676, 0.2
      %v2808 = vmul.f32 %v2745, 0.2
      %v2809 = vmax.f32 %v615, %v2748
      %v2810 = vmax.f32 %v617, %v2749
      %v2811 = vmax.f32 %v686, %v2750
      %v2812 = vmax.f32 %v688, %v2751
      %v2813 = vmax.f32 %v757, %v2752
      %v2814 = vmax.f32 %v759, %v2753
      %v2815 = vmax.f32 %v828, %v2754
      %v2816 = vmax.f32 %v830, %v2755
      %v2817 = vmax.f32 %v899, %v2756
      %v2818 = vmax.f32 %v901, %v2757
      %v2819 = vmax.f32 %v970, %v2758
      %v2820 = vmax.f32 %v972, %v2759
      %v2821 = vmax.f32 %v1041, %v2760
      %v2822 = vmax.f32 %v1043, %v2761
      %v2823 = vmax.f32 %v1112, %v2762
      %v2824 = vmax.f32 %v1114, %v2763
      %v2825 = vmax.f32 %v1183, %v2764
      %v2826 = vmax.f32 %v1185, %v2765
      %v2827 = vmax.f32 %v1254, %v2766
      %v2828 = vmax.f32 %v1256, %v2767
      %v2829 = vmax.f32 %v1325, %v2768
      %v2830 = vmax.f32 %v1327, %v2769
      %v2831 = vmax.f32 %v1396, %v2770
      %v2832 = vmax.f32 %v1398, %v2771
      %v2833 = vmax.f32 %v1467, %v2772
      %v2834 = vmax.f32 %v1469, %v2773
      %v2835 = vmax.f32 %v1538, %v2774
      %v2836 = vmax.f32 %v1540, %v2775
      %v2837 = vmax.f32 %v1609, %v2776
      %v2838 = vmax.f32 %v1611, %v2777
      %v2839 = vmax.f32 %v1680, %v2778
      %v2840 = vmax.f32 %v1682, %v2779
      %v2841 = vmax.f32 %v1751, %v2780
      %v2842 = vmax.f32 %v1753, %v2781
      %v2843 = vmax.f32 %v1822, %v2782
      %v2844 = vmax.f32 %v1824, %v2783
      %v2845 = vmax.f32 %v1893, %v2784
      %v2846 = vmax.f32 %v1895, %v2785
      %v2847 = vmax.f32 %v1964, %v2786
      %v2848 = vmax.f32 %v1966, %v2787
      %v2849 = vmax.f32 %v2035, %v2788
      %v2850 = vmax.f32 %v2037, %v2789
      %v2851 = vmax.f32 %v2106, %v2790
      %v2852 = vmax.f32 %v2108, %v2791
      %v2853 = vmax.f32 %v2177, %v2792
      %v2854 = vmax.f32 %v2179, %v2793
      %v2855 = vmax.f32 %v2248, %v2794
      %v2856 = vmax.f32 %v2250, %v2795
      %v2857 = vmax.f32 %v2319, %v2796
      %v2858 = vmax.f32 %v2321, %v2797
      %v2859 = vmax.f32 %v2390, %v2798
      %v2860 = vmax.f32 %v2392, %v2799
      %v2861 = vmax.f32 %v2461, %v2800
      %v2862 = vmax.f32 %v2463, %v2801
      %v2863 = vmax.f32 %v2532, %v2802
      %v2864 = vmax.f32 %v2534, %v2803
      %v2865 = vmax.f32 %v2603, %v2804
      %v2866 = vmax.f32 %v2605, %v2805
      %v2867 = vmax.f32 %v2674, %v2806
      %v2868 = vmax.f32 %v2676, %v2807
      %v2869 = vmax.f32 %v2745, %v2808
      %v2930 = vcombine.low %v2809, %v2810
      %v2931 = vcombine.low %v2811, %v2812
      %v2932 = vcombine.low %v2813, %v2814
      %v2933 = vcombine.low %v2815, %v2816
      %v2934 = vcombine.low %v2817, %v2818
      %v2935 = vcombine.low %v2819, %v2820
      %v2936 = vcombine.low %v2821, %v2822
      %v2937 = vcombine.low %v2823, %v2824
      %v2938 = vcombine.low %v2825, %v2826
      %v2939 = vcombine.low %v2827, %v2828
      %v2940 = vcombine.low %v2829, %v2830
      %v2941 = vcombine.low %v2831, %v2832
      %v2942 = vcombine.low %v2833, %v2834
      %v2943 = vcombine.low %v2835, %v2836
      %v2944 = vcombine.low %v2837, %v2838
      %v2945 = vcombine.low %v2839, %v2840
      %v2946 = vcombine.low %v2841, %v2842
      %v2947 = vcombine.low %v2843, %v2844
      %v2948 = vcombine.low %v2845, %v2846
      %v2949 = vcombine.low %v2847, %v2848
      %v2950 = vcombine.low %v2849, %v2850
      %v2951 = vcombine.low %v2851, %v2852
      %v2952 = vcombine.low %v2853, %v2854
      %v2953 = vcombine.low %v2855, %v2856
      %v2954 = vcombine.low %v2857, %v2858
      %v2955 = vcombine.low %v2859, %v2860
      %v2956 = vcombine.low %v2861, %v2862
      %v2957 = vcombine.low %v2863, %v2864
      %v2958 = vcombine.low %v2865, %v2866
      %v2959 = vcombine.low %v2867, %v2868
      %2990 = vst [vmem:[%s170] sm:$0xff] %v2930
      %2991 = vst [vmem:[%s170 + $0x8] sm:$0xff] %v2931
      %2992 = vst [vmem:[%s170 + $0x10] sm:$0xff] %v2932
      %2993 = vst [vmem:[%s170 + $0x18] sm:$0xff] %v2933
      %2994 = vst [vmem:[%s170 + $0x20] sm:$0xff] %v2934
      %2995 = vst [vmem:[%s170 + $0x28] sm:$0xff] %v2935
      %2996 = vst [vmem:[%s170 + $0x30] sm:$0xff] %v2936
      %2997 = vst [vmem:[%s170 + $0x38] sm:$0xff] %v2937
      %2998 = vst [vmem:[%s170 + $0x40] sm:$0xff] %v2938
      %2999 = vst [vmem:[%s170 + $0x48] sm:$0xff] %v2939
      %3000 = vst [vmem:[%s170 + $0x50] sm:$0xff] %v2940
      %3001 = vst [vmem:[%s170 + $0x58] sm:$0xff] %v2941
      %3002 = vst [vmem:[%s170 + $0x60] sm:$0xff] %v2942
      %3003 = vst [vmem:[%s170 + $0x68] sm:$0xff] %v2943
      %3004 = vst [vmem:[%s170 + $0x70] sm:$0xff] %v2944
      %3005 = vst [vmem:[%s170 + $0x78] sm:$0xff] %v2945
      %3006 = vst [vmem:[%s170 + $0x80] sm:$0xff] %v2946
      %3007 = vst [vmem:[%s170 + $0x88] sm:$0xff] %v2947
      %3008 = vst [vmem:[%s170 + $0x90] sm:$0xff] %v2948
      %3009 = vst [vmem:[%s170 + $0x98] sm:$0xff] %v2949
      %3010 = vst [vmem:[%s170 + $0xa0] sm:$0xff] %v2950
      %3011 = vst [vmem:[%s170 + $0xa8] sm:$0xff] %v2951
      %3012 = vst [vmem:[%s170 + $0xb0] sm:$0xff] %v2952
      %3013 = vst [vmem:[%s170 + $0xb8] sm:$0xff] %v2953
      %3014 = vst [vmem:[%s170 + $0xc0] sm:$0xff] %v2954
      %3015 = vst [vmem:[%s170 + $0xc8] sm:$0xff] %v2955
      %3016 = vst [vmem:[%s170 + $0xd0] sm:$0xff] %v2956
      %3017 = vst [vmem:[%s170 + $0xd8] sm:$0xff] %v2957
      %3018 = vst [vmem:[%s170 + $0xe0] sm:$0xff] %v2958
      %3019 = vst [vmem:[%s170 + $0xe8] sm:$0xff] %v2959
      %vm3020 = vcmask 60416
      %3021 = vst.msk [vmem:[%s170 + $0xf0] sm:$0xf] %vm3020, %v2869
      %p3022 = scmp.lt.s32.totalorder %s14, 1
      %s3023 = scalar_select %p3022, %s14, 1
      %s3024 = smul.addr %s3023, 61
      %s3025 = smul.addr %s3024, 4
      %s3026 = scalar_lea.vmem %s3, %s3025
      // Predicated region
      $region33: #{encoder_forward.4} parent=31 // pred_check
        %p3027 = pneg %p100
      $region34: #{encoder_forward.4} parent=31 // pred_check_branch
        %3029 = sbr.rel (%p3027) target = $region36
      $region35: #{encoder_forward.4} parent=31 // pred_region
        _
      $region36: #{encoder_forward.4} parent=31 // pred_fallthru
        _
    $region32: #{encoder_forward.4} parent=5 // pred_fallthru
      _
    %p3030 = scmp.le.s32.totalorder 2, %s9
    // Predicated region
    $region37: #{encoder_forward.4} parent=5 // pred_check
      %p3031 = pneg %p3030
    $region38: #{encoder_forward.4} parent=5 // pred_check_branch
      %3033 = sbr.rel (%p3031) target = $region40
    $region39: #{encoder_forward.4} parent=5 // pred_region
      %s3034 = ssub.s32 %s9, 2
      // Predicated region
      $region41: #{encoder_forward.4} parent=39 // pred_check
        %p3035 = pneg %p106
      $region42: #{encoder_forward.4} parent=39 // pred_check_branch
        %3037 = sbr.rel (%p3035) target = $region44
      $region43: #{encoder_forward.4} parent=39 // pred_region
        %p3038 = scmp.lt.s32.totalorder %s15, 1
        %s3039 = scalar_select %p3038, %s15, 1
        %s3040 = smul.addr %s3039, 61
        %s3041 = smul.addr %s3040, 4
        %s3042 = scalar_lea.vmem %s3, %s3041
      $region44: #{encoder_forward.4} parent=39 // pred_fallthru
        _
    $region40: #{encoder_forward.4} parent=5 // pred_fallthru
      _
  $region6: #{encoder_forward.4} parent=0 // loop_footer
    %s13 = sadd.s32 1, %s9
  $region7: #{encoder_forward.4} parent=0 // loop_footer_branch
    %8 = sbr.rel target = $region3
  $region8: #{encoder_forward.4} parent=0 // loop_exit
    _

// kernel: encoder_forward.5
$region0: #{encoder_forward.5}
  #allocation0 [shape = 'u32[]', space=smem, size = 0x4, offset = 0x4, fixed_abs, tag = 'smem constant byte address 0x4 - core index']
  #allocation1 [shape = 'u32[144,128]{1,0:T(1,128)}', space=vmem, size = 0x12000, scoped, tag = 'internal scratch']
  %s0 = inlined_call_operand.vmem [shape: f32[2,64,1568], index: 0, kind: input, shape index: {}]
  %s1 = inlined_call_operand.vmem [shape: f32[8,64], index: 1, kind: input, shape index: {}]
  %s2 = inlined_call_operand.vmem [shape: f32[8,1], index: 2, kind: input, shape index: {}]
  %s3 = inlined_call_operand.vmem [shape: f32[2,8,1568], index: 3, kind: output, shape index: {}]
  %s4 = sld [smem:[#allocation0]]
  $region45: #{encoder_forward.5} parent=0
    _
  %s6 = ssub.s32 1, %s4
  %s7 = scalar_select 0, %s6, %s4
  loop: start=0, step=1, limit=4
  $region2: #{encoder_forward.5} parent=0 // loop_pre_header
    _
  $region3: #{encoder_forward.5} parent=0 // loop_header
    %s9 = sphi 0, %s13
    %p10 = scmp.ge.s32.totalorder %s9, 4
    %s19 = sphi 0, %s21
    %s22 = sphi 0, %s19
    %s23 = sphi 0, %s22
    %s39 = sphi 0, %s23
    %s43 = sphi 0, %s43
    %s45 = sphi 0, %s43
    %s46 = sphi 0, %s45
    %s60 = sphi 0, %s46
    %s64 = sphi 0, %s64
    %s66 = sphi 0, %s64
    %s67 = sphi 0, %s66
    %s81 = sphi 0, %s67
    %s87 = sphi 0, %s89
    %s90 = sphi 0, %s87
    %s91 = sphi 0, %s90
    %s107 = sphi 0, %s91
  $region4: #{encoder_forward.5} parent=0 // loop_header_branch
    %12 = sbr.rel (%p10) target = $region8
  $region5: #{encoder_forward.5} parent=0 // loop_body
    %s14 = ssub.s32 %s9, 1
    %s15 = ssub.s32 %s9, 2
    %s16 = sadd.s32 %s9, 1
    %s17 = ssub.s32 %s9, %s16
    %p18 = scmp.eq.s32.totalorder %s17, 0
    %s20 = sadd.s32 %s19, 1
    %s21 = scalar_select %p18, %s19, %s20
    %p24 = pneg %p18
    %p25 = scmp.eq.s32.totalorder %s9, 1
    %p26 = por %p24, %p25
    %p27 = scmp.ne.s32.totalorder %s19, %s22
    %p28 = scmp.eq.s32.totalorder %s9, 0
    %p29 = por %p27, %p28
    %p30 = scmp.ne.s32.totalorder %s19, %s22
    %p31 = scmp.eq.s32.totalorder %s14, 1
    %p32 = por %p30, %p31
    %p33 = scmp.ne.s32.totalorder %s22, %s23
    %p34 = scmp.eq.s32.totalorder %s14, 0
    %p35 = por %p33, %p34
    %p36 = scmp.ne.s32.totalorder %s22, %s23
    %p37 = scmp.eq.s32.totalorder %s15, 1
    %p38 = por %p36, %p37
    %p40 = scmp.ne.s32.totalorder %s23, %s39
    %p41 = scmp.eq.s32.totalorder %s15, 0
    %p42 = por %p40, %p41
    %s44 = sadd.s32 %s43, 1
    %p47 = scmp.eq.s32.totalorder %s9, 1
    %p48 = scmp.ne.s32.totalorder %s43, %s45
    %p49 = scmp.eq.s32.totalorder %s9, 0
    %p50 = por %p48, %p49
    %p51 = scmp.ne.s32.totalorder %s43, %s45
    %p52 = scmp.eq.s32.totalorder %s14, 1
    %p53 = por %p51, %p52
    %p54 = scmp.ne.s32.totalorder %s45, %s46
    %p55 = scmp.eq.s32.totalorder %s14, 0
    %p56 = por %p54, %p55
    %p57 = scmp.ne.s32.totalorder %s45, %s46
    %p58 = scmp.eq.s32.totalorder %s15, 1
    %p59 = por %p57, %p58
    %p61 = scmp.ne.s32.totalorder %s46, %s60
    %p62 = scmp.eq.s32.totalorder %s15, 0
    %p63 = por %p61, %p62
    %s65 = sadd.s32 %s64, 1
    %p68 = scmp.eq.s32.totalorder %s9, 1
    %p69 = scmp.ne.s32.totalorder %s64, %s66
    %p70 = scmp.eq.s32.totalorder %s9, 0
    %p71 = por %p69, %p70
    %p72 = scmp.ne.s32.totalorder %s64, %s66
    %p73 = scmp.eq.s32.totalorder %s14, 1
    %p74 = por %p72, %p73
    %p75 = scmp.ne.s32.totalorder %s66, %s67
    %p76 = scmp.eq.s32.totalorder %s14, 0
    %p77 = por %p75, %p76
    %p78 = scmp.ne.s32.totalorder %s66, %s67
    %p79 = scmp.eq.s32.totalorder %s15, 1
    %p80 = por %p78, %p79
    %p82 = scmp.ne.s32.totalorder %s67, %s81
    %p83 = scmp.eq.s32.totalorder %s15, 0
    %p84 = por %p82, %p83
    %s85 = ssub.s32 %s9, %s16
    %p86 = scmp.eq.s32.totalorder %s85, 0
    %s88 = sadd.s32 %s87, 1
    %s89 = scalar_select %p86, %s87, %s88
    %p92 = pneg %p86
    %p93 = scmp.eq.s32.totalorder %s9, 1
    %p94 = por %p92, %p93
    %p95 = scmp.ne.s32.totalorder %s87, %s90
    %p96 = scmp.eq.s32.totalorder %s9, 0
    %p97 = por %p95, %p96
    %p98 = scmp.ne.s32.totalorder %s87, %s90
    %p99 = scmp.eq.s32.totalorder %s14, 1
    %p100 = por %p98, %p99
    %p101 = scmp.ne.s32.totalorder %s90, %s91
    %p102 = scmp.eq.s32.totalorder %s14, 0
    %p103 = por %p101, %p102
    %p104 = scmp.ne.s32.totalorder %s90, %s91
    %p105 = scmp.eq.s32.totalorder %s15, 1
    %p106 = por %p104, %p105
    %p108 = scmp.ne.s32.totalorder %s91, %s107
    %p109 = scmp.eq.s32.totalorder %s15, 0
    %p110 = por %p108, %p109
    %p111 = scmp.le.s32.totalorder 1, %s9
    %p112 = scmp.lt.s32.totalorder %s9, 3
    %p113 = pnand %p111, %p112
    %p114 = pneg %p113
    // Predicated region
    $region9: #{encoder_forward.5} parent=5 // pred_check
      _
    $region10: #{encoder_forward.5} parent=5 // pred_check_branch
      %116 = sbr.rel (%p113) target = $region12
    $region11: #{encoder_forward.5} parent=5 // pred_region
      %s117 = ssub.s32 %s9, 1
      // Predicated region
      $region13: #{encoder_forward.5} parent=11 // pred_check
        %p118 = pneg %p56
      $region14: #{encoder_forward.5} parent=11 // pred_check_branch
        %120 = sbr.rel (%p118) target = $region16
      $region15: #{encoder_forward.5} parent=11 // pred_region
        _
      $region16: #{encoder_forward.5} parent=11 // pred_fallthru
        _
      // Predicated region
      $region17: #{encoder_forward.5} parent=11 // pred_check
        %p121 = pneg %p77
      $region18: #{encoder_forward.5} parent=11 // pred_check_branch
        %123 = sbr.rel (%p121) target = $region20
      $region19: #{encoder_forward.5} parent=11 // pred_region
        _
      $region20: #{encoder_forward.5} parent=11 // pred_fallthru
        _
    $region12: #{encoder_forward.5} parent=5 // pred_fallthru
      _
    %p124 = scmp.lt.s32.totalorder %s9, 2
    // Predicated region
    $region21: #{encoder_forward.5} parent=5 // pred_check
      %p125 = pneg %p124
    $region22: #{encoder_forward.5} parent=5 // pred_check_branch
      %127 = sbr.rel (%p125) target = $region24
    $region23: #{encoder_forward.5} parent=5 // pred_region
      // Predicated region
      $region25: #{encoder_forward.5} parent=23 // pred_check
        %p128 = pneg %p29
      $region26: #{encoder_forward.5} parent=23 // pred_check_branch
        %130 = sbr.rel (%p128) target = $region28
      $region27: #{encoder_forward.5} parent=23 // pred_region
        %p131 = scmp.lt.s32.totalorder %s9, 1
        %s132 = scalar_select %p131, %s9, 1
        %s133 = smul.addr %s132, 104
        %s134 = smul.addr %s133, 8
        %s135 = scalar_lea.vmem %s0, %s134
      $region28: #{encoder_forward.5} parent=23 // pred_fallthru
        _
    $region24: #{encoder_forward.5} parent=5 // pred_fallthru
      _
    %p136 = scmp.le.s32.totalorder 1, %s9
    %p137 = scmp.lt.s32.totalorder %s9, 3
    %p138 = pnand %p136, %p137
    %p139 = pneg %p138
    // Predicated region
    $region29: #{encoder_forward.5} parent=5 // pred_check
      _
    $region30: #{encoder_forward.5} parent=5 // pred_check_branch
      %141 = sbr.rel (%p138) target = $region32
    $region31: #{encoder_forward.5} parent=5 // pred_region
      %s142 = ssub.s32 %s9, 1
      %p143 = scmp.lt.s32.totalorder %s14, 1
      %s144 = scalar_select %p143, %s14, 1
      %s145 = smul.addr %s144, 104
      %s146 = smul.addr %s145, 8
      %s147 = scalar_lea.vmem %s0, %s146
      %p148 = pneg %p35
      %p149 = pneg %p32
      %p150 = pneg %p56
      %p151 = pneg %p53
      %p152 = pneg %p77
      %p153 = pneg %p74
      %p154 = pneg %p103
      %p155 = pneg %p100
      %p156 = scmp.lt.s32.totalorder %s14, 1
      %s157 = scalar_select %p156, %s14, 1
      %s158 = smul.addr %s157, 13
      %s159 = smul.addr %s158, 8
      %s160 = scalar_lea.vmem %s3, %s159
      %p161 = scmp.lt.s32.totalorder %s14, 1
      %s162 = scalar_select %p161, %s14, 1
      %s163 = smul.addr %s162, 104
      %s164 = smul.addr %s163, 8
      %s165 = scalar_lea.vmem %s0, %s164
      %p166 = scmp.lt.s32.totalorder %s14, 1
      %s167 = scalar_select %p166, %s14, 1
      %s168 = smul.addr %s167, 13
      %s169 = smul.addr %s168, 8
      %s170 = scalar_lea.vmem %s3, %s169
      %v171 = vld [vmem:[%s1] sm:$0xff]
      %v172 = vld [vmem:[%s165] sm:$0xff]
      %v173 = vld [vmem:[%s165 + $0x8] sm:$0xff]
      %v174 = vld [vmem:[%s165 + $0x10] sm:$0xff]
      %v175 = vld [vmem:[%s165 + $0x18] sm:$0xff]
      %v176 = vld [vmem:[%s165 + $0x20] sm:$0xff]
      %v177 = vld [vmem:[%s165 + $0x28] sm:$0xff]
      %v178 = vld [vmem:[%s165 + $0x30] sm:$0xff]
      %v179 = vld [vmem:[%s165 + $0x38] sm:$0xff]
      %v180 = vld [vmem:[%s165 + $0x40] sm:$0xff]
      %v181 = vld [vmem:[%s165 + $0x48] sm:$0xff]
      %v182 = vld [vmem:[%s165 + $0x50] sm:$0xff]
      %v183 = vld [vmem:[%s165 + $0x58] sm:$0xff]
      %v184 = vld [vmem:[%s165 + $0x60] sm:$0xff]
      %v185 = vld [vmem:[%s165 + $0x68] sm:$0xff]
      %v186 = vld [vmem:[%s165 + $0x70] sm:$0xff]
      %v187 = vld [vmem:[%s165 + $0x78] sm:$0xff]
      %v188 = vld [vmem:[%s165 + $0x80] sm:$0xff]
      %v189 = vld [vmem:[%s165 + $0x88] sm:$0xff]
      %v190 = vld [vmem:[%s165 + $0x90] sm:$0xff]
      %v191 = vld [vmem:[%s165 + $0x98] sm:$0xff]
      %v192 = vld [vmem:[%s165 + $0xa0] sm:$0xff]
      %v193 = vld [vmem:[%s165 + $0xa8] sm:$0xff]
      %v194 = vld [vmem:[%s165 + $0xb0] sm:$0xff]
      %v195 = vld [vmem:[%s165 + $0xb8] sm:$0xff]
      %v196 = vld [vmem:[%s165 + $0xc0] sm:$0xff]
      %v197 = vld [vmem:[%s165 + $0xc8] sm:$0xff]
      %v198 = vld [vmem:[%s165 + $0xd0] sm:$0xff]
      %v199 = vld [vmem:[%s165 + $0xd8] sm:$0xff]
      %v200 = vld [vmem:[%s165 + $0xe0] sm:$0xff]
      %v201 = vld [vmem:[%s165 + $0xe8] sm:$0xff]
      %v202 = vld [vmem:[%s165 + $0xf0] sm:$0xff]
      %v203 = vld [vmem:[%s165 + $0xf8] sm:$0xff]
      %v204 = vld [vmem:[%s165 + $0x100] sm:$0xff]
      %v205 = vld [vmem:[%s165 + $0x108] sm:$0xff]
      %v206 = vld [vmem:[%s165 + $0x110] sm:$0xff]
      %v207 = vld [vmem:[%s165 + $0x118] sm:$0xff]
      %v208 = vld [vmem:[%s165 + $0x120] sm:$0xff]
      %v209 = vld [vmem:[%s165 + $0x128] sm:$0xff]
      %v210 = vld [vmem:[%s165 + $0x130] sm:$0xff]
      %v211 = vld [vmem:[%s165 + $0x138] sm:$0xff]
      %v212 = vld [vmem:[%s165 + $0x140] sm:$0xff]
      %v213 = vld [vmem:[%s165 + $0x148] sm:$0xff]
      %v214 = vld [vmem:[%s165 + $0x150] sm:$0xff]
      %v215 = vld [vmem:[%s165 + $0x158] sm:$0xff]
      %v216 = vld [vmem:[%s165 + $0x160] sm:$0xff]
      %v217 = vld [vmem:[%s165 + $0x168] sm:$0xff]
      %v218 = vld [vmem:[%s165 + $0x170] sm:$0xff]
      %v219 = vld [vmem:[%s165 + $0x178] sm:$0xff]
      %v220 = vld [vmem:[%s165 + $0x180] sm:$0xff]
      %v221 = vld [vmem:[%s165 + $0x188] sm:$0xff]
      %v222 = vld [vmem:[%s165 + $0x190] sm:$0xff]
      %v223 = vld [vmem:[%s165 + $0x198] sm:$0xff]
      %v224 = vld [vmem:[%s165 + $0x1a0] sm:$0xff]
      %v225 = vld [vmem:[%s165 + $0x1a8] sm:$0xff]
      %v226 = vld [vmem:[%s165 + $0x1b0] sm:$0xff]
      %v227 = vld [vmem:[%s165 + $0x1b8] sm:$0xff]
      %v228 = vld [vmem:[%s165 + $0x1c0] sm:$0xff]
      %v229 = vld [vmem:[%s165 + $0x1c8] sm:$0xff]
      %v230 = vld [vmem:[%s165 + $0x1d0] sm:$0xff]
      %v231 = vld [vmem:[%s165 + $0x1d8] sm:$0xff]
      %v232 = vld [vmem:[%s165 + $0x1e0] sm:$0xff]
      %v233 = vld [vmem:[%s165 + $0x1e8] sm:$0xff]
      %v234 = vld [vmem:[%s165 + $0x1f0] sm:$0xff]
      %v235 = vld [vmem:[%s165 + $0x1f8] sm:$0xff]
      %v236 = vld [vmem:[%s165 + $0x200] sm:$0xff]
      %v237 = vld [vmem:[%s165 + $0x208] sm:$0xff]
      %v238 = vld [vmem:[%s165 + $0x210] sm:$0xff]
      %v239 = vld [vmem:[%s165 + $0x218] sm:$0xff]
      %v240 = vld [vmem:[%s165 + $0x220] sm:$0xff]
      %v241 = vld [vmem:[%s165 + $0x228] sm:$0xff]
      %v242 = vld [vmem:[%s165 + $0x230] sm:$0xff]
      %v243 = vld [vmem:[%s165 + $0x238] sm:$0xff]
      %v244 = vld [vmem:[%s165 + $0x240] sm:$0xff]
      %v245 = vld [vmem:[%s165 + $0x248] sm:$0xff]
      %v246 = vld [vmem:[%s165 + $0x250] sm:$0xff]
      %v247 = vld [vmem:[%s165 + $0x258] sm:$0xff]
      %v248 = vld [vmem:[%s165 + $0x260] sm:$0xff]
      %v249 = vld [vmem:[%s165 + $0x268] sm:$0xff]
      %v250 = vld [vmem:[%s165 + $0x270] sm:$0xff]
      %v251 = vld [vmem:[%s165 + $0x278] sm:$0xff]
      %v252 = vld [vmem:[%s165 + $0x280] sm:$0xff]
      %v253 = vld [vmem:[%s165 + $0x288] sm:$0xff]
      %v254 = vld [vmem:[%s165 + $0x290] sm:$0xff]
      %v255 = vld [vmem:[%s165 + $0x298] sm:$0xff]
      %v256 = vld [vmem:[%s165 + $0x2a0] sm:$0xff]
      %v257 = vld [vmem:[%s165 + $0x2a8] sm:$0xff]
      %v258 = vld [vmem:[%s165 + $0x2b0] sm:$0xff]
      %v259 = vld [vmem:[%s165 + $0x2b8] sm:$0xff]
      %v260 = vld [vmem:[%s165 + $0x2c0] sm:$0xff]
      %v261 = vld [vmem:[%s165 + $0x2c8] sm:$0xff]
      %v262 = vld [vmem:[%s165 + $0x2d0] sm:$0xff]
      %v263 = vld [vmem:[%s165 + $0x2d8] sm:$0xff]
      %v264 = vld [vmem:[%s165 + $0x2e0] sm:$0xff]
      %v265 = vld [vmem:[%s165 + $0x2e8] sm:$0xff]
      %v266 = vld [vmem:[%s165 + $0x2f0] sm:$0xff]
      %v267 = vld [vmem:[%s165 + $0x2f8] sm:$0xff]
      %v268 = vld [vmem:[%s165 + $0x300] sm:$0xff]
      %v269 = vld [vmem:[%s165 + $0x308] sm:$0xff]
      %v270 = vld [vmem:[%s165 + $0x310] sm:$0xff]
      %v271 = vld [vmem:[%s165 + $0x318] sm:$0xff]
      %v272 = vld [vmem:[%s165 + $0x320] sm:$0xff]
      %v273 = vld [vmem:[%s165 + $0x328] sm:$0xff]
      %v274 = vld [vmem:[%s165 + $0x330] sm:$0xff]
      %v275 = vld [vmem:[%s165 + $0x338] sm:$0xff]
      %v276 = vld [vmem:[%s2] sm:$0xff]
      %278 = vset.pattern.permute.xlu0 0
      %279 = vperm.xlu0 %278, %v276
      %v280 = vpop.permute.xlu0 %279
      %vm282 = vcmask 523264
      %v284 = vsel %vm282, %v171, 0
      %286 = vmatprep.subr.mxu0 %v173
      %287 = vmatpush1.msra.mxu0 %v172
      %288 = vmatprep.subr.mxu0 %v186
      %289 = vmatpush1.msra.mxu0 %v185
      %290 = vmatprep.subr.mxu0 %v199
      %291 = vmatpush1.msra.mxu0 %v198
      %292 = vmatprep.subr.mxu0 %v212
      %293 = vmatpush1.msra.mxu0 %v211
      %294 = vmatprep.subr.mxu0 %v225
      %295 = vmatpush1.msra.mxu0 %v224
      %296 = vmatprep.subr.mxu0 %v238
      %297 = vmatpush1.msra.mxu0 %v237
      %298 = vmatprep.subr.mxu0 %v251
      %299 = vmatpush1.msra.mxu0 %v250
      %300 = vmatprep.subr.mxu0 %v264
      %301 = vmatpush1.msra.mxu0 %v263
      %302 = vmatprep.subr.mxu0 0.0
      %303 = vmatpush1.msra.mxu0 0.0
      %304 = vmatprep.subr.mxu0 0.0
      %305 = vmatpush1.msra.mxu0 0.0
      %306 = vmatprep.subr.mxu0 0.0
      %307 = vmatpush1.msra.mxu0 0.0
      %308 = vmatprep.subr.mxu0 0.0
      %309 = vmatpush1.msra.mxu0 0.0
      %310 = vmatprep.subr.mxu0 0.0
      %311 = vmatpush1.msra.mxu0 0.0
      %312 = vmatprep.subr.mxu0 0.0
      %313 = vmatpush1.msra.mxu0 0.0
      %314 = vmatprep.subr.mxu0 0.0
      %315 = vmatpush1.msra.mxu0 0.0
      %316 = vmatprep.subr.mxu0 0.0
      %317 = vmatpush1.msra.mxu0 0.0
      %318 = vmatprep.subr.mxu0 0.0
      %319 = vmatpush1.msra.mxu0 0.0
      %320 = vmatprep.subr.mxu0 0.0
      %321 = vmatpush1.msra.mxu0 0.0
      %322 = vmatprep.subr.mxu0 0.0
      %323 = vmatpush1.msra.mxu0 0.0
      %324 = vmatprep.subr.mxu0 0.0
      %325 = vmatpush1.msra.mxu0 0.0
      %326 = vmatprep.subr.mxu0 0.0
      %327 = vmatpush1.msra.mxu0 0.0
      %328 = vmatprep.subr.mxu0 0.0
      %329 = vmatpush1.msra.mxu0 0.0
      %330 = vmatprep.subr.mxu0 0.0
      %331 = vmatpush1.msra.mxu0 0.0
      %332 = vmatprep.subr.mxu0 0.0
      %333 = vmatpush1.msra.mxu0 0.0
      %334 = vmatprep.subr.mxu0 0.0
      %335 = vmatpush1.msra.mxu0 0.0
      %336 = vmatprep.subr.mxu0 0.0
      %337 = vmatpush1.msra.mxu0 0.0
      %338 = vmatprep.subr.mxu0 0.0
      %339 = vmatpush1.msra.mxu0 0.0
      %340 = vmatprep.subr.mxu0 0.0
      %341 = vmatpush1.msra.mxu0 0.0
      %342 = vmatprep.subr.mxu0 0.0
      %343 = vmatpush1.msra.mxu0 0.0
      %344 = vmatprep.subr.mxu0 0.0
      %345 = vmatpush1.msra.mxu0 0.0
      %346 = vmatprep.subr.mxu0 0.0
      %347 = vmatpush1.msra.mxu0 0.0
      %348 = vmatprep.subr.mxu0 0.0
      %349 = vmatpush1.msra.mxu0 0.0
      %350 = vmatprep.mubr.f32.mxu0 0.0
      %351 = vmatmul.mubr.f32.gmra.mrb[0].mxu0 %v284
      %v352 = vpop.f32.mrb[0].mxu0
      %v353 = vadd.f32 %v280, %v352
      %v354 = vpop.f32.mrb[0].mxu0
      %v355 = vadd.f32 %v280, %v354
      %356 = vdwg.mxu0
      %357 = vmatprep.subr.mxu0 %v175
      %358 = vmatpush1.msra.mxu0 %v174
      %359 = vmatprep.subr.mxu0 %v188
      %360 = vmatpush1.msra.mxu0 %v187
      %361 = vmatprep.subr.mxu0 %v201
      %362 = vmatpush1.msra.mxu0 %v200
      %363 = vmatprep.subr.mxu0 %v214
      %364 = vmatpush1.msra.mxu0 %v213
      %365 = vmatprep.subr.mxu0 %v227
      %366 = vmatpush1.msra.mxu0 %v226
      %367 = vmatprep.subr.mxu0 %v240
      %368 = vmatpush1.msra.mxu0 %v239
      %369 = vmatprep.subr.mxu0 %v253
      %370 = vmatpush1.msra.mxu0 %v252
      %371 = vmatprep.subr.mxu0 %v266
      %372 = vmatpush1.msra.mxu0 %v265
      %373 = vmatprep.subr.mxu0 0.0
      %374 = vmatpush1.msra.mxu0 0.0
      %375 = vmatprep.subr.mxu0 0.0
      %376 = vmatpush1.msra.mxu0 0.0
      %377 = vmatprep.subr.mxu0 0.0
      %378 = vmatpush1.msra.mxu0 0.0
      %379 = vmatprep.subr.mxu0 0.0
      %380 = vmatpush1.msra.mxu0 0.0
      %381 = vmatprep.subr.mxu0 0.0
      %382 = vmatpush1.msra.mxu0 0.0
      %383 = vmatprep.subr.mxu0 0.0
      %384 = vmatpush1.msra.mxu0 0.0
      %385 = vmatprep.subr.mxu0 0.0
      %386 = vmatpush1.msra.mxu0 0.0
      %387 = vmatprep.subr.mxu0 0.0
      %388 = vmatpush1.msra.mxu0 0.0
      %389 = vmatprep.subr.mxu0 0.0
      %390 = vmatpush1.msra.mxu0 0.0
      %391 = vmatprep.subr.mxu0 0.0
      %392 = vmatpush1.msra.mxu0 0.0
      %393 = vmatprep.subr.mxu0 0.0
      %394 = vmatpush1.msra.mxu0 0.0
      %395 = vmatprep.subr.mxu0 0.0
      %396 = vmatpush1.msra.mxu0 0.0
      %397 = vmatprep.subr.mxu0 0.0
      %398 = vmatpush1.msra.mxu0 0.0
      %399 = vmatprep.subr.mxu0 0.0
      %400 = vmatpush1.msra.mxu0 0.0
      %401 = vmatprep.subr.mxu0 0.0
      %402 = vmatpush1.msra.mxu0 0.0
      %403 = vmatprep.subr.mxu0 0.0
      %404 = vmatpush1.msra.mxu0 0.0
      %405 = vmatprep.subr.mxu0 0.0
      %406 = vmatpush1.msra.mxu0 0.0
      %407 = vmatprep.subr.mxu0 0.0
      %408 = vmatpush1.msra.mxu0 0.0
      %409 = vmatprep.subr.mxu0 0.0
      %410 = vmatpush1.msra.mxu0 0.0
      %411 = vmatprep.subr.mxu0 0.0
      %412 = vmatpush1.msra.mxu0 0.0
      %413 = vmatprep.subr.mxu0 0.0
      %414 = vmatpush1.msra.mxu0 0.0
      %415 = vmatprep.subr.mxu0 0.0
      %416 = vmatpush1.msra.mxu0 0.0
      %417 = vmatprep.subr.mxu0 0.0
      %418 = vmatpush1.msra.mxu0 0.0
      %419 = vmatprep.subr.mxu0 0.0
      %420 = vmatpush1.msra.mxu0 0.0
      %421 = vmatprep.mubr.f32.mxu0 0.0
      %422 = vmatmul.mubr.f32.gmra.mrb[0].mxu0 %v284
      %v423 = vpop.f32.mrb[0].mxu0
      %v424 = vadd.f32 %v280, %v423
      %v425 = vpop.f32.mrb[0].mxu0
      %v426 = vadd.f32 %v280, %v425
      %427 = vdwg.mxu0
      %428 = vmatprep.subr.mxu0 %v177
      %429 = vmatpush1.msra.mxu0 %v176
      %430 = vmatprep.subr.mxu0 %v190
      %431 = vmatpush1.msra.mxu0 %v189
      %432 = vmatprep.subr.mxu0 %v203
      %433 = vmatpush1.msra.mxu0 %v202
      %434 = vmatprep.subr.mxu0 %v216
      %435 = vmatpush1.msra.mxu0 %v215
      %436 = vmatprep.subr.mxu0 %v229
      %437 = vmatpush1.msra.mxu0 %v228
      %438 = vmatprep.subr.mxu0 %v242
      %439 = vmatpush1.msra.mxu0 %v241
      %440 = vmatprep.subr.mxu0 %v255
      %441 = vmatpush1.msra.mxu0 %v254
      %442 = vmatprep.subr.mxu0 %v268
      %443 = vmatpush1.msra.mxu0 %v267
      %444 = vmatprep.subr.mxu0 0.0
      %445 = vmatpush1.msra.mxu0 0.0
      %446 = vmatprep.subr.mxu0 0.0
      %447 = vmatpush1.msra.mxu0 0.0
      %448 = vmatprep.subr.mxu0 0.0
      %449 = vmatpush1.msra.mxu0 0.0
      %450 = vmatprep.subr.mxu0 0.0
      %451 = vmatpush1.msra.mxu0 0.0
      %452 = vmatprep.subr.mxu0 0.0
      %453 = vmatpush1.msra.mxu0 0.0
      %454 = vmatprep.subr.mxu0 0.0
      %455 = vmatpush1.msra.mxu0 0.0
      %456 = vmatprep.subr.mxu0 0.0
      %457 = vmatpush1.msra.mxu0 0.0
      %458 = vmatprep.subr.mxu0 0.0
      %459 = vmatpush1.msra.mxu0 0.0
      %460 = vmatprep.subr.mxu0 0.0
      %461 = vmatpush1.msra.mxu0 0.0
      %462 = vmatprep.subr.mxu0 0.0
      %463 = vmatpush1.msra.mxu0 0.0
      %464 = vmatprep.subr.mxu0 0.0
      %465 = vmatpush1.msra.mxu0 0.0
      %466 = vmatprep.subr.mxu0 0.0
      %467 = vmatpush1.msra.mxu0 0.0
      %468 = vmatprep.subr.mxu0 0.0
      %469 = vmatpush1.msra.mxu0 0.0
      %470 = vmatprep.subr.mxu0 0.0
      %471 = vmatpush1.msra.mxu0 0.0
      %472 = vmatprep.subr.mxu0 0.0
      %473 = vmatpush1.msra.mxu0 0.0
      %474 = vmatprep.subr.mxu0 0.0
      %475 = vmatpush1.msra.mxu0 0.0
      %476 = vmatprep.subr.mxu0 0.0
      %477 = vmatpush1.msra.mxu0 0.0
      %478 = vmatprep.subr.mxu0 0.0
      %479 = vmatpush1.msra.mxu0 0.0
      %480 = vmatprep.subr.mxu0 0.0
      %481 = vmatpush1.msra.mxu0 0.0
      %482 = vmatprep.subr.mxu0 0.0
      %483 = vmatpush1.msra.mxu0 0.0
      %484 = vmatprep.subr.mxu0 0.0
      %485 = vmatpush1.msra.mxu0 0.0
      %486 = vmatprep.subr.mxu0 0.0
      %487 = vmatpush1.msra.mxu0 0.0
      %488 = vmatprep.subr.mxu0 0.0
      %489 = vmatpush1.msra.mxu0 0.0
      %490 = vmatprep.subr.mxu0 0.0
      %491 = vmatpush1.msra.mxu0 0.0
      %492 = vmatprep.mubr.f32.mxu0 0.0
      %493 = vmatmul.mubr.f32.gmra.mrb[0].mxu0 %v284
      %v494 = vpop.f32.mrb[0].mxu0
      %v495 = vadd.f32 %v280, %v494
      %v496 = vpop.f32.mrb[0].mxu0
      %v497 = vadd.f32 %v280, %v496
      %498 = vdwg.mxu0
      %499 = vmatprep.subr.mxu0 %v179
      %500 = vmatpush1.msra.mxu0 %v178
      %501 = vmatprep.subr.mxu0 %v192
      %502 = vmatpush1.msra.mxu0 %v191
      %503 = vmatprep.subr.mxu0 %v205
      %504 = vmatpush1.msra.mxu0 %v204
      %505 = vmatprep.subr.mxu0 %v218
      %506 = vmatpush1.msra.mxu0 %v217
      %507 = vmatprep.subr.mxu0 %v231
      %508 = vmatpush1.msra.mxu0 %v230
      %509 = vmatprep.subr.mxu0 %v244
      %510 = vmatpush1.msra.mxu0 %v243
      %511 = vmatprep.subr.mxu0 %v257
      %512 = vmatpush1.msra.mxu0 %v256
      %513 = vmatprep.subr.mxu0 %v270
      %514 = vmatpush1.msra.mxu0 %v269
      %515 = vmatprep.subr.mxu0 0.0
      %516 = vmatpush1.msra.mxu0 0.0
      %517 = vmatprep.subr.mxu0 0.0
      %518 = vmatpush1.msra.mxu0 0.0
      %519 = vmatprep.subr.mxu0 0.0
      %520 = vmatpush1.msra.mxu0 0.0
      %521 = vmatprep.subr.mxu0 0.0
      %522 = vmatpush1.msra.mxu0 0.0
      %523 = vmatprep.subr.mxu0 0.0
      %524 = vmatpush1.msra.mxu0 0.0
      %525 = vmatprep.subr.mxu0 0.0
      %526 = vmatpush1.msra.mxu0 0.0
      %527 = vmatprep.subr.mxu0 0.0
      %528 = vmatpush1.msra.mxu0 0.0
      %529 = vmatprep.subr.mxu0 0.0
      %530 = vmatpush1.msra.mxu0 0.0
      %531 = vmatprep.subr.mxu0 0.0
      %532 = vmatpush1.msra.mxu0 0.0
      %533 = vmatprep.subr.mxu0 0.0
      %534 = vmatpush1.msra.mxu0 0.0
      %535 = vmatprep.subr.mxu0 0.0
      %536 = vmatpush1.msra.mxu0 0.0
      %537 = vmatprep.subr.mxu0 0.0
      %538 = vmatpush1.msra.mxu0 0.0
      %539 = vmatprep.subr.mxu0 0.0
      %540 = vmatpush1.msra.mxu0 0.0
      %541 = vmatprep.subr.mxu0 0.0
      %542 = vmatpush1.msra.mxu0 0.0
      %543 = vmatprep.subr.mxu0 0.0
      %544 = vmatpush1.msra.mxu0 0.0
      %545 = vmatprep.subr.mxu0 0.0
      %546 = vmatpush1.msra.mxu0 0.0
      %547 = vmatprep.subr.mxu0 0.0
      %548 = vmatpush1.msra.mxu0 0.0
      %549 = vmatprep.subr.mxu0 0.0
      %550 = vmatpush1.msra.mxu0 0.0
      %551 = vmatprep.subr.mxu0 0.0
      %552 = vmatpush1.msra.mxu0 0.0
      %553 = vmatprep.subr.mxu0 0.0
      %554 = vmatpush1.msra.mxu0 0.0
      %555 = vmatprep.subr.mxu0 0.0
      %556 = vmatpush1.msra.mxu0 0.0
      %557 = vmatprep.subr.mxu0 0.0
      %558 = vmatpush1.msra.mxu0 0.0
      %559 = vmatprep.subr.mxu0 0.0
      %560 = vmatpush1.msra.mxu0 0.0
      %561 = vmatprep.subr.mxu0 0.0
      %562 = vmatpush1.msra.mxu0 0.0
      %563 = vmatprep.mubr.f32.mxu0 0.0
      %564 = vmatmul.mubr.f32.gmra.mrb[0].mxu0 %v284
      %v565 = vpop.f32.mrb[0].mxu0
      %v566 = vadd.f32 %v280, %v565
      %v567 = vpop.f32.mrb[0].mxu0
      %v568 = vadd.f32 %v280, %v567
      %569 = vdwg.mxu0
      %570 = vmatprep.subr.mxu0 %v181
      %571 = vmatpush1.msra.mxu0 %v180
      %572 = vmatprep.subr.mxu0 %v194
      %573 = vmatpush1.msra.mxu0 %v193
      %574 = vmatprep.subr.mxu0 %v207
      %575 = vmatpush1.msra.mxu0 %v206
      %576 = vmatprep.subr.mxu0 %v220
      %577 = vmatpush1.msra.mxu0 %v219
      %578 = vmatprep.subr.mxu0 %v233
      %579 = vmatpush1.msra.mxu0 %v232
      %580 = vmatprep.subr.mxu0 %v246
      %581 = vmatpush1.msra.mxu0 %v245
      %582 = vmatprep.subr.mxu0 %v259
      %583 = vmatpush1.msra.mxu0 %v258
      %584 = vmatprep.subr.mxu0 %v272
      %585 = vmatpush1.msra.mxu0 %v271
      %586 = vmatprep.subr.mxu0 0.0
      %587 = vmatpush1.msra.mxu0 0.0
      %588 = vmatprep.subr.mxu0 0.0
      %589 = vmatpush1.msra.mxu0 0.0
      %590 = vmatprep.subr.mxu0 0.0
      %591 = vmatpush1.msra.mxu0 0.0
      %592 = vmatprep.subr.mxu0 0.0
      %593 = vmatpush1.msra.mxu0 0.0
      %594 = vmatprep.subr.mxu0 0.0
      %595 = vmatpush1.msra.mxu0 0.0
      %596 = vmatprep.subr.mxu0 0.0
      %597 = vmatpush1.msra.mxu0 0.0
      %598 = vmatprep.subr.mxu0 0.0
      %599 = vmatpush1.msra.mxu0 0.0
      %600 = vmatprep.subr.mxu0 0.0
      %601 = vmatpush1.msra.mxu0 0.0
      %602 = vmatprep.subr.mxu0 0.0
      %603 = vmatpush1.msra.mxu0 0.0
      %604 = vmatprep.subr.mxu0 0.0
      %605 = vmatpush1.msra.mxu0 0.0
      %606 = vmatprep.subr.mxu0 0.0
      %607 = vmatpush1.msra.mxu0 0.0
      %608 = vmatprep.subr.mxu0 0.0
      %609 = vmatpush1.msra.mxu0 0.0
      %610 = vmatprep.subr.mxu0 0.0
      %611 = vmatpush1.msra.mxu0 0.0
      %612 = vmatprep.subr.mxu0 0.0
      %613 = vmatpush1.msra.mxu0 0.0
      %614 = vmatprep.subr.mxu0 0.0
      %615 = vmatpush1.msra.mxu0 0.0
      %616 = vmatprep.subr.mxu0 0.0
      %617 = vmatpush1.msra.mxu0 0.0
      %618 = vmatprep.subr.mxu0 0.0
      %619 = vmatpush1.msra.mxu0 0.0
      %620 = vmatprep.subr.mxu0 0.0
      %621 = vmatpush1.msra.mxu0 0.0
      %622 = vmatprep.subr.mxu0 0.0
      %623 = vmatpush1.msra.mxu0 0.0
      %624 = vmatprep.subr.mxu0 0.0
      %625 = vmatpush1.msra.mxu0 0.0
      %626 = vmatprep.subr.mxu0 0.0
      %627 = vmatpush1.msra.mxu0 0.0
      %628 = vmatprep.subr.mxu0 0.0
      %629 = vmatpush1.msra.mxu0 0.0
      %630 = vmatprep.subr.mxu0 0.0
      %631 = vmatpush1.msra.mxu0 0.0
      %632 = vmatprep.subr.mxu0 0.0
      %633 = vmatpush1.msra.mxu0 0.0
      %634 = vmatprep.mubr.f32.mxu0 0.0
      %635 = vmatmul.mubr.f32.gmra.mrb[0].mxu0 %v284
      %v636 = vpop.f32.mrb[0].mxu0
      %v637 = vadd.f32 %v280, %v636
      %v638 = vpop.f32.mrb[0].mxu0
      %v639 = vadd.f32 %v280, %v638
      %640 = vdwg.mxu0
      %641 = vmatprep.subr.mxu0 %v183
      %642 = vmatpush1.msra.mxu0 %v182
      %643 = vmatprep.subr.mxu0 %v196
      %644 = vmatpush1.msra.mxu0 %v195
      %645 = vmatprep.subr.mxu0 %v209
      %646 = vmatpush1.msra.mxu0 %v208
      %647 = vmatprep.subr.mxu0 %v222
      %648 = vmatpush1.msra.mxu0 %v221
      %649 = vmatprep.subr.mxu0 %v235
      %650 = vmatpush1.msra.mxu0 %v234
      %651 = vmatprep.subr.mxu0 %v248
      %652 = vmatpush1.msra.mxu0 %v247
      %653 = vmatprep.subr.mxu0 %v261
      %654 = vmatpush1.msra.mxu0 %v260
      %655 = vmatprep.subr.mxu0 %v274
      %656 = vmatpush1.msra.mxu0 %v273
      %657 = vmatprep.subr.mxu0 0.0
      %658 = vmatpush1.msra.mxu0 0.0
      %659 = vmatprep.subr.mxu0 0.0
      %660 = vmatpush1.msra.mxu0 0.0
      %661 = vmatprep.subr.mxu0 0.0
      %662 = vmatpush1.msra.mxu0 0.0
      %663 = vmatprep.subr.mxu0 0.0
      %664 = vmatpush1.msra.mxu0 0.0
      %665 = vmatprep.subr.mxu0 0.0
      %666 = vmatpush1.msra.mxu0 0.0
      %667 = vmatprep.subr.mxu0 0.0
      %668 = vmatpush1.msra.mxu0 0.0
      %669 = vmatprep.subr.mxu0 0.0
      %670 = vmatpush1.msra.mxu0 0.0
      %671 = vmatprep.subr.mxu0 0.0
      %672 = vmatpush1.msra.mxu0 0.0
      %673 = vmatprep.subr.mxu0 0.0
      %674 = vmatpush1.msra.mxu0 0.0
      %675 = vmatprep.subr.mxu0 0.0
      %676 = vmatpush1.msra.mxu0 0.0
      %677 = vmatprep.subr.mxu0 0.0
      %678 = vmatpush1.msra.mxu0 0.0
      %679 = vmatprep.subr.mxu0 0.0
      %680 = vmatpush1.msra.mxu0 0.0
      %681 = vmatprep.subr.mxu0 0.0
      %682 = vmatpush1.msra.mxu0 0.0
      %683 = vmatprep.subr.mxu0 0.0
      %684 = vmatpush1.msra.mxu0 0.0
      %685 = vmatprep.subr.mxu0 0.0
      %686 = vmatpush1.msra.mxu0 0.0
      %687 = vmatprep.subr.mxu0 0.0
      %688 = vmatpush1.msra.mxu0 0.0
      %689 = vmatprep.subr.mxu0 0.0
      %690 = vmatpush1.msra.mxu0 0.0
      %691 = vmatprep.subr.mxu0 0.0
      %692 = vmatpush1.msra.mxu0 0.0
      %693 = vmatprep.subr.mxu0 0.0
      %694 = vmatpush1.msra.mxu0 0.0
      %695 = vmatprep.subr.mxu0 0.0
      %696 = vmatpush1.msra.mxu0 0.0
      %697 = vmatprep.subr.mxu0 0.0
      %698 = vmatpush1.msra.mxu0 0.0
      %699 = vmatprep.subr.mxu0 0.0
      %700 = vmatpush1.msra.mxu0 0.0
      %701 = vmatprep.subr.mxu0 0.0
      %702 = vmatpush1.msra.mxu0 0.0
      %703 = vmatprep.subr.mxu0 0.0
      %704 = vmatpush1.msra.mxu0 0.0
      %705 = vmatprep.mubr.f32.mxu0 0.0
      %706 = vmatmul.mubr.f32.gmra.mrb[0].mxu0 %v284
      %v707 = vpop.f32.mrb[0].mxu0
      %v708 = vadd.f32 %v280, %v707
      %v709 = vpop.f32.mrb[0].mxu0
      %v710 = vadd.f32 %v280, %v709
      %711 = vdwg.mxu0
      %712 = vmatprep.subr.mxu0 0.0
      %713 = vmatpush1.msra.mxu0 %v184
      %714 = vmatprep.subr.mxu0 0.0
      %715 = vmatpush1.msra.mxu0 %v197
      %716 = vmatprep.subr.mxu0 0.0
      %717 = vmatpush1.msra.mxu0 %v210
      %718 = vmatprep.subr.mxu0 0.0
      %719 = vmatpush1.msra.mxu0 %v223
      %720 = vmatprep.subr.mxu0 0.0
      %721 = vmatpush1.msra.mxu0 %v236
      %722 = vmatprep.subr.mxu0 0.0
      %723 = vmatpush1.msra.mxu0 %v249
      %724 = vmatprep.subr.mxu0 0.0
      %725 = vmatpush1.msra.mxu0 %v262
      %726 = vmatprep.subr.mxu0 0.0
      %727 = vmatpush1.msra.mxu0 %v275
      %728 = vmatprep.subr.mxu0 0.0
      %729 = vmatpush1.msra.mxu0 0.0
      %730 = vmatprep.subr.mxu0 0.0
      %731 = vmatpush1.msra.mxu0 0.0
      %732 = vmatprep.subr.mxu0 0.0
      %733 = vmatpush1.msra.mxu0 0.0
      %734 = vmatprep.subr.mxu0 0.0
      %735 = vmatpush1.msra.mxu0 0.0
      %736 = vmatprep.subr.mxu0 0.0
      %737 = vmatpush1.msra.mxu0 0.0
      %738 = vmatprep.subr.mxu0 0.0
      %739 = vmatpush1.msra.mxu0 0.0
      %740 = vmatprep.subr.mxu0 0.0
      %741 = vmatpush1.msra.mxu0 0.0
      %742 = vmatprep.subr.mxu0 0.0
      %743 = vmatpush1.msra.mxu0 0.0
      %744 = vmatprep.subr.mxu0 0.0
      %745 = vmatpush1.msra.mxu0 0.0
      %746 = vmatprep.subr.mxu0 0.0
      %747 = vmatpush1.msra.mxu0 0.0
      %748 = vmatprep.subr.mxu0 0.0
      %749 = vmatpush1.msra.mxu0 0.0
      %750 = vmatprep.subr.mxu0 0.0
      %751 = vmatpush1.msra.mxu0 0.0
      %752 = vmatprep.subr.mxu0 0.0
      %753 = vmatpush1.msra.mxu0 0.0
      %754 = vmatprep.subr.mxu0 0.0
      %755 = vmatpush1.msra.mxu0 0.0
      %756 = vmatprep.subr.mxu0 0.0
      %757 = vmatpush1.msra.mxu0 0.0
      %758 = vmatprep.subr.mxu0 0.0
      %759 = vmatpush1.msra.mxu0 0.0
      %760 = vmatprep.subr.mxu0 0.0
      %761 = vmatpush1.msra.mxu0 0.0
      %762 = vmatprep.subr.mxu0 0.0
      %763 = vmatpush1.msra.mxu0 0.0
      %764 = vmatprep.subr.mxu0 0.0
      %765 = vmatpush1.msra.mxu0 0.0
      %766 = vmatprep.subr.mxu0 0.0
      %767 = vmatpush1.msra.mxu0 0.0
      %768 = vmatprep.subr.mxu0 0.0
      %769 = vmatpush1.msra.mxu0 0.0
      %770 = vmatprep.subr.mxu0 0.0
      %771 = vmatpush1.msra.mxu0 0.0
      %772 = vmatprep.subr.mxu0 0.0
      %773 = vmatpush1.msra.mxu0 0.0
      %774 = vmatprep.subr.mxu0 0.0
      %775 = vmatpush1.msra.mxu0 0.0
      %776 = vmatprep.mubr.f32.mxu0 0.0
      %777 = vmatmul.mubr.f32.gmra.mrb[0].mxu0 %v284
      %v778 = vpop.f32.mrb[0].mxu0
      %v779 = vadd.f32 %v280, %v778
      %v780 = vpop.f32.mrb[0].mxu0
      %781 = vdwg.mxu0
      %v782 = vmul.f32 %v353, 0.2
      %v783 = vmul.f32 %v355, 0.2
      %v784 = vmul.f32 %v424, 0.2
      %v785 = vmul.f32 %v426, 0.2
      %v786 = vmul.f32 %v495, 0.2
      %v787 = vmul.f32 %v497, 0.2
      %v788 = vmul.f32 %v566, 0.2
      %v789 = vmul.f32 %v568, 0.2
      %v790 = vmul.f32 %v637, 0.2
      %v791 = vmul.f32 %v639, 0.2
      %v792 = vmul.f32 %v708, 0.2
      %v793 = vmul.f32 %v710, 0.2
      %v794 = vmul.f32 %v779, 0.2
      %v795 = vmax.f32 %v353, %v782
      %v796 = vmax.f32 %v355, %v783
      %v797 = vmax.f32 %v424, %v784
      %v798 = vmax.f32 %v426, %v785
      %v799 = vmax.f32 %v495, %v786
      %v800 = vmax.f32 %v497, %v787
      %v801 = vmax.f32 %v566, %v788
      %v802 = vmax.f32 %v568, %v789
      %v803 = vmax.f32 %v637, %v790
      %v804 = vmax.f32 %v639, %v791
      %v805 = vmax.f32 %v708, %v792
      %v806 = vmax.f32 %v710, %v793
      %v807 = vmax.f32 %v779, %v794
      %808 = vst [vmem:[%s170] sm:$0xff] %v795
      %809 = vst [vmem:[%s170 + $0x8] sm:$0xff] %v796
      %810 = vst [vmem:[%s170 + $0x10] sm:$0xff] %v797
      %811 = vst [vmem:[%s170 + $0x18] sm:$0xff] %v798
      %812 = vst [vmem:[%s170 + $0x20] sm:$0xff] %v799
      %813 = vst [vmem:[%s170 + $0x28] sm:$0xff] %v800
      %814 = vst [vmem:[%s170 + $0x30] sm:$0xff] %v801
      %815 = vst [vmem:[%s170 + $0x38] sm:$0xff] %v802
      %816 = vst [vmem:[%s170 + $0x40] sm:$0xff] %v803
      %817 = vst [vmem:[%s170 + $0x48] sm:$0xff] %v804
      %818 = vst [vmem:[%s170 + $0x50] sm:$0xff] %v805
      %819 = vst [vmem:[%s170 + $0x58] sm:$0xff] %v806
      %vm820 = vcmask 261120
      %821 = vst.msk [vmem:[%s170 + $0x60] sm:$0xff] %vm820, %v807
      %p822 = scmp.lt.s32.totalorder %s14, 1
      %s823 = scalar_select %p822, %s14, 1
      %s824 = smul.addr %s823, 13
      %s825 = smul.addr %s824, 8
      %s826 = scalar_lea.vmem %s3, %s825
      // Predicated region
      $region33: #{encoder_forward.5} parent=31 // pred_check
        %p827 = pneg %p100
      $region34: #{encoder_forward.5} parent=31 // pred_check_branch
        %829 = sbr.rel (%p827) target = $region36
      $region35: #{encoder_forward.5} parent=31 // pred_region
        _
      $region36: #{encoder_forward.5} parent=31 // pred_fallthru
        _
    $region32: #{encoder_forward.5} parent=5 // pred_fallthru
      _
    %p830 = scmp.le.s32.totalorder 2, %s9
    // Predicated region
    $region37: #{encoder_forward.5} parent=5 // pred_check
      %p831 = pneg %p830
    $region38: #{encoder_forward.5} parent=5 // pred_check_branch
      %833 = sbr.rel (%p831) target = $region40
    $region39: #{encoder_forward.5} parent=5 // pred_region
      %s834 = ssub.s32 %s9, 2
      // Predicated region
      $region41: #{encoder_forward.5} parent=39 // pred_check
        %p835 = pneg %p106
      $region42: #{encoder_forward.5} parent=39 // pred_check_branch
        %837 = sbr.rel (%p835) target = $region44
      $region43: #{encoder_forward.5} parent=39 // pred_region
        %p838 = scmp.lt.s32.totalorder %s15, 1
        %s839 = scalar_select %p838, %s15, 1
        %s840 = smul.addr %s839, 13
        %s841 = smul.addr %s840, 8
        %s842 = scalar_lea.vmem %s3, %s841
      $region44: #{encoder_forward.5} parent=39 // pred_fallthru
        _
    $region40: #{encoder_forward.5} parent=5 // pred_fallthru
      _
  $region6: #{encoder_forward.5} parent=0 // loop_footer
    %s13 = sadd.s32 1, %s9
  $region7: #{encoder_forward.5} parent=0 // loop_footer_branch
    %8 = sbr.rel target = $region3
  $region8: #{encoder_forward.5} parent=0 // loop_exit
    _

// kernel: encoder_forward.6
$region0: #{encoder_forward.6}
  #allocation0 [shape = 'u32[]', space=smem, size = 0x4, offset = 0x4, fixed_abs, tag = 'smem constant byte address 0x4 - core index']
  #allocation1 [shape = 'u32[144,128]{1,0:T(1,128)}', space=vmem, size = 0x12000, scoped, tag = 'internal scratch']
  %s0 = inlined_call_operand.vmem [shape: f32[2,128,288], index: 0, kind: input, shape index: {}]
  %s1 = inlined_call_operand.vmem [shape: f32[16,128], index: 1, kind: input, shape index: {}]
  %s2 = inlined_call_operand.vmem [shape: f32[16,1], index: 2, kind: input, shape index: {}]
  %s3 = inlined_call_operand.vmem [shape: f32[2,16,288], index: 3, kind: output, shape index: {}]
  %s4 = sld [smem:[#allocation0]]
  $region45: #{encoder_forward.6} parent=0
    _
  %s6 = ssub.s32 1, %s4
  %s7 = scalar_select 0, %s6, %s4
  loop: start=0, step=1, limit=4
  $region2: #{encoder_forward.6} parent=0 // loop_pre_header
    _
  $region3: #{encoder_forward.6} parent=0 // loop_header
    %s9 = sphi 0, %s13
    %p10 = scmp.ge.s32.totalorder %s9, 4
    %s19 = sphi 0, %s21
    %s22 = sphi 0, %s19
    %s23 = sphi 0, %s22
    %s39 = sphi 0, %s23
    %s43 = sphi 0, %s43
    %s45 = sphi 0, %s43
    %s46 = sphi 0, %s45
    %s60 = sphi 0, %s46
    %s64 = sphi 0, %s64
    %s66 = sphi 0, %s64
    %s67 = sphi 0, %s66
    %s81 = sphi 0, %s67
    %s87 = sphi 0, %s89
    %s90 = sphi 0, %s87
    %s91 = sphi 0, %s90
    %s107 = sphi 0, %s91
  $region4: #{encoder_forward.6} parent=0 // loop_header_branch
    %12 = sbr.rel (%p10) target = $region8
  $region5: #{encoder_forward.6} parent=0 // loop_body
    %s14 = ssub.s32 %s9, 1
    %s15 = ssub.s32 %s9, 2
    %s16 = sadd.s32 %s9, 1
    %s17 = ssub.s32 %s9, %s16
    %p18 = scmp.eq.s32.totalorder %s17, 0
    %s20 = sadd.s32 %s19, 1
    %s21 = scalar_select %p18, %s19, %s20
    %p24 = pneg %p18
    %p25 = scmp.eq.s32.totalorder %s9, 1
    %p26 = por %p24, %p25
    %p27 = scmp.ne.s32.totalorder %s19, %s22
    %p28 = scmp.eq.s32.totalorder %s9, 0
    %p29 = por %p27, %p28
    %p30 = scmp.ne.s32.totalorder %s19, %s22
    %p31 = scmp.eq.s32.totalorder %s14, 1
    %p32 = por %p30, %p31
    %p33 = scmp.ne.s32.totalorder %s22, %s23
    %p34 = scmp.eq.s32.totalorder %s14, 0
    %p35 = por %p33, %p34
    %p36 = scmp.ne.s32.totalorder %s22, %s23
    %p37 = scmp.eq.s32.totalorder %s15, 1
    %p38 = por %p36, %p37
    %p40 = scmp.ne.s32.totalorder %s23, %s39
    %p41 = scmp.eq.s32.totalorder %s15, 0
    %p42 = por %p40, %p41
    %s44 = sadd.s32 %s43, 1
    %p47 = scmp.eq.s32.totalorder %s9, 1
    %p48 = scmp.ne.s32.totalorder %s43, %s45
    %p49 = scmp.eq.s32.totalorder %s9, 0
    %p50 = por %p48, %p49
    %p51 = scmp.ne.s32.totalorder %s43, %s45
    %p52 = scmp.eq.s32.totalorder %s14, 1
    %p53 = por %p51, %p52
    %p54 = scmp.ne.s32.totalorder %s45, %s46
    %p55 = scmp.eq.s32.totalorder %s14, 0
    %p56 = por %p54, %p55
    %p57 = scmp.ne.s32.totalorder %s45, %s46
    %p58 = scmp.eq.s32.totalorder %s15, 1
    %p59 = por %p57, %p58
    %p61 = scmp.ne.s32.totalorder %s46, %s60
    %p62 = scmp.eq.s32.totalorder %s15, 0
    %p63 = por %p61, %p62
    %s65 = sadd.s32 %s64, 1
    %p68 = scmp.eq.s32.totalorder %s9, 1
    %p69 = scmp.ne.s32.totalorder %s64, %s66
    %p70 = scmp.eq.s32.totalorder %s9, 0
    %p71 = por %p69, %p70
    %p72 = scmp.ne.s32.totalorder %s64, %s66
    %p73 = scmp.eq.s32.totalorder %s14, 1
    %p74 = por %p72, %p73
    %p75 = scmp.ne.s32.totalorder %s66, %s67
    %p76 = scmp.eq.s32.totalorder %s14, 0
    %p77 = por %p75, %p76
    %p78 = scmp.ne.s32.totalorder %s66, %s67
    %p79 = scmp.eq.s32.totalorder %s15, 1
    %p80 = por %p78, %p79
    %p82 = scmp.ne.s32.totalorder %s67, %s81
    %p83 = scmp.eq.s32.totalorder %s15, 0
    %p84 = por %p82, %p83
    %s85 = ssub.s32 %s9, %s16
    %p86 = scmp.eq.s32.totalorder %s85, 0
    %s88 = sadd.s32 %s87, 1
    %s89 = scalar_select %p86, %s87, %s88
    %p92 = pneg %p86
    %p93 = scmp.eq.s32.totalorder %s9, 1
    %p94 = por %p92, %p93
    %p95 = scmp.ne.s32.totalorder %s87, %s90
    %p96 = scmp.eq.s32.totalorder %s9, 0
    %p97 = por %p95, %p96
    %p98 = scmp.ne.s32.totalorder %s87, %s90
    %p99 = scmp.eq.s32.totalorder %s14, 1
    %p100 = por %p98, %p99
    %p101 = scmp.ne.s32.totalorder %s90, %s91
    %p102 = scmp.eq.s32.totalorder %s14, 0
    %p103 = por %p101, %p102
    %p104 = scmp.ne.s32.totalorder %s90, %s91
    %p105 = scmp.eq.s32.totalorder %s15, 1
    %p106 = por %p104, %p105
    %p108 = scmp.ne.s32.totalorder %s91, %s107
    %p109 = scmp.eq.s32.totalorder %s15, 0
    %p110 = por %p108, %p109
    %p111 = scmp.le.s32.totalorder 1, %s9
    %p112 = scmp.lt.s32.totalorder %s9, 3
    %p113 = pnand %p111, %p112
    %p114 = pneg %p113
    // Predicated region
    $region9: #{encoder_forward.6} parent=5 // pred_check
      _
    $region10: #{encoder_forward.6} parent=5 // pred_check_branch
      %116 = sbr.rel (%p113) target = $region12
    $region11: #{encoder_forward.6} parent=5 // pred_region
      %s117 = ssub.s32 %s9, 1
      // Predicated region
      $region13: #{encoder_forward.6} parent=11 // pred_check
        %p118 = pneg %p56
      $region14: #{encoder_forward.6} parent=11 // pred_check_branch
        %120 = sbr.rel (%p118) target = $region16
      $region15: #{encoder_forward.6} parent=11 // pred_region
        _
      $region16: #{encoder_forward.6} parent=11 // pred_fallthru
        _
      // Predicated region
      $region17: #{encoder_forward.6} parent=11 // pred_check
        %p121 = pneg %p77
      $region18: #{encoder_forward.6} parent=11 // pred_check_branch
        %123 = sbr.rel (%p121) target = $region20
      $region19: #{encoder_forward.6} parent=11 // pred_region
        _
      $region20: #{encoder_forward.6} parent=11 // pred_fallthru
        _
    $region12: #{encoder_forward.6} parent=5 // pred_fallthru
      _
    %p124 = scmp.lt.s32.totalorder %s9, 2
    // Predicated region
    $region21: #{encoder_forward.6} parent=5 // pred_check
      %p125 = pneg %p124
    $region22: #{encoder_forward.6} parent=5 // pred_check_branch
      %127 = sbr.rel (%p125) target = $region24
    $region23: #{encoder_forward.6} parent=5 // pred_region
      // Predicated region
      $region25: #{encoder_forward.6} parent=23 // pred_check
        %p128 = pneg %p29
      $region26: #{encoder_forward.6} parent=23 // pred_check_branch
        %130 = sbr.rel (%p128) target = $region28
      $region27: #{encoder_forward.6} parent=23 // pred_region
        %p131 = scmp.lt.s32.totalorder %s9, 1
        %s132 = scalar_select %p131, %s9, 1
        %s133 = smul.addr %s132, 48
        %s134 = smul.addr %s133, 8
        %s135 = scalar_lea.vmem %s0, %s134
      $region28: #{encoder_forward.6} parent=23 // pred_fallthru
        _
    $region24: #{encoder_forward.6} parent=5 // pred_fallthru
      _
    %p136 = scmp.le.s32.totalorder 1, %s9
    %p137 = scmp.lt.s32.totalorder %s9, 3
    %p138 = pnand %p136, %p137
    %p139 = pneg %p138
    // Predicated region
    $region29: #{encoder_forward.6} parent=5 // pred_check
      _
    $region30: #{encoder_forward.6} parent=5 // pred_check_branch
      %141 = sbr.rel (%p138) target = $region32
    $region31: #{encoder_forward.6} parent=5 // pred_region
      %s142 = ssub.s32 %s9, 1
      %p143 = scmp.lt.s32.totalorder %s14, 1
      %s144 = scalar_select %p143, %s14, 1
      %s145 = smul.addr %s144, 48
      %s146 = smul.addr %s145, 8
      %s147 = scalar_lea.vmem %s0, %s146
      %p148 = pneg %p35
      %p149 = pneg %p32
      %p150 = pneg %p56
      %p151 = pneg %p53
      %p152 = pneg %p77
      %p153 = pneg %p74
      %p154 = pneg %p103
      %p155 = pneg %p100
      %p156 = scmp.lt.s32.totalorder %s14, 1
      %s157 = scalar_select %p156, %s14, 1
      %s158 = smul.addr %s157, 6
      %s159 = smul.addr %s158, 8
      %s160 = scalar_lea.vmem %s3, %s159
      %p161 = scmp.lt.s32.totalorder %s14, 1
      %s162 = scalar_select %p161, %s14, 1
      %s163 = smul.addr %s162, 48
      %s164 = smul.addr %s163, 8
      %s165 = scalar_lea.vmem %s0, %s164
      %p166 = scmp.lt.s32.totalorder %s14, 1
      %s167 = scalar_select %p166, %s14, 1
      %s168 = smul.addr %s167, 6
      %s169 = smul.addr %s168, 8
      %s170 = scalar_lea.vmem %s3, %s169
      %v171 = vld [vmem:[%s1] sm:$0xff]
      %v172 = vld [vmem:[%s1 + $0x8] sm:$0xff]
      %v173 = vld [vmem:[%s165] sm:$0xff]
      %v174 = vld [vmem:[%s165 + $0x8] sm:$0xff]
      %v175 = vld [vmem:[%s165 + $0x10] sm:$0xff]
      %v176 = vld [vmem:[%s165 + $0x18] sm:$0xff]
      %v177 = vld [vmem:[%s165 + $0x20] sm:$0xff]
      %v178 = vld [vmem:[%s165 + $0x28] sm:$0xff]
      %v179 = vld [vmem:[%s165 + $0x30] sm:$0xff]
      %v180 = vld [vmem:[%s165 + $0x38] sm:$0xff]
      %v181 = vld [vmem:[%s165 + $0x40] sm:$0xff]
      %v182 = vld [vmem:[%s165 + $0x48] sm:$0xff]
      %v183 = vld [vmem:[%s165 + $0x50] sm:$0xff]
      %v184 = vld [vmem:[%s165 + $0x58] sm:$0xff]
      %v185 = vld [vmem:[%s165 + $0x60] sm:$0xff]
      %v186 = vld [vmem:[%s165 + $0x68] sm:$0xff]
      %v187 = vld [vmem:[%s165 + $0x70] sm:$0xff]
      %v188 = vld [vmem:[%s165 + $0x78] sm:$0xff]
      %v189 = vld [vmem:[%s165 + $0x80] sm:$0xff]
      %v190 = vld [vmem:[%s165 + $0x88] sm:$0xff]
      %v191 = vld [vmem:[%s165 + $0x90] sm:$0xff]
      %v192 = vld [vmem:[%s165 + $0x98] sm:$0xff]
      %v193 = vld [vmem:[%s165 + $0xa0] sm:$0xff]
      %v194 = vld [vmem:[%s165 + $0xa8] sm:$0xff]
      %v195 = vld [vmem:[%s165 + $0xb0] sm:$0xff]
      %v196 = vld [vmem:[%s165 + $0xb8] sm:$0xff]
      %v197 = vld [vmem:[%s165 + $0xc0] sm:$0xff]
      %v198 = vld [vmem:[%s165 + $0xc8] sm:$0xff]
      %v199 = vld [vmem:[%s165 + $0xd0] sm:$0xff]
      %v200 = vld [vmem:[%s165 + $0xd8] sm:$0xff]
      %v201 = vld [vmem:[%s165 + $0xe0] sm:$0xff]
      %v202 = vld [vmem:[%s165 + $0xe8] sm:$0xff]
      %v203 = vld [vmem:[%s165 + $0xf0] sm:$0xff]
      %v204 = vld [vmem:[%s165 + $0xf8] sm:$0xff]
      %v205 = vld [vmem:[%s165 + $0x100] sm:$0xff]
      %v206 = vld [vmem:[%s165 + $0x108] sm:$0xff]
      %v207 = vld [vmem:[%s165 + $0x110] sm:$0xff]
      %v208 = vld [vmem:[%s165 + $0x118] sm:$0xff]
      %v209 = vld [vmem:[%s165 + $0x120] sm:$0xff]
      %v210 = vld [vmem:[%s165 + $0x128] sm:$0xff]
      %v211 = vld [vmem:[%s165 + $0x130] sm:$0xff]
      %v212 = vld [vmem:[%s165 + $0x138] sm:$0xff]
      %v213 = vld [vmem:[%s165 + $0x140] sm:$0xff]
      %v214 = vld [vmem:[%s165 + $0x148] sm:$0xff]
      %v215 = vld [vmem:[%s165 + $0x150] sm:$0xff]
      %v216 = vld [vmem:[%s165 + $0x158] sm:$0xff]
      %v217 = vld [vmem:[%s165 + $0x160] sm:$0xff]
      %v218 = vld [vmem:[%s165 + $0x168] sm:$0xff]
      %v219 = vld [vmem:[%s165 + $0x170] sm:$0xff]
      %v220 = vld [vmem:[%s165 + $0x178] sm:$0xff]
      %v221 = vld [vmem:[%s2] sm:$0xff]
      %v222 = vld [vmem:[%s2 + $0x8] sm:$0xff]
      %224 = vset.pattern.permute.xlu0 0
      %225 = vperm.xlu0 %224, %v221
      %v226 = vpop.permute.xlu0 %225
      %229 = vset.pattern.permute.xlu0 0
      %230 = vperm.xlu0 %229, %v222
      %v231 = vpop.permute.xlu0 %230
      %233 = vmatprep.subr.mxu0 %v174
      %234 = vmatpush1.msra.mxu0 %v173
      %235 = vmatprep.subr.mxu0 %v177
      %236 = vmatpush1.msra.mxu0 %v176
      %237 = vmatprep.subr.mxu0 %v180
      %238 = vmatpush1.msra.mxu0 %v179
      %239 = vmatprep.subr.mxu0 %v183
      %240 = vmatpush1.msra.mxu0 %v182
      %241 = vmatprep.subr.mxu0 %v186
      %242 = vmatpush1.msra.mxu0 %v185
      %243 = vmatprep.subr.mxu0 %v189
      %244 = vmatpush1.msra.mxu0 %v188
      %245 = vmatprep.subr.mxu0 %v192
      %246 = vmatpush1.msra.mxu0 %v191
      %247 = vmatprep.subr.mxu0 %v195
      %248 = vmatpush1.msra.mxu0 %v194
      %249 = vmatprep.subr.mxu0 %v198
      %250 = vmatpush1.msra.mxu0 %v197
      %251 = vmatprep.subr.mxu0 %v201
      %252 = vmatpush1.msra.mxu0 %v200
      %253 = vmatprep.subr.mxu0 %v204
      %254 = vmatpush1.msra.mxu0 %v203
      %255 = vmatprep.subr.mxu0 %v207
      %256 = vmatpush1.msra.mxu0 %v206
      %257 = vmatprep.subr.mxu0 %v210
      %258 = vmatpush1.msra.mxu0 %v209
      %259 = vmatprep.subr.mxu0 %v213
      %260 = vmatpush1.msra.mxu0 %v212
      %261 = vmatprep.subr.mxu0 %v216
      %262 = vmatpush1.msra.mxu0 %v215
      %263 = vmatprep.subr.mxu0 %v219
      %264 = vmatpush1.msra.mxu0 %v218
      %265 = vmatprep.subr.mxu0 0.0
      %266 = vmatpush1.msra.mxu0 0.0
      %267 = vmatprep.subr.mxu0 0.0
      %268 = vmatpush1.msra.mxu0 0.0
      %269 = vmatprep.subr.mxu0 0.0
      %270 = vmatpush1.msra.mxu0 0.0
      %271 = vmatprep.subr.mxu0 0.0
      %272 = vmatpush1.msra.mxu0 0.0
      %273 = vmatprep.subr.mxu0 0.0
      %274 = vmatpush1.msra.mxu0 0.0
      %275 = vmatprep.subr.mxu0 0.0
      %276 = vmatpush1.msra.mxu0 0.0
      %277 = vmatprep.subr.mxu0 0.0
      %278 = vmatpush1.msra.mxu0 0.0
      %279 = vmatprep.subr.mxu0 0.0
      %280 = vmatpush1.msra.mxu0 0.0
      %281 = vmatprep.subr.mxu0 0.0
      %282 = vmatpush1.msra.mxu0 0.0
      %283 = vmatprep.subr.mxu0 0.0
      %284 = vmatpush1.msra.mxu0 0.0
      %285 = vmatprep.subr.mxu0 0.0
      %286 = vmatpush1.msra.mxu0 0.0
      %287 = vmatprep.subr.mxu0 0.0
      %288 = vmatpush1.msra.mxu0 0.0
      %289 = vmatprep.subr.mxu0 0.0
      %290 = vmatpush1.msra.mxu0 0.0
      %291 = vmatprep.subr.mxu0 0.0
      %292 = vmatpush1.msra.mxu0 0.0
      %293 = vmatprep.subr.mxu0 0.0
      %294 = vmatpush1.msra.mxu0 0.0
      %295 = vmatprep.subr.mxu0 0.0
      %296 = vmatpush1.msra.mxu0 0.0
      %297 = vmatprep.mubr.f32.mxu0 0.0
      %298 = vmatmul.mubr.f32.gmra.mrb[0].mxu0 %v171
      %v299 = vpop.f32.mrb[0].mxu0
      %v300 = vadd.f32 %v226, %v299
      %v301 = vpop.f32.mrb[0].mxu0
      %v302 = vadd.f32 %v226, %v301
      %303 = vmatprep.mubr.f32.mxu0 0.0
      %304 = vmatmul.mubr.f32.gmra.mrb[0].mxu0 %v172
      %v305 = vpop.f32.mrb[0].mxu0
      %v306 = vadd.f32 %v231, %v305
      %v307 = vpop.f32.mrb[0].mxu0
      %v308 = vadd.f32 %v231, %v307
      %309 = vdwg.mxu0
      %310 = vmatprep.subr.mxu0 0.0
      %311 = vmatpush1.msra.mxu0 %v175
      %312 = vmatprep.subr.mxu0 0.0
      %313 = vmatpush1.msra.mxu0 %v178
      %314 = vmatprep.subr.mxu0 0.0
      %315 = vmatpush1.msra.mxu0 %v181
      %316 = vmatprep.subr.mxu0 0.0
      %317 = vmatpush1.msra.mxu0 %v184
      %318 = vmatprep.subr.mxu0 0.0
      %319 = vmatpush1.msra.mxu0 %v187
      %320 = vmatprep.subr.mxu0 0.0
      %321 = vmatpush1.msra.mxu0 %v190
      %322 = vmatprep.subr.mxu0 0.0
      %323 = vmatpush1.msra.mxu0 %v193
      %324 = vmatprep.subr.mxu0 0.0
      %325 = vmatpush1.msra.mxu0 %v196
      %326 = vmatprep.subr.mxu0 0.0
      %327 = vmatpush1.msra.mxu0 %v199
      %328 = vmatprep.subr.mxu0 0.0
      %329 = vmatpush1.msra.mxu0 %v202
      %330 = vmatprep.subr.mxu0 0.0
      %331 = vmatpush1.msra.mxu0 %v205
      %332 = vmatprep.subr.mxu0 0.0
      %333 = vmatpush1.msra.mxu0 %v208
      %334 = vmatprep.subr.mxu0 0.0
      %335 = vmatpush1.msra.mxu0 %v211
      %336 = vmatprep.subr.mxu0 0.0
      %337 = vmatpush1.msra.mxu0 %v214
      %338 = vmatprep.subr.mxu0 0.0
      %339 = vmatpush1.msra.mxu0 %v217
      %340 = vmatprep.subr.mxu0 0.0
      %341 = vmatpush1.msra.mxu0 %v220
      %342 = vmatprep.subr.mxu0 0.0
      %343 = vmatpush1.msra.mxu0 0.0
      %344 = vmatprep.subr.mxu0 0.0
      %345 = vmatpush1.msra.mxu0 0.0
      %346 = vmatprep.subr.mxu0 0.0
      %347 = vmatpush1.msra.mxu0 0.0
      %348 = vmatprep.subr.mxu0 0.0
      %349 = vmatpush1.msra.mxu0 0.0
      %350 = vmatprep.subr.mxu0 0.0
      %351 = vmatpush1.msra.mxu0 0.0
      %352 = vmatprep.subr.mxu0 0.0
      %353 = vmatpush1.msra.mxu0 0.0
      %354 = vmatprep.subr.mxu0 0.0
      %355 = vmatpush1.msra.mxu0 0.0
      %356 = vmatprep.subr.mxu0 0.0
      %357 = vmatpush1.msra.mxu0 0.0
      %358 = vmatprep.subr.mxu0 0.0
      %359 = vmatpush1.msra.mxu0 0.0
      %360 = vmatprep.subr.mxu0 0.0
      %361 = vmatpush1.msra.mxu0 0.0
      %362 = vmatprep.subr.mxu0 0.0
      %363 = vmatpush1.msra.mxu0 0.0
      %364 = vmatprep.subr.mxu0 0.0
      %365 = vmatpush1.msra.mxu0 0.0
      %366 = vmatprep.subr.mxu0 0.0
      %367 = vmatpush1.msra.mxu0 0.0
      %368 = vmatprep.subr.mxu0 0.0
      %369 = vmatpush1.msra.mxu0 0.0
      %370 = vmatprep.subr.mxu0 0.0
      %371 = vmatpush1.msra.mxu0 0.0
      %372 = vmatprep.subr.mxu0 0.0
      %373 = vmatpush1.msra.mxu0 0.0
      %374 = vmatprep.mubr.f32.mxu0 0.0
      %375 = vmatmul.mubr.f32.gmra.mrb[0].mxu0 %v171
      %v376 = vpop.f32.mrb[0].mxu0
      %v377 = vadd.f32 %v226, %v376
      %v378 = vpop.f32.mrb[0].mxu0
      %379 = vmatprep.mubr.f32.mxu0 0.0
      %380 = vmatmul.mubr.f32.gmra.mrb[0].mxu0 %v172
      %v381 = vpop.f32.mrb[0].mxu0
      %v382 = vadd.f32 %v231, %v381
      %v383 = vpop.f32.mrb[0].mxu0
      %384 = vdwg.mxu0
      %v385 = vmul.f32 %v300, 0.2
      %v386 = vmul.f32 %v302, 0.2
      %v387 = vmul.f32 %v377, 0.2
      %v388 = vmul.f32 %v306, 0.2
      %v389 = vmul.f32 %v308, 0.2
      %v390 = vmul.f32 %v382, 0.2
      %v391 = vmax.f32 %v300, %v385
      %v392 = vmax.f32 %v302, %v386
      %v393 = vmax.f32 %v377, %v387
      %v394 = vmax.f32 %v306, %v388
      %v395 = vmax.f32 %v308, %v389
      %v396 = vmax.f32 %v382, %v390
      %397 = vst [vmem:[%s170] sm:$0xff] %v391
      %398 = vst [vmem:[%s170 + $0x8] sm:$0xff] %v392
      %vm399 = vcmask 261120
      %400 = vst.msk [vmem:[%s170 + $0x10] sm:$0xff] %vm399, %v393
      %401 = vst [vmem:[%s170 + $0x18] sm:$0xff] %v394
      %402 = vst [vmem:[%s170 + $0x20] sm:$0xff] %v395
      %403 = vst.msk [vmem:[%s170 + $0x28] sm:$0xff] %vm399, %v396
      %p404 = scmp.lt.s32.totalorder %s14, 1
      %s405 = scalar_select %p404, %s14, 1
      %s406 = smul.addr %s405, 6
      %s407 = smul.addr %s406, 8
      %s408 = scalar_lea.vmem %s3, %s407
      // Predicated region
      $region33: #{encoder_forward.6} parent=31 // pred_check
        %p409 = pneg %p100
      $region34: #{encoder_forward.6} parent=31 // pred_check_branch
        %411 = sbr.rel (%p409) target = $region36
      $region35: #{encoder_forward.6} parent=31 // pred_region
        _
      $region36: #{encoder_forward.6} parent=31 // pred_fallthru
        _
    $region32: #{encoder_forward.6} parent=5 // pred_fallthru
      _
    %p412 = scmp.le.s32.totalorder 2, %s9
    // Predicated region
    $region37: #{encoder_forward.6} parent=5 // pred_check
      %p413 = pneg %p412
    $region38: #{encoder_forward.6} parent=5 // pred_check_branch
      %415 = sbr.rel (%p413) target = $region40
    $region39: #{encoder_forward.6} parent=5 // pred_region
      %s416 = ssub.s32 %s9, 2
      // Predicated region
      $region41: #{encoder_forward.6} parent=39 // pred_check
        %p417 = pneg %p106
      $region42: #{encoder_forward.6} parent=39 // pred_check_branch
        %419 = sbr.rel (%p417) target = $region44
      $region43: #{encoder_forward.6} parent=39 // pred_region
        %p420 = scmp.lt.s32.totalorder %s15, 1
        %s421 = scalar_select %p420, %s15, 1
        %s422 = smul.addr %s421, 6
        %s423 = smul.addr %s422, 8
        %s424 = scalar_lea.vmem %s3, %s423
      $region44: #{encoder_forward.6} parent=39 // pred_fallthru
        _
    $region40: #{encoder_forward.6} parent=5 // pred_fallthru
      _
  $region6: #{encoder_forward.6} parent=0 // loop_footer
    %s13 = sadd.s32 1, %s9
  $region7: #{encoder_forward.6} parent=0 // loop_footer_branch
    %8 = sbr.rel target = $region3
  $region8: #{encoder_forward.6} parent=0 // loop_exit
    _

// kernel: encoder_forward.7
$region0: #{encoder_forward.7}
  #allocation0 [shape = 'u32[]', space=smem, size = 0x4, offset = 0x4, fixed_abs, tag = 'smem constant byte address 0x4 - core index']
  #allocation1 [shape = 'u32[144,128]{1,0:T(1,128)}', space=vmem, size = 0x12000, scoped, tag = 'internal scratch']
  %s0 = inlined_call_operand.vmem [shape: f32[16,576], index: 0, kind: input, shape index: {}]
  %s1 = inlined_call_operand.vmem [shape: f32[576,128], index: 1, kind: input, shape index: {}]
  %s2 = inlined_call_operand.vmem [shape: f32[1,128], index: 2, kind: input, shape index: {}]
  %s3 = inlined_call_operand.vmem [shape: f32[128,256], index: 3, kind: input, shape index: {}]
  %s4 = inlined_call_operand.vmem [shape: f32[1,256], index: 4, kind: input, shape index: {}]
  %s5 = inlined_call_operand.vmem [shape: f32[256,256], index: 5, kind: input, shape index: {}]
  %s6 = inlined_call_operand.vmem [shape: f32[1,256], index: 6, kind: input, shape index: {}]
  %s7 = inlined_call_operand.vmem [shape: f32[8,16], index: 7, kind: input, shape index: {}]
  %s8 = inlined_call_operand.vmem [shape: f32[4,16], index: 8, kind: input, shape index: {}]
  %s9 = inlined_call_operand.hbm [shape: f32[16,128], index: 9, kind: output, shape index: {0}]
  %s10 = inlined_call_operand.hbm [shape: f32[8,128], index: 10, kind: output, shape index: {1}]
  %s11 = inlined_call_operand.hbm [shape: f32[4,128], index: 11, kind: output, shape index: {2}]
  %12 = xla_tuple %s9, %s10, %s11
  %s13 = sld [smem:[#allocation0]]
  $region62: #{encoder_forward.7} parent=0
    _
  %s15 = ssub.s32 1, %s13
  %s16 = scalar_select 0, %s15, %s13
  $region1: #{encoder_forward.7} parent=0
    #allocation2 [shape = 'u8[8192]{0}', space=vmem, size = 0x2000, scoped, tag = 'output window, operand 0, single buffered']
    #allocation3 [shape = 's32[1]{0}', space=sflag, size = 0x4, scoped, tag = 'scoped memory for encoder_forward.7']
    #allocation4 [shape = 'u8[4096]{0}', space=vmem, size = 0x1000, scoped, tag = 'output window, operand 1, single buffered']
    #allocation5 [shape = 's32[1]{0}', space=sflag, size = 0x4, scoped, tag = 'scoped memory for encoder_forward.7']
    #allocation6 [shape = 'u8[2048]{0}', space=vmem, size = 0x800, scoped, tag = 'output window, operand 2, single buffered']
    %17 = vsyncpa [#allocation3], 0
    %18 = vsyncpa [#allocation5], 0
    // Predicated region
    $region2: #{encoder_forward.7} parent=1 // pred_check
      _
    $region3: #{encoder_forward.7} parent=1 // pred_check_branch
      %20 = sbr.rel (0) target = $region5
    $region4: #{encoder_forward.7} parent=1 // pred_region
      _
    $region5: #{encoder_forward.7} parent=1 // pred_fallthru
      _
    // Predicated region
    $region6: #{encoder_forward.7} parent=1 // pred_check
      _
    $region7: #{encoder_forward.7} parent=1 // pred_check_branch
      %22 = sbr.rel (0) target = $region9
    $region8: #{encoder_forward.7} parent=1 // pred_region
      _
    $region9: #{encoder_forward.7} parent=1 // pred_fallthru
      _
    // Predicated region
    $region10: #{encoder_forward.7} parent=1 // pred_check
      _
    $region11: #{encoder_forward.7} parent=1 // pred_check_branch
      %24 = sbr.rel (0) target = $region13
    $region12: #{encoder_forward.7} parent=1 // pred_region
      _
    $region13: #{encoder_forward.7} parent=1 // pred_fallthru
      _
    // Predicated region
    $region14: #{encoder_forward.7} parent=1 // pred_check
      _
    $region15: #{encoder_forward.7} parent=1 // pred_check_branch
      %26 = sbr.rel (0) target = $region17
    $region16: #{encoder_forward.7} parent=1 // pred_region
      _
    $region17: #{encoder_forward.7} parent=1 // pred_fallthru
      _
    // Predicated region
    $region18: #{encoder_forward.7} parent=1 // pred_check
      _
    $region19: #{encoder_forward.7} parent=1 // pred_check_branch
      %28 = sbr.rel (0) target = $region21
    $region20: #{encoder_forward.7} parent=1 // pred_region
      _
    $region21: #{encoder_forward.7} parent=1 // pred_fallthru
      _
    // Predicated region
    $region22: #{encoder_forward.7} parent=1 // pred_check
      _
    $region23: #{encoder_forward.7} parent=1 // pred_check_branch
      %30 = sbr.rel (0) target = $region25
    $region24: #{encoder_forward.7} parent=1 // pred_region
      _
    $region25: #{encoder_forward.7} parent=1 // pred_fallthru
      _
    // Predicated region
    $region26: #{encoder_forward.7} parent=1 // pred_check
      _
    $region27: #{encoder_forward.7} parent=1 // pred_check_branch
      %32 = sbr.rel (0) target = $region29
    $region28: #{encoder_forward.7} parent=1 // pred_region
      _
    $region29: #{encoder_forward.7} parent=1 // pred_fallthru
      _
    // Predicated region
    $region30: #{encoder_forward.7} parent=1 // pred_check
      _
    $region31: #{encoder_forward.7} parent=1 // pred_check_branch
      %34 = sbr.rel (0) target = $region33
    $region32: #{encoder_forward.7} parent=1 // pred_region
      _
    $region33: #{encoder_forward.7} parent=1 // pred_fallthru
      _
    // Predicated region
    $region34: #{encoder_forward.7} parent=1 // pred_check
      _
    $region35: #{encoder_forward.7} parent=1 // pred_check_branch
      %36 = sbr.rel (0) target = $region37
    $region36: #{encoder_forward.7} parent=1 // pred_region
      _
    $region37: #{encoder_forward.7} parent=1 // pred_fallthru
      _
    %v37 = vld [vmem:[%s0] sm:$0xff]
    %v38 = vld [vmem:[%s0 + $0x8] sm:$0xff]
    %v39 = vld [vmem:[%s0 + $0x10] sm:$0xff]
    %v40 = vld [vmem:[%s0 + $0x18] sm:$0xff]
    %v41 = vld [vmem:[%s0 + $0x20] sm:$0xff]
    %v42 = vld [vmem:[%s0 + $0x28] sm:$0xff]
    %v43 = vld [vmem:[%s0 + $0x30] sm:$0xff]
    %v44 = vld [vmem:[%s0 + $0x38] sm:$0xff]
    %v45 = vld [vmem:[%s0 + $0x40] sm:$0xff]
    %v46 = vld [vmem:[%s0 + $0x48] sm:$0xff]
    %v47 = vld [vmem:[%s1] sm:$0xff]
    %v48 = vld [vmem:[%s1 + $0x8] sm:$0xff]
    %v49 = vld [vmem:[%s1 + $0x10] sm:$0xff]
    %v50 = vld [vmem:[%s1 + $0x18] sm:$0xff]
    %v51 = vld [vmem:[%s1 + $0x20] sm:$0xff]
    %v52 = vld [vmem:[%s1 + $0x28] sm:$0xff]
    %v53 = vld [vmem:[%s1 + $0x30] sm:$0xff]
    %v54 = vld [vmem:[%s1 + $0x38] sm:$0xff]
    %v55 = vld [vmem:[%s1 + $0x40] sm:$0xff]
    %v56 = vld [vmem:[%s1 + $0x48] sm:$0xff]
    %v57 = vld [vmem:[%s1 + $0x50] sm:$0xff]
    %v58 = vld [vmem:[%s1 + $0x58] sm:$0xff]
    %v59 = vld [vmem:[%s1 + $0x60] sm:$0xff]
    %v60 = vld [vmem:[%s1 + $0x68] sm:$0xff]
    %v61 = vld [vmem:[%s1 + $0x70] sm:$0xff]
    %v62 = vld [vmem:[%s1 + $0x78] sm:$0xff]
    %v63 = vld [vmem:[%s1 + $0x80] sm:$0xff]
    %v64 = vld [vmem:[%s1 + $0x88] sm:$0xff]
    %v65 = vld [vmem:[%s1 + $0x90] sm:$0xff]
    %v66 = vld [vmem:[%s1 + $0x98] sm:$0xff]
    %v67 = vld [vmem:[%s1 + $0xa0] sm:$0xff]
    %v68 = vld [vmem:[%s1 + $0xa8] sm:$0xff]
    %v69 = vld [vmem:[%s1 + $0xb0] sm:$0xff]
    %v70 = vld [vmem:[%s1 + $0xb8] sm:$0xff]
    %v71 = vld [vmem:[%s1 + $0xc0] sm:$0xff]
    %v72 = vld [vmem:[%s1 + $0xc8] sm:$0xff]
    %v73 = vld [vmem:[%s1 + $0xd0] sm:$0xff]
    %v74 = vld [vmem:[%s1 + $0xd8] sm:$0xff]
    %v75 = vld [vmem:[%s1 + $0xe0] sm:$0xff]
    %v76 = vld [vmem:[%s1 + $0xe8] sm:$0xff]
    %v77 = vld [vmem:[%s1 + $0xf0] sm:$0xff]
    %v78 = vld [vmem:[%s1 + $0xf8] sm:$0xff]
    %v79 = vld [vmem:[%s1 + $0x100] sm:$0xff]
    %v80 = vld [vmem:[%s1 + $0x108] sm:$0xff]
    %v81 = vld [vmem:[%s1 + $0x110] sm:$0xff]
    %v82 = vld [vmem:[%s1 + $0x118] sm:$0xff]
    %v83 = vld [vmem:[%s1 + $0x120] sm:$0xff]
    %v84 = vld [vmem:[%s1 + $0x128] sm:$0xff]
    %v85 = vld [vmem:[%s1 + $0x130] sm:$0xff]
    %v86 = vld [vmem:[%s1 + $0x138] sm:$0xff]
    %v87 = vld [vmem:[%s1 + $0x140] sm:$0xff]
    %v88 = vld [vmem:[%s1 + $0x148] sm:$0xff]
    %v89 = vld [vmem:[%s1 + $0x150] sm:$0xff]
    %v90 = vld [vmem:[%s1 + $0x158] sm:$0xff]
    %v91 = vld [vmem:[%s1 + $0x160] sm:$0xff]
    %v92 = vld [vmem:[%s1 + $0x168] sm:$0xff]
    %v93 = vld [vmem:[%s1 + $0x170] sm:$0xff]
    %v94 = vld [vmem:[%s1 + $0x178] sm:$0xff]
    %v95 = vld [vmem:[%s1 + $0x180] sm:$0xff]
    %v96 = vld [vmem:[%s1 + $0x188] sm:$0xff]
    %v97 = vld [vmem:[%s1 + $0x190] sm:$0xff]
    %v98 = vld [vmem:[%s1 + $0x198] sm:$0xff]
    %v99 = vld [vmem:[%s1 + $0x1a0] sm:$0xff]
    %v100 = vld [vmem:[%s1 + $0x1a8] sm:$0xff]
    %v101 = vld [vmem:[%s1 + $0x1b0] sm:$0xff]
    %v102 = vld [vmem:[%s1 + $0x1b8] sm:$0xff]
    %v103 = vld [vmem:[%s1 + $0x1c0] sm:$0xff]
    %v104 = vld [vmem:[%s1 + $0x1c8] sm:$0xff]
    %v105 = vld [vmem:[%s1 + $0x1d0] sm:$0xff]
    %v106 = vld [vmem:[%s1 + $0x1d8] sm:$0xff]
    %v107 = vld [vmem:[%s1 + $0x1e0] sm:$0xff]
    %v108 = vld [vmem:[%s1 + $0x1e8] sm:$0xff]
    %v109 = vld [vmem:[%s1 + $0x1f0] sm:$0xff]
    %v110 = vld [vmem:[%s1 + $0x1f8] sm:$0xff]
    %v111 = vld [vmem:[%s1 + $0x200] sm:$0xff]
    %v112 = vld [vmem:[%s1 + $0x208] sm:$0xff]
    %v113 = vld [vmem:[%s1 + $0x210] sm:$0xff]
    %v114 = vld [vmem:[%s1 + $0x218] sm:$0xff]
    %v115 = vld [vmem:[%s1 + $0x220] sm:$0xff]
    %v116 = vld [vmem:[%s1 + $0x228] sm:$0xff]
    %v117 = vld [vmem:[%s1 + $0x230] sm:$0xff]
    %v118 = vld [vmem:[%s1 + $0x238] sm:$0xff]
    %v119 = vld [vmem:[%s2] sm:$0x1]
    %v121 = vlaneseq
    %v122 = vshrl.u32 %v121, 7
    %v123 = vsub.s32 0, %v122
    %v124 = vrot.slane %v119, %v123
    %vm126 = vcmask 523264
    %v128 = vsel %vm126, %v41, 0
    %v131 = vsel %vm126, %v46, 0
    %133 = vmatprep.subr.mxu0 0.0
    %134 = vmatpush1.msra.mxu0 %v47
    %135 = vmatprep.subr.mxu0 0.0
    %136 = vmatpush1.msra.mxu0 %v48
    %137 = vmatprep.subr.mxu0 0.0
    %138 = vmatpush1.msra.mxu0 %v49
    %139 = vmatprep.subr.mxu0 0.0
    %140 = vmatpush1.msra.mxu0 %v50
    %141 = vmatprep.subr.mxu0 0.0
    %142 = vmatpush1.msra.mxu0 %v51
    %143 = vmatprep.subr.mxu0 0.0
    %144 = vmatpush1.msra.mxu0 %v52
    %145 = vmatprep.subr.mxu0 0.0
    %146 = vmatpush1.msra.mxu0 %v53
    %147 = vmatprep.subr.mxu0 0.0
    %148 = vmatpush1.msra.mxu0 %v54
    %149 = vmatprep.subr.mxu0 0.0
    %150 = vmatpush1.msra.mxu0 %v55
    %151 = vmatprep.subr.mxu0 0.0
    %152 = vmatpush1.msra.mxu0 %v56
    %153 = vmatprep.subr.mxu0 0.0
    %154 = vmatpush1.msra.mxu0 %v57
    %155 = vmatprep.subr.mxu0 0.0
    %156 = vmatpush1.msra.mxu0 %v58
    %157 = vmatprep.subr.mxu0 0.0
    %158 = vmatpush1.msra.mxu0 %v59
    %159 = vmatprep.subr.mxu0 0.0
    %160 = vmatpush1.msra.mxu0 %v60
    %161 = vmatprep.subr.mxu0 0.0
    %162 = vmatpush1.msra.mxu0 %v61
    %163 = vmatprep.subr.mxu0 0.0
    %164 = vmatpush1.msra.mxu0 %v62
    %165 = vmatprep.subr.mxu0 0.0
    %166 = vmatpush1.msra.mxu0 %v63
    %167 = vmatprep.subr.mxu0 0.0
    %168 = vmatpush1.msra.mxu0 %v64
    %169 = vmatprep.subr.mxu0 0.0
    %170 = vmatpush1.msra.mxu0 %v65
    %171 = vmatprep.subr.mxu0 0.0
    %172 = vmatpush1.msra.mxu0 %v66
    %173 = vmatprep.subr.mxu0 0.0
    %174 = vmatpush1.msra.mxu0 %v67
    %175 = vmatprep.subr.mxu0 0.0
    %176 = vmatpush1.msra.mxu0 %v68
    %177 = vmatprep.subr.mxu0 0.0
    %178 = vmatpush1.msra.mxu0 %v69
    %179 = vmatprep.subr.mxu0 0.0
    %180 = vmatpush1.msra.mxu0 %v70
    %181 = vmatprep.subr.mxu0 0.0
    %182 = vmatpush1.msra.mxu0 %v71
    %183 = vmatprep.subr.mxu0 0.0
    %184 = vmatpush1.msra.mxu0 %v72
    %185 = vmatprep.subr.mxu0 0.0
    %186 = vmatpush1.msra.mxu0 %v73
    %187 = vmatprep.subr.mxu0 0.0
    %188 = vmatpush1.msra.mxu0 %v74
    %189 = vmatprep.subr.mxu0 0.0
    %190 = vmatpush1.msra.mxu0 %v75
    %191 = vmatprep.subr.mxu0 0.0
    %192 = vmatpush1.msra.mxu0 %v76
    %193 = vmatprep.subr.mxu0 0.0
    %194 = vmatpush1.msra.mxu0 %v77
    %195 = vmatprep.subr.mxu0 0.0
    %196 = vmatpush1.msra.mxu0 %v78
    %197 = vmatprep.mubr.f32.mxu0 %v38
    %198 = vmatmul.mubr.f32.gmra.mrb[0].mxu0 %v37
    %v199 = vpop.f32.mrb[0].mxu0
    %v200 = vadd.f32 %v124, %v199
    %v201 = vpop.f32.mrb[0].mxu0
    %202 = vmatprep.mubr.f32.mxu0 %v43
    %203 = vmatmul.mubr.f32.gmra.mrb[0].mxu0 %v42
    %v204 = vpop.f32.mrb[0].mxu0
    %v205 = vadd.f32 %v124, %v204
    %v206 = vpop.f32.mrb[0].mxu0
    %207 = vdwg.mxu0
    %208 = vmatprep.subr.mxu0 0.0
    %209 = vmatpush1.msra.mxu0 %v79
    %210 = vmatprep.subr.mxu0 0.0
    %211 = vmatpush1.msra.mxu0 %v80
    %212 = vmatprep.subr.mxu0 0.0
    %213 = vmatpush1.msra.mxu0 %v81
    %214 = vmatprep.subr.mxu0 0.0
    %215 = vmatpush1.msra.mxu0 %v82
    %216 = vmatprep.subr.mxu0 0.0
    %217 = vmatpush1.msra.mxu0 %v83
    %218 = vmatprep.subr.mxu0 0.0
    %219 = vmatpush1.msra.mxu0 %v84
    %220 = vmatprep.subr.mxu0 0.0
    %221 = vmatpush1.msra.mxu0 %v85
    %222 = vmatprep.subr.mxu0 0.0
    %223 = vmatpush1.msra.mxu0 %v86
    %224 = vmatprep.subr.mxu0 0.0
    %225 = vmatpush1.msra.mxu0 %v87
    %226 = vmatprep.subr.mxu0 0.0
    %227 = vmatpush1.msra.mxu0 %v88
    %228 = vmatprep.subr.mxu0 0.0
    %229 = vmatpush1.msra.mxu0 %v89
    %230 = vmatprep.subr.mxu0 0.0
    %231 = vmatpush1.msra.mxu0 %v90
    %232 = vmatprep.subr.mxu0 0.0
    %233 = vmatpush1.msra.mxu0 %v91
    %234 = vmatprep.subr.mxu0 0.0
    %235 = vmatpush1.msra.mxu0 %v92
    %236 = vmatprep.subr.mxu0 0.0
    %237 = vmatpush1.msra.mxu0 %v93
    %238 = vmatprep.subr.mxu0 0.0
    %239 = vmatpush1.msra.mxu0 %v94
    %240 = vmatprep.subr.mxu0 0.0
    %241 = vmatpush1.msra.mxu0 %v95
    %242 = vmatprep.subr.mxu0 0.0
    %243 = vmatpush1.msra.mxu0 %v96
    %244 = vmatprep.subr.mxu0 0.0
    %245 = vmatpush1.msra.mxu0 %v97
    %246 = vmatprep.subr.mxu0 0.0
    %247 = vmatpush1.msra.mxu0 %v98
    %248 = vmatprep.subr.mxu0 0.0
    %249 = vmatpush1.msra.mxu0 %v99
    %250 = vmatprep.subr.mxu0 0.0
    %251 = vmatpush1.msra.mxu0 %v100
    %252 = vmatprep.subr.mxu0 0.0
    %253 = vmatpush1.msra.mxu0 %v101
    %254 = vmatprep.subr.mxu0 0.0
    %255 = vmatpush1.msra.mxu0 %v102
    %256 = vmatprep.subr.mxu0 0.0
    %257 = vmatpush1.msra.mxu0 %v103
    %258 = vmatprep.subr.mxu0 0.0
    %259 = vmatpush1.msra.mxu0 %v104
    %260 = vmatprep.subr.mxu0 0.0
    %261 = vmatpush1.msra.mxu0 %v105
    %262 = vmatprep.subr.mxu0 0.0
    %263 = vmatpush1.msra.mxu0 %v106
    %264 = vmatprep.subr.mxu0 0.0
    %265 = vmatpush1.msra.mxu0 %v107
    %266 = vmatprep.subr.mxu0 0.0
    %267 = vmatpush1.msra.mxu0 %v108
    %268 = vmatprep.subr.mxu0 0.0
    %269 = vmatpush1.msra.mxu0 %v109
    %270 = vmatprep.subr.mxu0 0.0
    %271 = vmatpush1.msra.mxu0 %v110
    %272 = vmatprep.mubr.f32.mxu0 %v40
    %273 = vmatmul.mubr.f32.gmra.mrb[0].mxu0 %v39
    %v274 = vpop.f32.mrb[0].mxu0
    %v275 = vadd.f32 %v200, %v274
    %v276 = vpop.f32.mrb[0].mxu0
    %277 = vmatprep.mubr.f32.mxu0 %v45
    %278 = vmatmul.mubr.f32.gmra.mrb[0].mxu0 %v44
    %v279 = vpop.f32.mrb[0].mxu0
    %v280 = vadd.f32 %v205, %v279
    %v281 = vpop.f32.mrb[0].mxu0
    %282 = vdwg.mxu0
    %283 = vmatprep.subr.mxu0 0.0
    %284 = vmatpush1.msra.mxu0 %v111
    %285 = vmatprep.subr.mxu0 0.0
    %286 = vmatpush1.msra.mxu0 %v112
    %287 = vmatprep.subr.mxu0 0.0
    %288 = vmatpush1.msra.mxu0 %v113
    %289 = vmatprep.subr.mxu0 0.0
    %290 = vmatpush1.msra.mxu0 %v114
    %291 = vmatprep.subr.mxu0 0.0
    %292 = vmatpush1.msra.mxu0 %v115
    %293 = vmatprep.subr.mxu0 0.0
    %294 = vmatpush1.msra.mxu0 %v116
    %295 = vmatprep.subr.mxu0 0.0
    %296 = vmatpush1.msra.mxu0 %v117
    %297 = vmatprep.subr.mxu0 0.0
    %298 = vmatpush1.msra.mxu0 %v118
    %299 = vmatprep.subr.mxu0 0.0
    %300 = vmatpush1.msra.mxu0 0.0
    %301 = vmatprep.subr.mxu0 0.0
    %302 = vmatpush1.msra.mxu0 0.0
    %303 = vmatprep.subr.mxu0 0.0
    %304 = vmatpush1.msra.mxu0 0.0
    %305 = vmatprep.subr.mxu0 0.0
    %306 = vmatpush1.msra.mxu0 0.0
    %307 = vmatprep.subr.mxu0 0.0
    %308 = vmatpush1.msra.mxu0 0.0
    %309 = vmatprep.subr.mxu0 0.0
    %310 = vmatpush1.msra.mxu0 0.0
    %311 = vmatprep.subr.mxu0 0.0
    %312 = vmatpush1.msra.mxu0 0.0
    %313 = vmatprep.subr.mxu0 0.0
    %314 = vmatpush1.msra.mxu0 0.0
    %315 = vmatprep.subr.mxu0 0.0
    %316 = vmatpush1.msra.mxu0 0.0
    %317 = vmatprep.subr.mxu0 0.0
    %318 = vmatpush1.msra.mxu0 0.0
    %319 = vmatprep.subr.mxu0 0.0
    %320 = vmatpush1.msra.mxu0 0.0
    %321 = vmatprep.subr.mxu0 0.0
    %322 = vmatpush1.msra.mxu0 0.0
    %323 = vmatprep.subr.mxu0 0.0
    %324 = vmatpush1.msra.mxu0 0.0
    %325 = vmatprep.subr.mxu0 0.0
    %326 = vmatpush1.msra.mxu0 0.0
    %327 = vmatprep.subr.mxu0 0.0
    %328 = vmatpush1.msra.mxu0 0.0
    %329 = vmatprep.subr.mxu0 0.0
    %330 = vmatpush1.msra.mxu0 0.0
    %331 = vmatprep.subr.mxu0 0.0
    %332 = vmatpush1.msra.mxu0 0.0
    %333 = vmatprep.subr.mxu0 0.0
    %334 = vmatpush1.msra.mxu0 0.0
    %335 = vmatprep.subr.mxu0 0.0
    %336 = vmatpush1.msra.mxu0 0.0
    %337 = vmatprep.subr.mxu0 0.0
    %338 = vmatpush1.msra.mxu0 0.0
    %339 = vmatprep.subr.mxu0 0.0
    %340 = vmatpush1.msra.mxu0 0.0
    %341 = vmatprep.subr.mxu0 0.0
    %342 = vmatpush1.msra.mxu0 0.0
    %343 = vmatprep.subr.mxu0 0.0
    %344 = vmatpush1.msra.mxu0 0.0
    %345 = vmatprep.subr.mxu0 0.0
    %346 = vmatpush1.msra.mxu0 0.0
    %347 = vmatprep.mubr.f32.mxu0 0.0
    %348 = vmatmul.mubr.f32.gmra.mrb[0].mxu0 %v128
    %v349 = vpop.f32.mrb[0].mxu0
    %v350 = vadd.f32 %v275, %v349
    %v351 = vpop.f32.mrb[0].mxu0
    %352 = vmatprep.mubr.f32.mxu0 0.0
    %353 = vmatmul.mubr.f32.gmra.mrb[0].mxu0 %v131
    %v354 = vpop.f32.mrb[0].mxu0
    %v355 = vadd.f32 %v280, %v354
    %v356 = vpop.f32.mrb[0].mxu0
    %357 = vdwg.mxu0
    %v358 = vmul.f32 %v350, 0.2
    %v359 = vmul.f32 %v355, 0.2
    %v360 = vmax.f32 %v350, %v358
    %v361 = vmax.f32 %v355, %v359
    %362 = vst [vmem:[#allocation2] sm:$0xff] %v360
    %363 = vst [vmem:[#allocation2 + $0x8] sm:$0xff] %v361
    %v364 = vld [vmem:[%s3] sm:$0xff]
    %v365 = vld [vmem:[%s3 + $0x8] sm:$0xff]
    %v366 = vld [vmem:[%s3 + $0x10] sm:$0xff]
    %v367 = vld [vmem:[%s3 + $0x18] sm:$0xff]
    %v368 = vld [vmem:[%s3 + $0x20] sm:$0xff]
    %v369 = vld [vmem:[%s3 + $0x28] sm:$0xff]
    %v370 = vld [vmem:[%s3 + $0x30] sm:$0xff]
    %v371 = vld [vmem:[%s3 + $0x38] sm:$0xff]
    %v372 = vld [vmem:[%s3 + $0x40] sm:$0xff]
    %v373 = vld [vmem:[%s3 + $0x48] sm:$0xff]
    %v374 = vld [vmem:[%s3 + $0x50] sm:$0xff]
    %v375 = vld [vmem:[%s3 + $0x58] sm:$0xff]
    %v376 = vld [vmem:[%s3 + $0x60] sm:$0xff]
    %v377 = vld [vmem:[%s3 + $0x68] sm:$0xff]
    %v378 = vld [vmem:[%s3 + $0x70] sm:$0xff]
    %v379 = vld [vmem:[%s3 + $0x78] sm:$0xff]
    %v380 = vld [vmem:[%s3 + $0x80] sm:$0xff]
    %v381 = vld [vmem:[%s3 + $0x88] sm:$0xff]
    %v382 = vld [vmem:[%s3 + $0x90] sm:$0xff]
    %v383 = vld [vmem:[%s3 + $0x98] sm:$0xff]
    %v384 = vld [vmem:[%s3 + $0xa0] sm:$0xff]
    %v385 = vld [vmem:[%s3 + $0xa8] sm:$0xff]
    %v386 = vld [vmem:[%s3 + $0xb0] sm:$0xff]
    %v387 = vld [vmem:[%s3 + $0xb8] sm:$0xff]
    %v388 = vld [vmem:[%s3 + $0xc0] sm:$0xff]
    %v389 = vld [vmem:[%s3 + $0xc8] sm:$0xff]
    %v390 = vld [vmem:[%s3 + $0xd0] sm:$0xff]
    %v391 = vld [vmem:[%s3 + $0xd8] sm:$0xff]
    %v392 = vld [vmem:[%s3 + $0xe0] sm:$0xff]
    %v393 = vld [vmem:[%s3 + $0xe8] sm:$0xff]
    %v394 = vld [vmem:[%s3 + $0xf0] sm:$0xff]
    %v395 = vld [vmem:[%s3 + $0xf8] sm:$0xff]
    %v396 = vld [vmem:[%s4] sm:$0x3]
    %v398 = vlaneseq
    %v399 = vshrl.u32 %v398, 7
    %v400 = vsub.s32 0, %v399
    %v401 = vrot.slane %v396, %v400
    %v402 = vlaneseq
    %v403 = vshrl.u32 %v402, 7
    %v404 = vsub.s32 1, %v403
    %v405 = vrot.slane %v396, %v404
    %408 = vmatprep.subr.mxu0 %v365
    %409 = vmatpush1.msra.mxu0 %v364
    %410 = vmatprep.subr.mxu0 %v367
    %411 = vmatpush1.msra.mxu0 %v366
    %412 = vmatprep.subr.mxu0 %v369
    %413 = vmatpush1.msra.mxu0 %v368
    %414 = vmatprep.subr.mxu0 %v371
    %415 = vmatpush1.msra.mxu0 %v370
    %416 = vmatprep.subr.mxu0 %v373
    %417 = vmatpush1.msra.mxu0 %v372
    %418 = vmatprep.subr.mxu0 %v375
    %419 = vmatpush1.msra.mxu0 %v374
    %420 = vmatprep.subr.mxu0 %v377
    %421 = vmatpush1.msra.mxu0 %v376
    %422 = vmatprep.subr.mxu0 %v379
    %423 = vmatpush1.msra.mxu0 %v378
    %424 = vmatprep.subr.mxu0 %v381
    %425 = vmatpush1.msra.mxu0 %v380
    %426 = vmatprep.subr.mxu0 %v383
    %427 = vmatpush1.msra.mxu0 %v382
    %428 = vmatprep.subr.mxu0 %v385
    %429 = vmatpush1.msra.mxu0 %v384
    %430 = vmatprep.subr.mxu0 %v387
    %431 = vmatpush1.msra.mxu0 %v386
    %432 = vmatprep.subr.mxu0 %v389
    %433 = vmatpush1.msra.mxu0 %v388
    %434 = vmatprep.subr.mxu0 %v391
    %435 = vmatpush1.msra.mxu0 %v390
    %436 = vmatprep.subr.mxu0 %v393
    %437 = vmatpush1.msra.mxu0 %v392
    %438 = vmatprep.subr.mxu0 %v395
    %439 = vmatpush1.msra.mxu0 %v394
    %440 = vmatprep.subr.mxu0 0.0
    %441 = vmatpush1.msra.mxu0 0.0
    %442 = vmatprep.subr.mxu0 0.0
    %443 = vmatpush1.msra.mxu0 0.0
    %444 = vmatprep.subr.mxu0 0.0
    %445 = vmatpush1.msra.mxu0 0.0
    %446 = vmatprep.subr.mxu0 0.0
    %447 = vmatpush1.msra.mxu0 0.0
    %448 = vmatprep.subr.mxu0 0.0
    %449 = vmatpush1.msra.mxu0 0.0
    %450 = vmatprep.subr.mxu0 0.0
    %451 = vmatpush1.msra.mxu0 0.0
    %452 = vmatprep.subr.mxu0 0.0
    %453 = vmatpush1.msra.mxu0 0.0
    %454 = vmatprep.subr.mxu0 0.0
    %455 = vmatpush1.msra.mxu0 0.0
    %456 = vmatprep.subr.mxu0 0.0
    %457 = vmatpush1.msra.mxu0 0.0
    %458 = vmatprep.subr.mxu0 0.0
    %459 = vmatpush1.msra.mxu0 0.0
    %460 = vmatprep.subr.mxu0 0.0
    %461 = vmatpush1.msra.mxu0 0.0
    %462 = vmatprep.subr.mxu0 0.0
    %463 = vmatpush1.msra.mxu0 0.0
    %464 = vmatprep.subr.mxu0 0.0
    %465 = vmatpush1.msra.mxu0 0.0
    %466 = vmatprep.subr.mxu0 0.0
    %467 = vmatpush1.msra.mxu0 0.0
    %468 = vmatprep.subr.mxu0 0.0
    %469 = vmatpush1.msra.mxu0 0.0
    %470 = vmatprep.subr.mxu0 0.0
    %471 = vmatpush1.msra.mxu0 0.0
    %472 = vmatprep.mubr.f32.mxu0 0.0
    %473 = vmatmul.mubr.f32.gmra.mrb[0].mxu0 %v360
    %v474 = vpop.f32.mrb[0].mxu0
    %v475 = vadd.f32 %v401, %v474
    %v476 = vpop.f32.mrb[0].mxu0
    %v477 = vadd.f32 %v405, %v476
    %478 = vmatprep.mubr.f32.mxu0 0.0
    %479 = vmatmul.mubr.f32.gmra.mrb[0].mxu0 %v361
    %v480 = vpop.f32.mrb[0].mxu0
    %v481 = vadd.f32 %v401, %v480
    %v482 = vpop.f32.mrb[0].mxu0
    %v483 = vadd.f32 %v405, %v482
    %484 = vdwg.mxu0
    %v485 = vmax.f32 %v475, 0.0
    %v486 = vmax.f32 %v477, 0.0
    %v487 = vmax.f32 %v481, 0.0
    %v488 = vmax.f32 %v483, 0.0
    %v489 = vld [vmem:[%s5] sm:$0xff]
    %v490 = vld [vmem:[%s5 + $0x8] sm:$0xff]
    %v491 = vld [vmem:[%s5 + $0x10] sm:$0xff]
    %v492 = vld [vmem:[%s5 + $0x18] sm:$0xff]
    %v493 = vld [vmem:[%s5 + $0x20] sm:$0xff]
    %v494 = vld [vmem:[%s5 + $0x28] sm:$0xff]
    %v495 = vld [vmem:[%s5 + $0x30] sm:$0xff]
    %v496 = vld [vmem:[%s5 + $0x38] sm:$0xff]
    %v497 = vld [vmem:[%s5 + $0x40] sm:$0xff]
    %v498 = vld [vmem:[%s5 + $0x48] sm:$0xff]
    %v499 = vld [vmem:[%s5 + $0x50] sm:$0xff]
    %v500 = vld [vmem:[%s5 + $0x58] sm:$0xff]
    %v501 = vld [vmem:[%s5 + $0x60] sm:$0xff]
    %v502 = vld [vmem:[%s5 + $0x68] sm:$0xff]
    %v503 = vld [vmem:[%s5 + $0x70] sm:$0xff]
    %v504 = vld [vmem:[%s5 + $0x78] sm:$0xff]
    %v505 = vld [vmem:[%s5 + $0x80] sm:$0xff]
    %v506 = vld [vmem:[%s5 + $0x88] sm:$0xff]
    %v507 = vld [vmem:[%s5 + $0x90] sm:$0xff]
    %v508 = vld [vmem:[%s5 + $0x98] sm:$0xff]
    %v509 = vld [vmem:[%s5 + $0xa0] sm:$0xff]
    %v510 = vld [vmem:[%s5 + $0xa8] sm:$0xff]
    %v511 = vld [vmem:[%s5 + $0xb0] sm:$0xff]
    %v512 = vld [vmem:[%s5 + $0xb8] sm:$0xff]
    %v513 = vld [vmem:[%s5 + $0xc0] sm:$0xff]
    %v514 = vld [vmem:[%s5 + $0xc8] sm:$0xff]
    %v515 = vld [vmem:[%s5 + $0xd0] sm:$0xff]
    %v516 = vld [vmem:[%s5 + $0xd8] sm:$0xff]
    %v517 = vld [vmem:[%s5 + $0xe0] sm:$0xff]
    %v518 = vld [vmem:[%s5 + $0xe8] sm:$0xff]
    %v519 = vld [vmem:[%s5 + $0xf0] sm:$0xff]
    %v520 = vld [vmem:[%s5 + $0xf8] sm:$0xff]
    %v521 = vld [vmem:[%s5 + $0x100] sm:$0xff]
    %v522 = vld [vmem:[%s5 + $0x108] sm:$0xff]
    %v523 = vld [vmem:[%s5 + $0x110] sm:$0xff]
    %v524 = vld [vmem:[%s5 + $0x118] sm:$0xff]
    %v525 = vld [vmem:[%s5 + $0x120] sm:$0xff]
    %v526 = vld [vmem:[%s5 + $0x128] sm:$0xff]
    %v527 = vld [vmem:[%s5 + $0x130] sm:$0xff]
    %v528 = vld [vmem:[%s5 + $0x138] sm:$0xff]
    %v529 = vld [vmem:[%s5 + $0x140] sm:$0xff]
    %v530 = vld [vmem:[%s5 + $0x148] sm:$0xff]
    %v531 = vld [vmem:[%s5 + $0x150] sm:$0xff]
    %v532 = vld [vmem:[%s5 + $0x158] sm:$0xff]
    %v533 = vld [vmem:[%s5 + $0x160] sm:$0xff]
    %v534 = vld [vmem:[%s5 + $0x168] sm:$0xff]
    %v535 = vld [vmem:[%s5 + $0x170] sm:$0xff]
    %v536 = vld [vmem:[%s5 + $0x178] sm:$0xff]
    %v537 = vld [vmem:[%s5 + $0x180] sm:$0xff]
    %v538 = vld [vmem:[%s5 + $0x188] sm:$0xff]
    %v539 = vld [vmem:[%s5 + $0x190] sm:$0xff]
    %v540 = vld [vmem:[%s5 + $0x198] sm:$0xff]
    %v541 = vld [vmem:[%s5 + $0x1a0] sm:$0xff]
    %v542 = vld [vmem:[%s5 + $0x1a8] sm:$0xff]
    %v543 = vld [vmem:[%s5 + $0x1b0] sm:$0xff]
    %v544 = vld [vmem:[%s5 + $0x1b8] sm:$0xff]
    %v545 = vld [vmem:[%s5 + $0x1c0] sm:$0xff]
    %v546 = vld [vmem:[%s5 + $0x1c8] sm:$0xff]
    %v547 = vld [vmem:[%s5 + $0x1d0] sm:$0xff]
    %v548 = vld [vmem:[%s5 + $0x1d8] sm:$0xff]
    %v549 = vld [vmem:[%s5 + $0x1e0] sm:$0xff]
    %v550 = vld [vmem:[%s5 + $0x1e8] sm:$0xff]
    %v551 = vld [vmem:[%s5 + $0x1f0] sm:$0xff]
    %v552 = vld [vmem:[%s5 + $0x1f8] sm:$0xff]
    %v553 = vld [vmem:[%s6] sm:$0x3]
    %v555 = vlaneseq
    %v556 = vshrl.u32 %v555, 7
    %v557 = vsub.s32 0, %v556
    %v558 = vrot.slane %v553, %v557
    %v559 = vlaneseq
    %v560 = vshrl.u32 %v559, 7
    %v561 = vsub.s32 1, %v560
    %v562 = vrot.slane %v553, %v561
    %565 = vmatprep.subr.mxu0 %v490
    %566 = vmatpush1.msra.mxu0 %v489
    %567 = vmatprep.subr.mxu0 %v492
    %568 = vmatpush1.msra.mxu0 %v491
    %569 = vmatprep.subr.mxu0 %v494
    %570 = vmatpush1.msra.mxu0 %v493
    %571 = vmatprep.subr.mxu0 %v496
    %572 = vmatpush1.msra.mxu0 %v495
    %573 = vmatprep.subr.mxu0 %v498
    %574 = vmatpush1.msra.mxu0 %v497
    %575 = vmatprep.subr.mxu0 %v500
    %576 = vmatpush1.msra.mxu0 %v499
    %577 = vmatprep.subr.mxu0 %v502
    %578 = vmatpush1.msra.mxu0 %v501
    %579 = vmatprep.subr.mxu0 %v504
    %580 = vmatpush1.msra.mxu0 %v503
    %581 = vmatprep.subr.mxu0 %v506
    %582 = vmatpush1.msra.mxu0 %v505
    %583 = vmatprep.subr.mxu0 %v508
    %584 = vmatpush1.msra.mxu0 %v507
    %585 = vmatprep.subr.mxu0 %v510
    %586 = vmatpush1.msra.mxu0 %v509
    %587 = vmatprep.subr.mxu0 %v512
    %588 = vmatpush1.msra.mxu0 %v511
    %589 = vmatprep.subr.mxu0 %v514
    %590 = vmatpush1.msra.mxu0 %v513
    %591 = vmatprep.subr.mxu0 %v516
    %592 = vmatpush1.msra.mxu0 %v515
    %593 = vmatprep.subr.mxu0 %v518
    %594 = vmatpush1.msra.mxu0 %v517
    %595 = vmatprep.subr.mxu0 %v520
    %596 = vmatpush1.msra.mxu0 %v519
    %597 = vmatprep.subr.mxu0 %v522
    %598 = vmatpush1.msra.mxu0 %v521
    %599 = vmatprep.subr.mxu0 %v524
    %600 = vmatpush1.msra.mxu0 %v523
    %601 = vmatprep.subr.mxu0 %v526
    %602 = vmatpush1.msra.mxu0 %v525
    %603 = vmatprep.subr.mxu0 %v528
    %604 = vmatpush1.msra.mxu0 %v527
    %605 = vmatprep.subr.mxu0 %v530
    %606 = vmatpush1.msra.mxu0 %v529
    %607 = vmatprep.subr.mxu0 %v532
    %608 = vmatpush1.msra.mxu0 %v531
    %609 = vmatprep.subr.mxu0 %v534
    %610 = vmatpush1.msra.mxu0 %v533
    %611 = vmatprep.subr.mxu0 %v536
    %612 = vmatpush1.msra.mxu0 %v535
    %613 = vmatprep.subr.mxu0 %v538
    %614 = vmatpush1.msra.mxu0 %v537
    %615 = vmatprep.subr.mxu0 %v540
    %616 = vmatpush1.msra.mxu0 %v539
    %617 = vmatprep.subr.mxu0 %v542
    %618 = vmatpush1.msra.mxu0 %v541
    %619 = vmatprep.subr.mxu0 %v544
    %620 = vmatpush1.msra.mxu0 %v543
    %621 = vmatprep.subr.mxu0 %v546
    %622 = vmatpush1.msra.mxu0 %v545
    %623 = vmatprep.subr.mxu0 %v548
    %624 = vmatpush1.msra.mxu0 %v547
    %625 = vmatprep.subr.mxu0 %v550
    %626 = vmatpush1.msra.mxu0 %v549
    %627 = vmatprep.subr.mxu0 %v552
    %628 = vmatpush1.msra.mxu0 %v551
    %629 = vmatprep.mubr.f32.mxu0 %v486
    %630 = vmatmul.mubr.f32.gmra.mrb[0].mxu0 %v485
    %v631 = vpop.f32.mrb[0].mxu0
    %v632 = vadd.f32 %v558, %v631
    %v633 = vpop.f32.mrb[0].mxu0
    %v634 = vadd.f32 %v562, %v633
    %635 = vmatprep.mubr.f32.mxu0 %v488
    %636 = vmatmul.mubr.f32.gmra.mrb[0].mxu0 %v487
    %v637 = vpop.f32.mrb[0].mxu0
    %v638 = vadd.f32 %v558, %v637
    %v639 = vpop.f32.mrb[0].mxu0
    %v640 = vadd.f32 %v562, %v639
    %641 = vdwg.mxu0
    %v642 = vmax.f32 %v632, 0.0
    %v643 = vmax.f32 %v634, 0.0
    %v644 = vmax.f32 %v638, 0.0
    %v645 = vmax.f32 %v640, 0.0
    %v646 = vld [vmem:[%s7] sm:$0xff]
    %vm647 = vcmask 130048
    %v649 = vsel %vm647, %v646, 0
    %651 = vmatprep.subr.mxu0 0.0
    %652 = vmatpush1.msra.mxu0 %v642
    %653 = vmatprep.subr.mxu0 0.0
    %654 = vmatpush1.msra.mxu0 %v644
    %655 = vmatprep.subr.mxu0 0.0
    %656 = vmatpush1.msra.mxu0 0.0
    %657 = vmatprep.subr.mxu0 0.0
    %658 = vmatpush1.msra.mxu0 0.0
    %659 = vmatprep.subr.mxu0 0.0
    %660 = vmatpush1.msra.mxu0 0.0
    %661 = vmatprep.subr.mxu0 0.0
    %662 = vmatpush1.msra.mxu0 0.0
    %663 = vmatprep.subr.mxu0 0.0
    %664 = vmatpush1.msra.mxu0 0.0
    %665 = vmatprep.subr.mxu0 0.0
    %666 = vmatpush1.msra.mxu0 0.0
    %667 = vmatprep.subr.mxu0 0.0
    %668 = vmatpush1.msra.mxu0 0.0
    %669 = vmatprep.subr.mxu0 0.0
    %670 = vmatpush1.msra.mxu0 0.0
    %671 = vmatprep.subr.mxu0 0.0
    %672 = vmatpush1.msra.mxu0 0.0
    %673 = vmatprep.subr.mxu0 0.0
    %674 = vmatpush1.msra.mxu0 0.0
    %675 = vmatprep.subr.mxu0 0.0
    %676 = vmatpush1.msra.mxu0 0.0
    %677 = vmatprep.subr.mxu0 0.0
    %678 = vmatpush1.msra.mxu0 0.0
    %679 = vmatprep.subr.mxu0 0.0
    %680 = vmatpush1.msra.mxu0 0.0
    %681 = vmatprep.subr.mxu0 0.0
    %682 = vmatpush1.msra.mxu0 0.0
    %683 = vmatprep.subr.mxu0 0.0
    %684 = vmatpush1.msra.mxu0 0.0
    %685 = vmatprep.subr.mxu0 0.0
    %686 = vmatpush1.msra.mxu0 0.0
    %687 = vmatprep.subr.mxu0 0.0
    %688 = vmatpush1.msra.mxu0 0.0
    %689 = vmatprep.subr.mxu0 0.0
    %690 = vmatpush1.msra.mxu0 0.0
    %691 = vmatprep.subr.mxu0 0.0
    %692 = vmatpush1.msra.mxu0 0.0
    %693 = vmatprep.subr.mxu0 0.0
    %694 = vmatpush1.msra.mxu0 0.0
    %695 = vmatprep.subr.mxu0 0.0
    %696 = vmatpush1.msra.mxu0 0.0
    %697 = vmatprep.subr.mxu0 0.0
    %698 = vmatpush1.msra.mxu0 0.0
    %699 = vmatprep.subr.mxu0 0.0
    %700 = vmatpush1.msra.mxu0 0.0
    %701 = vmatprep.subr.mxu0 0.0
    %702 = vmatpush1.msra.mxu0 0.0
    %703 = vmatprep.subr.mxu0 0.0
    %704 = vmatpush1.msra.mxu0 0.0
    %705 = vmatprep.subr.mxu0 0.0
    %706 = vmatpush1.msra.mxu0 0.0
    %707 = vmatprep.subr.mxu0 0.0
    %708 = vmatpush1.msra.mxu0 0.0
    %709 = vmatprep.subr.mxu0 0.0
    %710 = vmatpush1.msra.mxu0 0.0
    %711 = vmatprep.subr.mxu0 0.0
    %712 = vmatpush1.msra.mxu0 0.0
    %713 = vmatprep.subr.mxu0 0.0
    %714 = vmatpush1.msra.mxu0 0.0
    %715 = vmatprep.mubr.f32.mxu0 0.0
    %716 = vmatmul.mubr.f32.gmra.mrb[0].mxu0 %v649
    %v717 = vpop.f32.mrb[0].mxu0
    %v718 = vadd.f32 0.0, %v717
    %v719 = vpop.f32.mrb[0].mxu0
    %720 = vdwg.mxu0
    %721 = vst [vmem:[#allocation4] sm:$0xff] %v718
    %v722 = vld [vmem:[%s8] sm:$0xf]
    %v724 = vsel %vm647, %v722, 0
    %726 = vmatprep.subr.mxu0 0.0
    %727 = vmatpush1.msra.mxu0 %v643
    %728 = vmatprep.subr.mxu0 0.0
    %729 = vmatpush1.msra.mxu0 %v645
    %730 = vmatprep.subr.mxu0 0.0
    %731 = vmatpush1.msra.mxu0 0.0
    %732 = vmatprep.subr.mxu0 0.0
    %733 = vmatpush1.msra.mxu0 0.0
    %734 = vmatprep.subr.mxu0 0.0
    %735 = vmatpush1.msra.mxu0 0.0
    %736 = vmatprep.subr.mxu0 0.0
    %737 = vmatpush1.msra.mxu0 0.0
    %738 = vmatprep.subr.mxu0 0.0
    %739 = vmatpush1.msra.mxu0 0.0
    %740 = vmatprep.subr.mxu0 0.0
    %741 = vmatpush1.msra.mxu0 0.0
    %742 = vmatprep.subr.mxu0 0.0
    %743 = vmatpush1.msra.mxu0 0.0
    %744 = vmatprep.subr.mxu0 0.0
    %745 = vmatpush1.msra.mxu0 0.0
    %746 = vmatprep.subr.mxu0 0.0
    %747 = vmatpush1.msra.mxu0 0.0
    %748 = vmatprep.subr.mxu0 0.0
    %749 = vmatpush1.msra.mxu0 0.0
    %750 = vmatprep.subr.mxu0 0.0
    %751 = vmatpush1.msra.mxu0 0.0
    %752 = vmatprep.subr.mxu0 0.0
    %753 = vmatpush1.msra.mxu0 0.0
    %754 = vmatprep.subr.mxu0 0.0
    %755 = vmatpush1.msra.mxu0 0.0
    %756 = vmatprep.subr.mxu0 0.0
    %757 = vmatpush1.msra.mxu0 0.0
    %758 = vmatprep.subr.mxu0 0.0
    %759 = vmatpush1.msra.mxu0 0.0
    %760 = vmatprep.subr.mxu0 0.0
    %761 = vmatpush1.msra.mxu0 0.0
    %762 = vmatprep.subr.mxu0 0.0
    %763 = vmatpush1.msra.mxu0 0.0
    %764 = vmatprep.subr.mxu0 0.0
    %765 = vmatpush1.msra.mxu0 0.0
    %766 = vmatprep.subr.mxu0 0.0
    %767 = vmatpush1.msra.mxu0 0.0
    %768 = vmatprep.subr.mxu0 0.0
    %769 = vmatpush1.msra.mxu0 0.0
    %770 = vmatprep.subr.mxu0 0.0
    %771 = vmatpush1.msra.mxu0 0.0
    %772 = vmatprep.subr.mxu0 0.0
    %773 = vmatpush1.msra.mxu0 0.0
    %774 = vmatprep.subr.mxu0 0.0
    %775 = vmatpush1.msra.mxu0 0.0
    %776 = vmatprep.subr.mxu0 0.0
    %777 = vmatpush1.msra.mxu0 0.0
    %778 = vmatprep.subr.mxu0 0.0
    %779 = vmatpush1.msra.mxu0 0.0
    %780 = vmatprep.subr.mxu0 0.0
    %781 = vmatpush1.msra.mxu0 0.0
    %782 = vmatprep.subr.mxu0 0.0
    %783 = vmatpush1.msra.mxu0 0.0
    %784 = vmatprep.subr.mxu0 0.0
    %785 = vmatpush1.msra.mxu0 0.0
    %786 = vmatprep.subr.mxu0 0.0
    %787 = vmatpush1.msra.mxu0 0.0
    %788 = vmatprep.subr.mxu0 0.0
    %789 = vmatpush1.msra.mxu0 0.0
    %790 = vmatprep.mubr.f32.mxu0 0.0
    %791 = vmatmul.mubr.f32.gmra.mrb[0].mxu0 %v724
    %v792 = vpop.f32.mrb[0].mxu0
    %v793 = vadd.f32 0.0, %v792
    %v794 = vpop.f32.mrb[0].mxu0
    %795 = vdwg.mxu0
    %796 = vst [vmem:[#allocation6] sm:$0xf] %v793
    // Predicated region
    $region38: #{encoder_forward.7} parent=1 // pred_check
      _
    $region39: #{encoder_forward.7} parent=1 // pred_check_branch
      %798 = sbr.rel (0) target = $region41
    $region40: #{encoder_forward.7} parent=1 // pred_region
      %s800 = ssub.s32 256, 256
      %801 = vsyncadd [#allocation3], %s800
      %s802 = sshll.u32 [#allocation2], 4
      %s803 = int_to_ptr.vmem [resolvable:$true] %s802
      %808 = dma.vmem_to_hbm [thread:$0]  %s803, 256, %s9, [#allocation3], 128, 128, 8
    $region41: #{encoder_forward.7} parent=1 // pred_fallthru
      _
    // Predicated region
    $region42: #{encoder_forward.7} parent=1 // pred_check
      _
    $region43: #{encoder_forward.7} parent=1 // pred_check_branch
      %810 = sbr.rel (0) target = $region45
    $region44: #{encoder_forward.7} parent=1 // pred_region
      %s812 = ssub.s32 128, 128
      %813 = vsyncadd [#allocation5], %s812
      %s815 = sshll.u32 [#allocation4], 4
      %s816 = int_to_ptr.vmem [resolvable:$true] %s815
      %818 = dma.vmem_to_hbm [thread:$0]  %s816, 128, %s10, [#allocation5]
    $region45: #{encoder_forward.7} parent=1 // pred_fallthru
      _
    // Predicated region
    $region46: #{encoder_forward.7} parent=1 // pred_check
      _
    $region47: #{encoder_forward.7} parent=1 // pred_check_branch
      %820 = sbr.rel (0) target = $region49
    $region48: #{encoder_forward.7} parent=1 // pred_region
      %s822 = ssub.s32 64, 64
      %823 = vsyncadd [#allocation5], %s822
      %s825 = sshll.u32 [#allocation6], 4
      %s826 = int_to_ptr.vmem [resolvable:$true] %s825
      %828 = dma.vmem_to_hbm [thread:$0]  %s826, 64, %s11, [#allocation5]
    $region49: #{encoder_forward.7} parent=1 // pred_fallthru
      _
    // Predicated region
    $region50: #{encoder_forward.7} parent=1 // pred_check
      _
    $region51: #{encoder_forward.7} parent=1 // pred_check_branch
      %830 = sbr.rel (0) target = $region53
    $region52: #{encoder_forward.7} parent=1 // pred_region
      %831 = dma.done [#allocation3], 256
    $region53: #{encoder_forward.7} parent=1 // pred_fallthru
      _
    // Predicated region
    $region54: #{encoder_forward.7} parent=1 // pred_check
      _
    $region55: #{encoder_forward.7} parent=1 // pred_check_branch
      %833 = sbr.rel (0) target = $region57
    $region56: #{encoder_forward.7} parent=1 // pred_region
      %834 = dma.done [#allocation5], 128
    $region57: #{encoder_forward.7} parent=1 // pred_fallthru
      _
    // Predicated region
    $region58: #{encoder_forward.7} parent=1 // pred_check
      _
    $region59: #{encoder_forward.7} parent=1 // pred_check_branch
      %836 = sbr.rel (0) target = $region61
    $region60: #{encoder_forward.7} parent=1 // pred_region
      %837 = dma.done [#allocation5], 64
    $region61: #{encoder_forward.7} parent=1 // pred_fallthru
      _
    %838 = vsyncpa [#allocation3], 1
    %839 = vsyncpa [#allocation5], 1

</llo_original>
